<compile_context>
chip_gen: v6e
topology: v6e:2x2x1
jax: 0.10.0
libtpu: 0.0.40
codegen_flags: <defaults>
</compile_context>

<pallas_src>
import jax
import jax.numpy as jnp
from jax.experimental import pallas as pl
from jax.experimental.pallas import tpu as pltpu


def _round_up(v, m):
    return -(-v // m) * m


def deep_sets_kernel(x_ref, w1_ref, b1_ref, w2_ref, b2_ref,
                     w3_ref, b3_ref, w4_ref, b4_ref, out_ref):
    TB, N, D = x_ref.shape
    H = w1_ref.shape[1]

    x = x_ref[...]                                            # (TB, N, D) f32

    # ---- mask / clamped valid count (f32, VPU) -------------------------------
    # Mask is computed on the original-precision x, so values that would round
    # to bf16 zero are still counted as valid set elements.
    mask_f = jnp.any(x != 0.0, axis=-1).astype(jnp.float32)            # (TB, N)
    valid = jnp.maximum(jnp.sum(mask_f, axis=-1, keepdims=True), 1.0)  # (TB, 1)
    inv_valid = pl.reciprocal(valid, approx=True)     # EUP slot, effectively free
    scale = mask_f * inv_valid                        # (TB, N): mask & 1/valid fused
    sum_scale = jnp.sum(scale, axis=-1, keepdims=True)  # (TB,1): 1.0 non-empty, 0.0 empty

    # ---- phi layer 1: Linear + ReLU on all TB*N set elements (MXU, bf16/f32) --
    x_mm = x.astype(w1_ref.dtype).reshape(TB * N, D)
    h = jnp.dot(x_mm, w1_ref[...], preferred_element_type=jnp.float32) + b1_ref[...]
    h = jnp.maximum(h, 0.0)                                             # (TB*N, H) f32

    # ---- masked-mean pooling commuted with phi layer 2 (exact by linearity) --
    #   pooled = sum_n scale*(h@W2 + b2) = (sum_n scale*h) @ W2 + (sum_n scale)*b2
    pooled_h = jnp.sum(h.reshape(TB, N, H) * scale[:, :, None], axis=1)  # (TB, H)
    pooled = jnp.dot(pooled_h.astype(w2_ref.dtype), w2_ref[...],
                     preferred_element_type=jnp.float32) + sum_scale * b2_ref[...]

    # ---- rho: Linear -> ReLU -> Linear on the TB pooled rows ------------------
    r = jnp.dot(pooled.astype(w3_ref.dtype), w3_ref[...],
                preferred_element_type=jnp.float32) + b3_ref[...]        # (TB, H)
    r = jnp.maximum(r, 0.0)
    out = jnp.dot(r.astype(w4_ref.dtype), w4_ref[...],
                  preferred_element_type=jnp.float32) + b4_ref[...]      # (TB, O_pad)

    out_ref[...] = out.astype(out_ref.dtype)


def deep_sets_forward(x, params, *, tb=None, compute_dtype=jnp.bfloat16):
    """x: (B, N, D) float32. params: (w1,b1,w2,b2,w3,b3,w4,b4). Returns (B, O) f32."""
    B, N, D = x.shape
    w1, b1, w2, b2, w3, b3, w4, b4 = params
    H = w1.shape[1]
    O = w4.shape[1]
    o_pad = _round_up(O, 128)          # lane-dense output stores (unmasked vst)
    cd = jnp.dtype(compute_dtype)

    # Weights to bf16 once (grid-resident, one tiny HBM->VMEM copy); x stays
    # f32 and is cast in-kernel, so x is streamed from HBM exactly once.
    w1c = w1.astype(cd)
    w2c = w2.astype(cd)
    w3c = w3.astype(cd)
    w4c = jnp.pad(w4, ((0, 0), (0, o_pad - O))).astype(cd)
    b4p = jnp.pad(b4, ((0, 0), (0, o_pad - O)))

    # ---- batch tile: ~1 MiB lane-padded x block, >=256 matmul rows, mult of 8.
    d_lanes = _round_up(D, 128)
    if tb is None:
        x_row_bytes = N * d_lanes * jnp.dtype(x.dtype).itemsize
        tb_vmem = max(1, (1 << 20) // x_row_bytes)
        tb_rows = -(-256 // N)
        tb = max(tb_vmem, tb_rows, 8)
        tb = _round_up(tb, 8)
        tb = min(tb, B)
        if tb < B:
            tb = max(8, (tb // 8) * 8)
    num_blocks = pl.cdiv(B, tb)

    # ---- VMEM budget (real block sizes + headroom), capped for v7x (64 MiB) --
    def blk_bytes(shape, itemsize):
        s = list(shape)
        s[-1] = _round_up(s[-1], 128)
        if len(s) >= 2:
            s[-2] = _round_up(s[-2], 8)
        n = 1
        for d in s:
            n *= d
        return n * itemsize

    x_bytes = blk_bytes((tb, N, D), 4) * 2                 # double-buffered input
    out_bytes = blk_bytes((tb, o_pad), 4) * 2              # double-buffered output
    w_bytes = sum(blk_bytes(s, cd.itemsize)
                  for s in [(D, H), (H, H), (H, H), (H, o_pad)])
    bias_bytes = sum(blk_bytes(s, 4) for s in [(1, H), (1, H), (1, H), (1, o_pad)])
    tmp_bytes = blk_bytes((tb * N, H), 4) + 4 * blk_bytes((tb, H), 4)
    need = x_bytes + out_bytes + 2 * (w_bytes + bias_bytes) + tmp_bytes
    vmem_limit = int(min(64 << 20, max(32 << 20, need * 1.3 + (2 << 20))))

    x_spec = pl.BlockSpec((tb, N, D), lambda i: (i, 0, 0))
    out_spec = pl.BlockSpec((tb, o_pad), lambda i: (i, 0))

    def const_spec(shape, single_buffer):
        nd = len(shape)
        idx = lambda i, _nd=nd: (0,) * _nd
        if single_buffer:
            # Constant index_map: the block never changes across the grid, so
            # double buffering buys nothing -> keep a single VMEM copy.
            return pl.BlockSpec(shape, idx, pipeline_mode=pl.Buffered(1))
        return pl.BlockSpec(shape, idx)

    def run(single_buffer_weights):
        cs = lambda s: const_spec(s, single_buffer_weights)
        return pl.pallas_call(
            deep_sets_kernel,
            out_shape=jax.ShapeDtypeStruct((B, o_pad), jnp.float32),
            grid=(num_blocks,),
            in_specs=[
                x_spec,
                cs((D, H)), cs((1, H)),           # phi layer 1
                cs((H, H)), cs((1, H)),           # phi layer 2
                cs((H, H)), cs((1, H)),           # rho layer 1
                cs((H, o_pad)), cs((1, o_pad)),   # rho layer 2 (lane-padded)
            ],
            out_specs=out_spec,
            compiler_params=pltpu.CompilerParams(
                dimension_semantics=("parallel",),
                vmem_limit_bytes=vmem_limit,
            ),
        )(x, w1c, b1, w2c, b2, w3c, b3, w4c, b4p)

    try:
        out = run(True)
    except Exception:
        # pl.Buffered(1) single-buffering unavailable in this jax version:
        # retry with default double-buffered weight blocks.
        out = run(False)

    return out[:, :O]


def init_params(key, input_dim, hidden_dim, output_dim):
    """Deterministic PyTorch-Linear-style uniform(-1/sqrt(fan_in), 1/sqrt(fan_in)) init."""
    def linear(k, fan_in, fan_out):
        kw, kb = jax.random.split(k)
        bound = 1.0 / jnp.sqrt(jnp.float32(fan_in))
        w = jax.random.uniform(kw, (fan_in, fan_out), jnp.float32, -bound, bound)
        b = jax.random.uniform(kb, (1, fan_out), jnp.float32, -bound, bound)
        return w, b

    k1, k2, k3, k4 = jax.random.split(key, 4)
    w1, b1 = linear(k1, input_dim, hidden_dim)   # phi[0]
    w2, b2 = linear(k2, hidden_dim, hidden_dim)  # phi[2]
    w3, b3 = linear(k3, hidden_dim, hidden_dim)  # rho[0]
    w4, b4 = linear(k4, hidden_dim, output_dim)  # rho[2]
    return (w1, b1, w2, b2, w3, b3, w4, b4)


def deep_sets_reference(x, params, matmul_dtype=jnp.float32, commuted=False):
    """Pure-JAX reference for the PyTorch forward (pooling='mean').

    commuted=True + matmul_dtype=bfloat16 mirrors the kernel's numerics
    (bf16 matmul inputs, f32 accumulation, pool-before-layer-2 order).
    """
    w1, b1, w2, b2, w3, b3, w4, b4 = params
    md = jnp.dtype(matmul_dtype)

    def mm(a, w):
        return jnp.dot(a.astype(md), w.astype(md), preferred_element_type=jnp.float32)

    mask = (jnp.abs(x).sum(-1) != 0).astype(jnp.float32)             # (B, N)
    valid = jnp.maximum(mask.sum(axis=1, keepdims=True), 1.0)        # (B, 1)

    h = jnp.maximum(mm(x, w1) + b1, 0.0)                             # (B, N, H)
    if commuted:
        scale = mask / valid                                         # (B, N)
        pooled_h = (h * scale[..., None]).sum(axis=1)                # (B, H)
        sum_scale = scale.sum(axis=1, keepdims=True)                 # (B, 1)
        pooled = mm(pooled_h, w2) + sum_scale * b2
    else:
        phi = mm(h, w2) + b2                                         # (B, N, H)
        phi = phi * mask[..., None]
        pooled = phi.sum(axis=1) / valid                             # (B, H)
    r = jnp.maximum(mm(pooled, w3) + b3, 0.0)                        # (B, H)
    return mm(r, w4) + b4                                            # (B, O)


if __name__ == "__main__":
    B, N, D = 32, 8, 16       # batch, set size, input_dim
    H, O = 32, 16             # hidden_dim, output_dim (small demo sizes)

    key = jax.random.PRNGKey(0)
    kx, kp = jax.random.split(key)

    x = jax.random.normal(kx, (B, N, D), jnp.float32)
    # Zero some set elements (and one whole set) so the mask / valid-count
    # path is exercised, including the clamp(min=1) branch.
    x = x.at[0, 5:, :].set(0.0)
    x = x.at[1, 7:, :].set(0.0)
    x = x.at[2, :, :].set(0.0)
    x = x.at[17, 3:, :].set(0.0)

    params = init_params(kp, D, H, O)

    out = deep_sets_forward(x, params)
    out = jax.block_until_ready(out)
    assert out.shape == (B, O)

    # Check vs a reference mirroring the kernel's bf16 / commuted-pool numerics.
    ref_mirror = deep_sets_reference(x, params, matmul_dtype=jnp.bfloat16, commuted=True)
    assert jnp.allclose(out, ref_mirror, atol=1e-2, rtol=1e-2), "mismatch vs bf16 mirror reference"

    # Loose check vs the full-precision PyTorch-equivalent reference.
    ref = deep_sets_reference(x, params, matmul_dtype=jnp.float32)
    assert jnp.allclose(out, ref, atol=5e-2, rtol=5e-2), "mismatch vs f32 reference"

    print("KERNEL_OK")
</pallas_src>

<mosaic_0001>
module attributes {stable_mosaic.version = 11 : i64} {
  func.func @deep_sets_kernel(%arg0: i32, %arg1: memref<32x8x16xf32, #tpu.memory_space<vmem>>, %arg2: memref<16x32xbf16, #tpu.memory_space<vmem>>, %arg3: memref<1x32xf32, #tpu.memory_space<vmem>>, %arg4: memref<32x32xbf16, #tpu.memory_space<vmem>>, %arg5: memref<1x32xf32, #tpu.memory_space<vmem>>, %arg6: memref<32x32xbf16, #tpu.memory_space<vmem>>, %arg7: memref<1x32xf32, #tpu.memory_space<vmem>>, %arg8: memref<32x128xbf16, #tpu.memory_space<vmem>>, %arg9: memref<1x128xf32, #tpu.memory_space<vmem>>, %arg10: memref<32x128xf32, #tpu.memory_space<vmem>>) attributes {dimension_semantics = [#tpu.dimension_semantics<parallel>], iteration_bounds = array<i64: 1>, scalar_prefetch = 0 : i64, scratch_operands = 0 : i64, tpu.core_type = #tpu.core_type<tc>, window_params = [{transform_indices = @transform_0, window_bounds = array<i64: 32, 8, 16>}, {pipeline_mode = #tpu.pipeline_mode<synchronous>, transform_indices = @transform_1, window_bounds = array<i64: 16, 32>}, {pipeline_mode = #tpu.pipeline_mode<synchronous>, transform_indices = @transform_2, window_bounds = array<i64: 1, 32>}, {pipeline_mode = #tpu.pipeline_mode<synchronous>, transform_indices = @transform_3, window_bounds = array<i64: 32, 32>}, {pipeline_mode = #tpu.pipeline_mode<synchronous>, transform_indices = @transform_4, window_bounds = array<i64: 1, 32>}, {pipeline_mode = #tpu.pipeline_mode<synchronous>, transform_indices = @transform_5, window_bounds = array<i64: 32, 32>}, {pipeline_mode = #tpu.pipeline_mode<synchronous>, transform_indices = @transform_6, window_bounds = array<i64: 1, 32>}, {pipeline_mode = #tpu.pipeline_mode<synchronous>, transform_indices = @transform_7, window_bounds = array<i64: 32, 128>}, {pipeline_mode = #tpu.pipeline_mode<synchronous>, transform_indices = @transform_8, window_bounds = array<i64: 1, 128>}, {transform_indices = @transform_9, window_bounds = array<i64: 32, 128>}]} {
    %c0 = arith.constant 0 : index
    %c0_0 = arith.constant 0 : index
    %c0_1 = arith.constant 0 : index
    %0 = vector.load %arg1[%c0, %c0_0, %c0_1] : memref<32x8x16xf32, #tpu.memory_space<vmem>>, vector<32x8x16xf32>
    %cst = arith.constant 0.000000e+00 : f32
    %1 = vector.broadcast %cst : f32 to vector<32x8x16xf32>
    %2 = arith.cmpf one, %0, %1 : vector<32x8x16xf32>
    %cst_2 = arith.constant 1.000000e+00 : f32
    %cst_3 = arith.constant 0.000000e+00 : f32
    %3 = vector.broadcast %cst_2 : f32 to vector<32x8x16xf32>
    %4 = vector.broadcast %cst_3 : f32 to vector<32x8x16xf32>
    %5 = arith.select %2, %3, %4 : vector<32x8x16xi1>, vector<32x8x16xf32>
    %cst_4 = arith.constant dense<0xFF800000> : vector<32x8xf32>
    %6 = vector.multi_reduction <maximumf>, %5, %cst_4 [2] : vector<32x8x16xf32> to vector<32x8xf32>
    %cst_5 = arith.constant 0.000000e+00 : f32
    %7 = vector.broadcast %cst_5 : f32 to vector<32x8xf32>
    %8 = arith.cmpf ogt, %6, %7 : vector<32x8xf32>
    %9 = arith.extui %8 : vector<32x8xi1> to vector<32x8xi32>
    %10 = arith.sitofp %9 : vector<32x8xi32> to vector<32x8xf32>
    %cst_6 = arith.constant dense<0.000000e+00> : vector<32xf32>
    %11 = vector.multi_reduction <add>, %10, %cst_6 [1] : vector<32x8xf32> to vector<32xf32>
    %12 = vector.shape_cast %11 : vector<32xf32> to vector<32x1xf32>
    %cst_7 = arith.constant 1.000000e+00 : f32
    %13 = vector.broadcast %cst_7 : f32 to vector<32x1xf32>
    %14 = arith.maximumf %12, %13 : vector<32x1xf32>
    %15 = tpu.reciprocal %14 {approx = true} : vector<32x1xf32> -> vector<32x1xf32>
    %16 = vector.broadcast %15 : vector<32x1xf32> to vector<32x8xf32>
    %17 = arith.mulf %10, %16 : vector<32x8xf32>
    %cst_8 = arith.constant dense<0.000000e+00> : vector<32xf32>
    %18 = vector.multi_reduction <add>, %17, %cst_8 [1] : vector<32x8xf32> to vector<32xf32>
    %19 = vector.shape_cast %18 : vector<32xf32> to vector<32x1xf32>
    %20 = arith.truncf %0 : vector<32x8x16xf32> to vector<32x8x16xbf16>
    %21 = vector.shape_cast %20 : vector<32x8x16xbf16> to vector<256x16xbf16>
    %c0_9 = arith.constant 0 : index
    %c0_10 = arith.constant 0 : index
    %22 = vector.load %arg2[%c0_9, %c0_10] : memref<16x32xbf16, #tpu.memory_space<vmem>>, vector<16x32xbf16>
    %cst_11 = arith.constant dense<0.000000e+00> : vector<256x32xf32>
    %23 = tpu.matmul %21, %22, %cst_11 {dimension_numbers = #tpu.dot_dimension_numbers<[1], [0], [0], [1], [0, 0, 1, 1], [], []>} : vector<256x16xbf16>, vector<16x32xbf16>, vector<256x32xf32> -> vector<256x32xf32>
    %c0_12 = arith.constant 0 : index
    %c0_13 = arith.constant 0 : index
    %24 = vector.load %arg3[%c0_12, %c0_13] : memref<1x32xf32, #tpu.memory_space<vmem>>, vector<1x32xf32>
    %25 = vector.broadcast %24 : vector<1x32xf32> to vector<256x32xf32>
    %26 = arith.addf %23, %25 : vector<256x32xf32>
    %cst_14 = arith.constant 0.000000e+00 : f32
    %27 = vector.broadcast %cst_14 : f32 to vector<256x32xf32>
    %28 = arith.maximumf %26, %27 : vector<256x32xf32>
    %29 = vector.shape_cast %28 : vector<256x32xf32> to vector<32x8x32xf32>
    %30 = vector.shape_cast %17 : vector<32x8xf32> to vector<32x8x1xf32>
    %31 = vector.broadcast %30 : vector<32x8x1xf32> to vector<32x8x32xf32>
    %32 = arith.mulf %29, %31 : vector<32x8x32xf32>
    %cst_15 = arith.constant dense<0.000000e+00> : vector<32x32xf32>
    %33 = vector.multi_reduction <add>, %32, %cst_15 [1] : vector<32x8x32xf32> to vector<32x32xf32>
    %34 = arith.truncf %33 : vector<32x32xf32> to vector<32x32xbf16>
    %c0_16 = arith.constant 0 : index
    %c0_17 = arith.constant 0 : index
    %35 = vector.load %arg4[%c0_16, %c0_17] : memref<32x32xbf16, #tpu.memory_space<vmem>>, vector<32x32xbf16>
    %cst_18 = arith.constant dense<0.000000e+00> : vector<32x32xf32>
    %36 = tpu.matmul %34, %35, %cst_18 {dimension_numbers = #tpu.dot_dimension_numbers<[1], [0], [0], [1], [0, 0, 1, 1], [], []>} : vector<32x32xbf16>, vector<32x32xbf16>, vector<32x32xf32> -> vector<32x32xf32>
    %c0_19 = arith.constant 0 : index
    %c0_20 = arith.constant 0 : index
    %37 = vector.load %arg5[%c0_19, %c0_20] : memref<1x32xf32, #tpu.memory_space<vmem>>, vector<1x32xf32>
    %38 = vector.broadcast %19 : vector<32x1xf32> to vector<32x32xf32>
    %39 = vector.broadcast %37 : vector<1x32xf32> to vector<32x32xf32>
    %40 = arith.mulf %38, %39 : vector<32x32xf32>
    %41 = arith.addf %36, %40 : vector<32x32xf32>
    %42 = arith.truncf %41 : vector<32x32xf32> to vector<32x32xbf16>
    %c0_21 = arith.constant 0 : index
    %c0_22 = arith.constant 0 : index
    %43 = vector.load %arg6[%c0_21, %c0_22] : memref<32x32xbf16, #tpu.memory_space<vmem>>, vector<32x32xbf16>
    %cst_23 = arith.constant dense<0.000000e+00> : vector<32x32xf32>
    %44 = tpu.matmul %42, %43, %cst_23 {dimension_numbers = #tpu.dot_dimension_numbers<[1], [0], [0], [1], [0, 0, 1, 1], [], []>} : vector<32x32xbf16>, vector<32x32xbf16>, vector<32x32xf32> -> vector<32x32xf32>
    %c0_24 = arith.constant 0 : index
    %c0_25 = arith.constant 0 : index
    %45 = vector.load %arg7[%c0_24, %c0_25] : memref<1x32xf32, #tpu.memory_space<vmem>>, vector<1x32xf32>
    %46 = vector.broadcast %45 : vector<1x32xf32> to vector<32x32xf32>
    %47 = arith.addf %44, %46 : vector<32x32xf32>
    %cst_26 = arith.constant 0.000000e+00 : f32
    %48 = vector.broadcast %cst_26 : f32 to vector<32x32xf32>
    %49 = arith.maximumf %47, %48 : vector<32x32xf32>
    %50 = arith.truncf %49 : vector<32x32xf32> to vector<32x32xbf16>
    %c0_27 = arith.constant 0 : index
    %c0_28 = arith.constant 0 : index
    %51 = vector.load %arg8[%c0_27, %c0_28] : memref<32x128xbf16, #tpu.memory_space<vmem>>, vector<32x128xbf16>
    %cst_29 = arith.constant dense<0.000000e+00> : vector<32x128xf32>
    %52 = tpu.matmul %50, %51, %cst_29 {dimension_numbers = #tpu.dot_dimension_numbers<[1], [0], [0], [1], [0, 0, 1, 1], [], []>} : vector<32x32xbf16>, vector<32x128xbf16>, vector<32x128xf32> -> vector<32x128xf32>
    %c0_30 = arith.constant 0 : index
    %c0_31 = arith.constant 0 : index
    %53 = vector.load %arg9[%c0_30, %c0_31] : memref<1x128xf32, #tpu.memory_space<vmem>>, vector<1x128xf32>
    %54 = vector.broadcast %53 : vector<1x128xf32> to vector<32x128xf32>
    %55 = arith.addf %52, %54 : vector<32x128xf32>
    %c0_32 = arith.constant 0 : index
    %c0_33 = arith.constant 0 : index
    %56 = vector.load %arg10[%c0_32, %c0_33] : memref<32x128xf32, #tpu.memory_space<vmem>>, vector<32x128xf32>
    tpu.vector_store %arg10[%c0_32, %c0_33], %55 {strides = array<i32>} : memref<32x128xf32, #tpu.memory_space<vmem>>, vector<32x128xf32>,
    return
  }
  func.func @transform_0(%arg0: i32) -> (i32, i32, i32) {
    %c0_i32 = arith.constant 0 : i32
    %c0_i32_0 = arith.constant 0 : i32
    %c0_i32_1 = arith.constant 0 : i32
    return %arg0, %c0_i32, %c0_i32_0 : i32, i32, i32
  }
  func.func @transform_1(%arg0: i32) -> (i32, i32) {
    %c0_i32 = arith.constant 0 : i32
    %c0_i32_0 = arith.constant 0 : i32
    %c0_i32_1 = arith.constant 0 : i32
    return %c0_i32, %c0_i32_0 : i32, i32
  }
  func.func @transform_2(%arg0: i32) -> (i32, i32) {
    %c0_i32 = arith.constant 0 : i32
    %c0_i32_0 = arith.constant 0 : i32
    %c0_i32_1 = arith.constant 0 : i32
    return %c0_i32, %c0_i32_0 : i32, i32
  }
  func.func @transform_3(%arg0: i32) -> (i32, i32) {
    %c0_i32 = arith.constant 0 : i32
    %c0_i32_0 = arith.constant 0 : i32
    %c0_i32_1 = arith.constant 0 : i32
    return %c0_i32, %c0_i32_0 : i32, i32
  }
  func.func @transform_4(%arg0: i32) -> (i32, i32) {
    %c0_i32 = arith.constant 0 : i32
    %c0_i32_0 = arith.constant 0 : i32
    %c0_i32_1 = arith.constant 0 : i32
    return %c0_i32, %c0_i32_0 : i32, i32
  }
  func.func @transform_5(%arg0: i32) -> (i32, i32) {
    %c0_i32 = arith.constant 0 : i32
    %c0_i32_0 = arith.constant 0 : i32
    %c0_i32_1 = arith.constant 0 : i32
    return %c0_i32, %c0_i32_0 : i32, i32
  }
  func.func @transform_6(%arg0: i32) -> (i32, i32) {
    %c0_i32 = arith.constant 0 : i32
    %c0_i32_0 = arith.constant 0 : i32
    %c0_i32_1 = arith.constant 0 : i32
    return %c0_i32, %c0_i32_0 : i32, i32
  }
  func.func @transform_7(%arg0: i32) -> (i32, i32) {
    %c0_i32 = arith.constant 0 : i32
    %c0_i32_0 = arith.constant 0 : i32
    %c0_i32_1 = arith.constant 0 : i32
    return %c0_i32, %c0_i32_0 : i32, i32
  }
  func.func @transform_8(%arg0: i32) -> (i32, i32) {
    %c0_i32 = arith.constant 0 : i32
    %c0_i32_0 = arith.constant 0 : i32
    %c0_i32_1 = arith.constant 0 : i32
    return %c0_i32, %c0_i32_0 : i32, i32
  }
  func.func @transform_9(%arg0: i32) -> (i32, i32) {
    %c0_i32 = arith.constant 0 : i32
    %c0_i32_0 = arith.constant 0 : i32
    return %arg0, %c0_i32 : i32, i32
  }
}

module attributes {stable_mosaic.version = 11 : i64} {
  func.func @deep_sets_kernel(%arg0: i32, %arg1: memref<32x8x16xf32, #tpu.memory_space<vmem>>, %arg2: memref<16x32xbf16, #tpu.memory_space<vmem>>, %arg3: memref<1x32xf32, #tpu.memory_space<vmem>>, %arg4: memref<32x32xbf16, #tpu.memory_space<vmem>>, %arg5: memref<1x32xf32, #tpu.memory_space<vmem>>, %arg6: memref<32x32xbf16, #tpu.memory_space<vmem>>, %arg7: memref<1x32xf32, #tpu.memory_space<vmem>>, %arg8: memref<32x128xbf16, #tpu.memory_space<vmem>>, %arg9: memref<1x128xf32, #tpu.memory_space<vmem>>, %arg10: memref<32x128xf32, #tpu.memory_space<vmem>>) attributes {dimension_semantics = [#tpu.dimension_semantics<parallel>], iteration_bounds = array<i64: 1>, scalar_prefetch = 0 : i64, scratch_operands = 0 : i64, tpu.core_type = #tpu.core_type<tc>, window_params = [{transform_indices = @transform_0, window_bounds = array<i64: 32, 8, 16>}, {pipeline_mode = #tpu.pipeline_mode<synchronous>, transform_indices = @transform_1, window_bounds = array<i64: 16, 32>}, {pipeline_mode = #tpu.pipeline_mode<synchronous>, transform_indices = @transform_2, window_bounds = array<i64: 1, 32>}, {pipeline_mode = #tpu.pipeline_mode<synchronous>, transform_indices = @transform_3, window_bounds = array<i64: 32, 32>}, {pipeline_mode = #tpu.pipeline_mode<synchronous>, transform_indices = @transform_4, window_bounds = array<i64: 1, 32>}, {pipeline_mode = #tpu.pipeline_mode<synchronous>, transform_indices = @transform_5, window_bounds = array<i64: 32, 32>}, {pipeline_mode = #tpu.pipeline_mode<synchronous>, transform_indices = @transform_6, window_bounds = array<i64: 1, 32>}, {pipeline_mode = #tpu.pipeline_mode<synchronous>, transform_indices = @transform_7, window_bounds = array<i64: 32, 128>}, {pipeline_mode = #tpu.pipeline_mode<synchronous>, transform_indices = @transform_8, window_bounds = array<i64: 1, 128>}, {transform_indices = @transform_9, window_bounds = array<i64: 32, 128>}]} {
    %c0 = arith.constant 0 : index
    %c0_0 = arith.constant 0 : index
    %c0_1 = arith.constant 0 : index
    %0 = vector.load %arg1[%c0, %c0_0, %c0_1] : memref<32x8x16xf32, #tpu.memory_space<vmem>>, vector<32x8x16xf32>
    %cst = arith.constant 0.000000e+00 : f32
    %1 = vector.broadcast %cst : f32 to vector<32x8x16xf32>
    %2 = arith.cmpf one, %0, %1 : vector<32x8x16xf32>
    %cst_2 = arith.constant 1.000000e+00 : f32
    %cst_3 = arith.constant 0.000000e+00 : f32
    %3 = vector.broadcast %cst_2 : f32 to vector<32x8x16xf32>
    %4 = vector.broadcast %cst_3 : f32 to vector<32x8x16xf32>
    %5 = arith.select %2, %3, %4 : vector<32x8x16xi1>, vector<32x8x16xf32>
    %cst_4 = arith.constant dense<0xFF800000> : vector<32x8xf32>
    %6 = vector.multi_reduction <maximumf>, %5, %cst_4 [2] : vector<32x8x16xf32> to vector<32x8xf32>
    %cst_5 = arith.constant 0.000000e+00 : f32
    %7 = vector.broadcast %cst_5 : f32 to vector<32x8xf32>
    %8 = arith.cmpf ogt, %6, %7 : vector<32x8xf32>
    %9 = arith.extui %8 : vector<32x8xi1> to vector<32x8xi32>
    %10 = arith.sitofp %9 : vector<32x8xi32> to vector<32x8xf32>
    %cst_6 = arith.constant dense<0.000000e+00> : vector<32xf32>
    %11 = vector.multi_reduction <add>, %10, %cst_6 [1] : vector<32x8xf32> to vector<32xf32>
    %12 = vector.shape_cast %11 : vector<32xf32> to vector<32x1xf32>
    %cst_7 = arith.constant 1.000000e+00 : f32
    %13 = vector.broadcast %cst_7 : f32 to vector<32x1xf32>
    %14 = arith.maximumf %12, %13 : vector<32x1xf32>
    %15 = tpu.reciprocal %14 {approx = true} : vector<32x1xf32> -> vector<32x1xf32>
    %16 = vector.broadcast %15 : vector<32x1xf32> to vector<32x8xf32>
    %17 = arith.mulf %10, %16 : vector<32x8xf32>
    %cst_8 = arith.constant dense<0.000000e+00> : vector<32xf32>
    %18 = vector.multi_reduction <add>, %17, %cst_8 [1] : vector<32x8xf32> to vector<32xf32>
    %19 = vector.shape_cast %18 : vector<32xf32> to vector<32x1xf32>
    %20 = arith.truncf %0 : vector<32x8x16xf32> to vector<32x8x16xbf16>
    %21 = vector.shape_cast %20 : vector<32x8x16xbf16> to vector<256x16xbf16>
    %c0_9 = arith.constant 0 : index
    %c0_10 = arith.constant 0 : index
    %22 = vector.load %arg2[%c0_9, %c0_10] : memref<16x32xbf16, #tpu.memory_space<vmem>>, vector<16x32xbf16>
    %cst_11 = arith.constant dense<0.000000e+00> : vector<256x32xf32>
    %23 = tpu.matmul %21, %22, %cst_11 {dimension_numbers = #tpu.dot_dimension_numbers<[1], [0], [0], [1], [0, 0, 1, 1], [], []>} : vector<256x16xbf16>, vector<16x32xbf16>, vector<256x32xf32> -> vector<256x32xf32>
    %c0_12 = arith.constant 0 : index
    %c0_13 = arith.constant 0 : index
    %24 = vector.load %arg3[%c0_12, %c0_13] : memref<1x32xf32, #tpu.memory_space<vmem>>, vector<1x32xf32>
    %25 = vector.broadcast %24 : vector<1x32xf32> to vector<256x32xf32>
    %26 = arith.addf %23, %25 : vector<256x32xf32>
    %cst_14 = arith.constant 0.000000e+00 : f32
    %27 = vector.broadcast %cst_14 : f32 to vector<256x32xf32>
    %28 = arith.maximumf %26, %27 : vector<256x32xf32>
    %29 = vector.shape_cast %28 : vector<256x32xf32> to vector<32x8x32xf32>
    %30 = vector.shape_cast %17 : vector<32x8xf32> to vector<32x8x1xf32>
    %31 = vector.broadcast %30 : vector<32x8x1xf32> to vector<32x8x32xf32>
    %32 = arith.mulf %29, %31 : vector<32x8x32xf32>
    %cst_15 = arith.constant dense<0.000000e+00> : vector<32x32xf32>
    %33 = vector.multi_reduction <add>, %32, %cst_15 [1] : vector<32x8x32xf32> to vector<32x32xf32>
    %34 = arith.truncf %33 : vector<32x32xf32> to vector<32x32xbf16>
    %c0_16 = arith.constant 0 : index
    %c0_17 = arith.constant 0 : index
    %35 = vector.load %arg4[%c0_16, %c0_17] : memref<32x32xbf16, #tpu.memory_space<vmem>>, vector<32x32xbf16>
    %cst_18 = arith.constant dense<0.000000e+00> : vector<32x32xf32>
    %36 = tpu.matmul %34, %35, %cst_18 {dimension_numbers = #tpu.dot_dimension_numbers<[1], [0], [0], [1], [0, 0, 1, 1], [], []>} : vector<32x32xbf16>, vector<32x32xbf16>, vector<32x32xf32> -> vector<32x32xf32>
    %c0_19 = arith.constant 0 : index
    %c0_20 = arith.constant 0 : index
    %37 = vector.load %arg5[%c0_19, %c0_20] : memref<1x32xf32, #tpu.memory_space<vmem>>, vector<1x32xf32>
    %38 = vector.broadcast %19 : vector<32x1xf32> to vector<32x32xf32>
    %39 = vector.broadcast %37 : vector<1x32xf32> to vector<32x32xf32>
    %40 = arith.mulf %38, %39 : vector<32x32xf32>
    %41 = arith.addf %36, %40 : vector<32x32xf32>
    %42 = arith.truncf %41 : vector<32x32xf32> to vector<32x32xbf16>
    %c0_21 = arith.constant 0 : index
    %c0_22 = arith.constant 0 : index
    %43 = vector.load %arg6[%c0_21, %c0_22] : memref<32x32xbf16, #tpu.memory_space<vmem>>, vector<32x32xbf16>
    %cst_23 = arith.constant dense<0.000000e+00> : vector<32x32xf32>
    %44 = tpu.matmul %42, %43, %cst_23 {dimension_numbers = #tpu.dot_dimension_numbers<[1], [0], [0], [1], [0, 0, 1, 1], [], []>} : vector<32x32xbf16>, vector<32x32xbf16>, vector<32x32xf32> -> vector<32x32xf32>
    %c0_24 = arith.constant 0 : index
    %c0_25 = arith.constant 0 : index
    %45 = vector.load %arg7[%c0_24, %c0_25] : memref<1x32xf32, #tpu.memory_space<vmem>>, vector<1x32xf32>
    %46 = vector.broadcast %45 : vector<1x32xf32> to vector<32x32xf32>
    %47 = arith.addf %44, %46 : vector<32x32xf32>
    %cst_26 = arith.constant 0.000000e+00 : f32
    %48 = vector.broadcast %cst_26 : f32 to vector<32x32xf32>
    %49 = arith.maximumf %47, %48 : vector<32x32xf32>
    %50 = arith.truncf %49 : vector<32x32xf32> to vector<32x32xbf16>
    %c0_27 = arith.constant 0 : index
    %c0_28 = arith.constant 0 : index
    %51 = vector.load %arg8[%c0_27, %c0_28] : memref<32x128xbf16, #tpu.memory_space<vmem>>, vector<32x128xbf16>
    %cst_29 = arith.constant dense<0.000000e+00> : vector<32x128xf32>
    %52 = tpu.matmul %50, %51, %cst_29 {dimension_numbers = #tpu.dot_dimension_numbers<[1], [0], [0], [1], [0, 0, 1, 1], [], []>} : vector<32x32xbf16>, vector<32x128xbf16>, vector<32x128xf32> -> vector<32x128xf32>
    %c0_30 = arith.constant 0 : index
    %c0_31 = arith.constant 0 : index
    %53 = vector.load %arg9[%c0_30, %c0_31] : memref<1x128xf32, #tpu.memory_space<vmem>>, vector<1x128xf32>
    %54 = vector.broadcast %53 : vector<1x128xf32> to vector<32x128xf32>
    %55 = arith.addf %52, %54 : vector<32x128xf32>
    %c0_32 = arith.constant 0 : index
    %c0_33 = arith.constant 0 : index
    %56 = vector.load %arg10[%c0_32, %c0_33] : memref<32x128xf32, #tpu.memory_space<vmem>>, vector<32x128xf32>
    tpu.vector_store %arg10[%c0_32, %c0_33], %55 {strides = array<i32>} : memref<32x128xf32, #tpu.memory_space<vmem>>, vector<32x128xf32>,
    return
  }
  func.func @transform_0(%arg0: i32) -> (i32, i32, i32) {
    %c0_i32 = arith.constant 0 : i32
    %c0_i32_0 = arith.constant 0 : i32
    %c0_i32_1 = arith.constant 0 : i32
    return %arg0, %c0_i32, %c0_i32_0 : i32, i32, i32
  }
  func.func @transform_1(%arg0: i32) -> (i32, i32) {
    %c0_i32 = arith.constant 0 : i32
    %c0_i32_0 = arith.constant 0 : i32
    %c0_i32_1 = arith.constant 0 : i32
    return %c0_i32, %c0_i32_0 : i32, i32
  }
  func.func @transform_2(%arg0: i32) -> (i32, i32) {
    %c0_i32 = arith.constant 0 : i32
    %c0_i32_0 = arith.constant 0 : i32
    %c0_i32_1 = arith.constant 0 : i32
    return %c0_i32, %c0_i32_0 : i32, i32
  }
  func.func @transform_3(%arg0: i32) -> (i32, i32) {
    %c0_i32 = arith.constant 0 : i32
    %c0_i32_0 = arith.constant 0 : i32
    %c0_i32_1 = arith.constant 0 : i32
    return %c0_i32, %c0_i32_0 : i32, i32
  }
  func.func @transform_4(%arg0: i32) -> (i32, i32) {
    %c0_i32 = arith.constant 0 : i32
    %c0_i32_0 = arith.constant 0 : i32
    %c0_i32_1 = arith.constant 0 : i32
    return %c0_i32, %c0_i32_0 : i32, i32
  }
  func.func @transform_5(%arg0: i32) -> (i32, i32) {
    %c0_i32 = arith.constant 0 : i32
    %c0_i32_0 = arith.constant 0 : i32
    %c0_i32_1 = arith.constant 0 : i32
    return %c0_i32, %c0_i32_0 : i32, i32
  }
  func.func @transform_6(%arg0: i32) -> (i32, i32) {
    %c0_i32 = arith.constant 0 : i32
    %c0_i32_0 = arith.constant 0 : i32
    %c0_i32_1 = arith.constant 0 : i32
    return %c0_i32, %c0_i32_0 : i32, i32
  }
  func.func @transform_7(%arg0: i32) -> (i32, i32) {
    %c0_i32 = arith.constant 0 : i32
    %c0_i32_0 = arith.constant 0 : i32
    %c0_i32_1 = arith.constant 0 : i32
    return %c0_i32, %c0_i32_0 : i32, i32
  }
  func.func @transform_8(%arg0: i32) -> (i32, i32) {
    %c0_i32 = arith.constant 0 : i32
    %c0_i32_0 = arith.constant 0 : i32
    %c0_i32_1 = arith.constant 0 : i32
    return %c0_i32, %c0_i32_0 : i32, i32
  }
  func.func @transform_9(%arg0: i32) -> (i32, i32) {
    %c0_i32 = arith.constant 0 : i32
    %c0_i32_0 = arith.constant 0 : i32
    return %arg0, %c0_i32 : i32, i32
  }
}

</mosaic_0001>

<llo_original>
// kernel: tpu_custom_call.1
$region0: #{tpu_custom_call.1}
  #allocation0 [shape = 'u32[]', space=smem, size = 0x4, offset = 0x4, fixed_abs, tag = 'smem constant byte address 0x4 - core index']
  #allocation1 [shape = 'u32[144,128]{1,0:T(1,128)}', space=vmem, size = 0x12000, scoped, tag = 'internal scratch']
  %s0 = inlined_call_operand.vmem [shape: f32[32,8,16], index: 0, kind: input, shape index: {}]
  %s1 = inlined_call_operand.vmem [shape: bf16[16,32], index: 1, kind: input, shape index: {}]
  %s2 = inlined_call_operand.vmem [shape: f32[1,32], index: 2, kind: input, shape index: {}]
  %s3 = inlined_call_operand.vmem [shape: bf16[32,32], index: 3, kind: input, shape index: {}]
  %s4 = inlined_call_operand.vmem [shape: f32[1,32], index: 4, kind: input, shape index: {}]
  %s5 = inlined_call_operand.vmem [shape: bf16[32,32], index: 5, kind: input, shape index: {}]
  %s6 = inlined_call_operand.vmem [shape: f32[1,32], index: 6, kind: input, shape index: {}]
  %s7 = inlined_call_operand.vmem [shape: bf16[32,128], index: 7, kind: input, shape index: {}]
  %s8 = inlined_call_operand.vmem [shape: f32[1,128], index: 8, kind: input, shape index: {}]
  %s9 = inlined_call_operand.hbm [shape: f32[32,128], index: 9, kind: output, shape index: {}]
  %s10 = sld [smem:[#allocation0]]
  $region46: #{tpu_custom_call.1} parent=0
    _
  %s12 = ssub.s32 1, %s10
  %s13 = scalar_select 0, %s12, %s10
  $region1: #{tpu_custom_call.1} parent=0
    #allocation2 [shape = 'u8[16384]{0}', space=vmem, size = 0x4000, scoped, tag = 'output window, operand 0, single buffered']
    #allocation3 [shape = 's32[1]{0}', space=sflag, size = 0x4, scoped, tag = 'scoped memory for tpu_custom_call.1']
    %14 = vsyncpa [#allocation3], 0
    // Predicated region
    $region2: #{tpu_custom_call.1} parent=1 // pred_check
      _
    $region3: #{tpu_custom_call.1} parent=1 // pred_check_branch
      %16 = sbr.rel (0) target = $region5
    $region4: #{tpu_custom_call.1} parent=1 // pred_region
      _
    $region5: #{tpu_custom_call.1} parent=1 // pred_fallthru
      _
    // Predicated region
    $region6: #{tpu_custom_call.1} parent=1 // pred_check
      _
    $region7: #{tpu_custom_call.1} parent=1 // pred_check_branch
      %18 = sbr.rel (0) target = $region9
    $region8: #{tpu_custom_call.1} parent=1 // pred_region
      _
    $region9: #{tpu_custom_call.1} parent=1 // pred_fallthru
      _
    // Predicated region
    $region10: #{tpu_custom_call.1} parent=1 // pred_check
      _
    $region11: #{tpu_custom_call.1} parent=1 // pred_check_branch
      %20 = sbr.rel (0) target = $region13
    $region12: #{tpu_custom_call.1} parent=1 // pred_region
      _
    $region13: #{tpu_custom_call.1} parent=1 // pred_fallthru
      _
    // Predicated region
    $region14: #{tpu_custom_call.1} parent=1 // pred_check
      _
    $region15: #{tpu_custom_call.1} parent=1 // pred_check_branch
      %22 = sbr.rel (0) target = $region17
    $region16: #{tpu_custom_call.1} parent=1 // pred_region
      _
    $region17: #{tpu_custom_call.1} parent=1 // pred_fallthru
      _
    // Predicated region
    $region18: #{tpu_custom_call.1} parent=1 // pred_check
      _
    $region19: #{tpu_custom_call.1} parent=1 // pred_check_branch
      %24 = sbr.rel (0) target = $region21
    $region20: #{tpu_custom_call.1} parent=1 // pred_region
      _
    $region21: #{tpu_custom_call.1} parent=1 // pred_fallthru
      _
    // Predicated region
    $region22: #{tpu_custom_call.1} parent=1 // pred_check
      _
    $region23: #{tpu_custom_call.1} parent=1 // pred_check_branch
      %26 = sbr.rel (0) target = $region25
    $region24: #{tpu_custom_call.1} parent=1 // pred_region
      _
    $region25: #{tpu_custom_call.1} parent=1 // pred_fallthru
      _
    // Predicated region
    $region26: #{tpu_custom_call.1} parent=1 // pred_check
      _
    $region27: #{tpu_custom_call.1} parent=1 // pred_check_branch
      %28 = sbr.rel (0) target = $region29
    $region28: #{tpu_custom_call.1} parent=1 // pred_region
      _
    $region29: #{tpu_custom_call.1} parent=1 // pred_fallthru
      _
    // Predicated region
    $region30: #{tpu_custom_call.1} parent=1 // pred_check
      _
    $region31: #{tpu_custom_call.1} parent=1 // pred_check_branch
      %30 = sbr.rel (0) target = $region33
    $region32: #{tpu_custom_call.1} parent=1 // pred_region
      _
    $region33: #{tpu_custom_call.1} parent=1 // pred_fallthru
      _
    // Predicated region
    $region34: #{tpu_custom_call.1} parent=1 // pred_check
      _
    $region35: #{tpu_custom_call.1} parent=1 // pred_check_branch
      %32 = sbr.rel (0) target = $region37
    $region36: #{tpu_custom_call.1} parent=1 // pred_region
      _
    $region37: #{tpu_custom_call.1} parent=1 // pred_fallthru
      _
    %v34 = vld [vmem:[%s0] sm:$0xff]
    %v35 = vld [vmem:[%s0 + $0x8] sm:$0xff]
    %v36 = vld [vmem:[%s0 + $0x10] sm:$0xff]
    %v37 = vld [vmem:[%s0 + $0x18] sm:$0xff]
    %v38 = vld [vmem:[%s0 + $0x20] sm:$0xff]
    %v39 = vld [vmem:[%s0 + $0x28] sm:$0xff]
    %v40 = vld [vmem:[%s0 + $0x30] sm:$0xff]
    %v41 = vld [vmem:[%s0 + $0x38] sm:$0xff]
    %v42 = vld [vmem:[%s0 + $0x40] sm:$0xff]
    %v43 = vld [vmem:[%s0 + $0x48] sm:$0xff]
    %v44 = vld [vmem:[%s0 + $0x50] sm:$0xff]
    %v45 = vld [vmem:[%s0 + $0x58] sm:$0xff]
    %v46 = vld [vmem:[%s0 + $0x60] sm:$0xff]
    %v47 = vld [vmem:[%s0 + $0x68] sm:$0xff]
    %v48 = vld [vmem:[%s0 + $0x70] sm:$0xff]
    %v49 = vld [vmem:[%s0 + $0x78] sm:$0xff]
    %v50 = vld [vmem:[%s0 + $0x80] sm:$0xff]
    %v51 = vld [vmem:[%s0 + $0x88] sm:$0xff]
    %v52 = vld [vmem:[%s0 + $0x90] sm:$0xff]
    %v53 = vld [vmem:[%s0 + $0x98] sm:$0xff]
    %v54 = vld [vmem:[%s0 + $0xa0] sm:$0xff]
    %v55 = vld [vmem:[%s0 + $0xa8] sm:$0xff]
    %v56 = vld [vmem:[%s0 + $0xb0] sm:$0xff]
    %v57 = vld [vmem:[%s0 + $0xb8] sm:$0xff]
    %v58 = vld [vmem:[%s0 + $0xc0] sm:$0xff]
    %v59 = vld [vmem:[%s0 + $0xc8] sm:$0xff]
    %v60 = vld [vmem:[%s0 + $0xd0] sm:$0xff]
    %v61 = vld [vmem:[%s0 + $0xd8] sm:$0xff]
    %v62 = vld [vmem:[%s0 + $0xe0] sm:$0xff]
    %v63 = vld [vmem:[%s0 + $0xe8] sm:$0xff]
    %v64 = vld [vmem:[%s0 + $0xf0] sm:$0xff]
    %v65 = vld [vmem:[%s0 + $0xf8] sm:$0xff]
    %vm66 = vcmp.ne.f32.partialorder %v34, 0.0
    %vm67 = vcmp.ne.f32.partialorder %v35, 0.0
    %vm68 = vcmp.ne.f32.partialorder %v36, 0.0
    %vm69 = vcmp.ne.f32.partialorder %v37, 0.0
    %vm70 = vcmp.ne.f32.partialorder %v38, 0.0
    %vm71 = vcmp.ne.f32.partialorder %v39, 0.0
    %vm72 = vcmp.ne.f32.partialorder %v40, 0.0
    %vm73 = vcmp.ne.f32.partialorder %v41, 0.0
    %vm74 = vcmp.ne.f32.partialorder %v42, 0.0
    %vm75 = vcmp.ne.f32.partialorder %v43, 0.0
    %vm76 = vcmp.ne.f32.partialorder %v44, 0.0
    %vm77 = vcmp.ne.f32.partialorder %v45, 0.0
    %vm78 = vcmp.ne.f32.partialorder %v46, 0.0
    %vm79 = vcmp.ne.f32.partialorder %v47, 0.0
    %vm80 = vcmp.ne.f32.partialorder %v48, 0.0
    %vm81 = vcmp.ne.f32.partialorder %v49, 0.0
    %vm82 = vcmp.ne.f32.partialorder %v50, 0.0
    %vm83 = vcmp.ne.f32.partialorder %v51, 0.0
    %vm84 = vcmp.ne.f32.partialorder %v52, 0.0
    %vm85 = vcmp.ne.f32.partialorder %v53, 0.0
    %vm86 = vcmp.ne.f32.partialorder %v54, 0.0
    %vm87 = vcmp.ne.f32.partialorder %v55, 0.0
    %vm88 = vcmp.ne.f32.partialorder %v56, 0.0
    %vm89 = vcmp.ne.f32.partialorder %v57, 0.0
    %vm90 = vcmp.ne.f32.partialorder %v58, 0.0
    %vm91 = vcmp.ne.f32.partialorder %v59, 0.0
    %vm92 = vcmp.ne.f32.partialorder %v60, 0.0
    %vm93 = vcmp.ne.f32.partialorder %v61, 0.0
    %vm94 = vcmp.ne.f32.partialorder %v62, 0.0
    %vm95 = vcmp.ne.f32.partialorder %v63, 0.0
    %vm96 = vcmp.ne.f32.partialorder %v64, 0.0
    %vm97 = vcmp.ne.f32.partialorder %v65, 0.0
    %v98 = vsel %vm66, 1.0, 0.0
    %v99 = vsel %vm67, 1.0, 0.0
    %v100 = vsel %vm68, 1.0, 0.0
    %v101 = vsel %vm69, 1.0, 0.0
    %v102 = vsel %vm70, 1.0, 0.0
    %v103 = vsel %vm71, 1.0, 0.0
    %v104 = vsel %vm72, 1.0, 0.0
    %v105 = vsel %vm73, 1.0, 0.0
    %v106 = vsel %vm74, 1.0, 0.0
    %v107 = vsel %vm75, 1.0, 0.0
    %v108 = vsel %vm76, 1.0, 0.0
    %v109 = vsel %vm77, 1.0, 0.0
    %v110 = vsel %vm78, 1.0, 0.0
    %v111 = vsel %vm79, 1.0, 0.0
    %v112 = vsel %vm80, 1.0, 0.0
    %v113 = vsel %vm81, 1.0, 0.0
    %v114 = vsel %vm82, 1.0, 0.0
    %v115 = vsel %vm83, 1.0, 0.0
    %v116 = vsel %vm84, 1.0, 0.0
    %v117 = vsel %vm85, 1.0, 0.0
    %v118 = vsel %vm86, 1.0, 0.0
    %v119 = vsel %vm87, 1.0, 0.0
    %v120 = vsel %vm88, 1.0, 0.0
    %v121 = vsel %vm89, 1.0, 0.0
    %v122 = vsel %vm90, 1.0, 0.0
    %v123 = vsel %vm91, 1.0, 0.0
    %v124 = vsel %vm92, 1.0, 0.0
    %v125 = vsel %vm93, 1.0, 0.0
    %v126 = vsel %vm94, 1.0, 0.0
    %v127 = vsel %vm95, 1.0, 0.0
    %v128 = vsel %vm96, 1.0, 0.0
    %v129 = vsel %vm97, 1.0, 0.0
    %vm130 = vcmask 130048
    %v131 = vsel %vm130, %v98, -inf
    %132 = vmax.xlane.f32.xlu0 %v131
    %v133 = vpop.xlane.xlu0 %132
    %v134 = vsel %vm130, %v99, -inf
    %135 = vmax.xlane.f32.xlu0 %v134
    %v136 = vpop.xlane.xlu0 %135
    %v137 = vsel %vm130, %v100, -inf
    %138 = vmax.xlane.f32.xlu0 %v137
    %v139 = vpop.xlane.xlu0 %138
    %v140 = vsel %vm130, %v101, -inf
    %141 = vmax.xlane.f32.xlu0 %v140
    %v142 = vpop.xlane.xlu0 %141
    %v143 = vsel %vm130, %v102, -inf
    %144 = vmax.xlane.f32.xlu0 %v143
    %v145 = vpop.xlane.xlu0 %144
    %v146 = vsel %vm130, %v103, -inf
    %147 = vmax.xlane.f32.xlu0 %v146
    %v148 = vpop.xlane.xlu0 %147
    %v149 = vsel %vm130, %v104, -inf
    %150 = vmax.xlane.f32.xlu0 %v149
    %v151 = vpop.xlane.xlu0 %150
    %v152 = vsel %vm130, %v105, -inf
    %153 = vmax.xlane.f32.xlu0 %v152
    %v154 = vpop.xlane.xlu0 %153
    %v155 = vsel %vm130, %v106, -inf
    %156 = vmax.xlane.f32.xlu0 %v155
    %v157 = vpop.xlane.xlu0 %156
    %v158 = vsel %vm130, %v107, -inf
    %159 = vmax.xlane.f32.xlu0 %v158
    %v160 = vpop.xlane.xlu0 %159
    %v161 = vsel %vm130, %v108, -inf
    %162 = vmax.xlane.f32.xlu0 %v161
    %v163 = vpop.xlane.xlu0 %162
    %v164 = vsel %vm130, %v109, -inf
    %165 = vmax.xlane.f32.xlu0 %v164
    %v166 = vpop.xlane.xlu0 %165
    %v167 = vsel %vm130, %v110, -inf
    %168 = vmax.xlane.f32.xlu0 %v167
    %v169 = vpop.xlane.xlu0 %168
    %v170 = vsel %vm130, %v111, -inf
    %171 = vmax.xlane.f32.xlu0 %v170
    %v172 = vpop.xlane.xlu0 %171
    %v173 = vsel %vm130, %v112, -inf
    %174 = vmax.xlane.f32.xlu0 %v173
    %v175 = vpop.xlane.xlu0 %174
    %v176 = vsel %vm130, %v113, -inf
    %177 = vmax.xlane.f32.xlu0 %v176
    %v178 = vpop.xlane.xlu0 %177
    %v179 = vsel %vm130, %v114, -inf
    %180 = vmax.xlane.f32.xlu0 %v179
    %v181 = vpop.xlane.xlu0 %180
    %v182 = vsel %vm130, %v115, -inf
    %183 = vmax.xlane.f32.xlu0 %v182
    %v184 = vpop.xlane.xlu0 %183
    %v185 = vsel %vm130, %v116, -inf
    %186 = vmax.xlane.f32.xlu0 %v185
    %v187 = vpop.xlane.xlu0 %186
    %v188 = vsel %vm130, %v117, -inf
    %189 = vmax.xlane.f32.xlu0 %v188
    %v190 = vpop.xlane.xlu0 %189
    %v191 = vsel %vm130, %v118, -inf
    %192 = vmax.xlane.f32.xlu0 %v191
    %v193 = vpop.xlane.xlu0 %192
    %v194 = vsel %vm130, %v119, -inf
    %195 = vmax.xlane.f32.xlu0 %v194
    %v196 = vpop.xlane.xlu0 %195
    %v197 = vsel %vm130, %v120, -inf
    %198 = vmax.xlane.f32.xlu0 %v197
    %v199 = vpop.xlane.xlu0 %198
    %v200 = vsel %vm130, %v121, -inf
    %201 = vmax.xlane.f32.xlu0 %v200
    %v202 = vpop.xlane.xlu0 %201
    %v203 = vsel %vm130, %v122, -inf
    %204 = vmax.xlane.f32.xlu0 %v203
    %v205 = vpop.xlane.xlu0 %204
    %v206 = vsel %vm130, %v123, -inf
    %207 = vmax.xlane.f32.xlu0 %v206
    %v208 = vpop.xlane.xlu0 %207
    %v209 = vsel %vm130, %v124, -inf
    %210 = vmax.xlane.f32.xlu0 %v209
    %v211 = vpop.xlane.xlu0 %210
    %v212 = vsel %vm130, %v125, -inf
    %213 = vmax.xlane.f32.xlu0 %v212
    %v214 = vpop.xlane.xlu0 %213
    %v215 = vsel %vm130, %v126, -inf
    %216 = vmax.xlane.f32.xlu0 %v215
    %v217 = vpop.xlane.xlu0 %216
    %v218 = vsel %vm130, %v127, -inf
    %219 = vmax.xlane.f32.xlu0 %v218
    %v220 = vpop.xlane.xlu0 %219
    %v221 = vsel %vm130, %v128, -inf
    %222 = vmax.xlane.f32.xlu0 %v221
    %v223 = vpop.xlane.xlu0 %222
    %v224 = vsel %vm130, %v129, -inf
    %225 = vmax.xlane.f32.xlu0 %v224
    %v226 = vpop.xlane.xlu0 %225
    %vm227 = vcmp.gt.f32.partialorder %v133, 0.0
    %vm228 = vcmp.gt.f32.partialorder %v136, 0.0
    %vm229 = vcmp.gt.f32.partialorder %v139, 0.0
    %vm230 = vcmp.gt.f32.partialorder %v142, 0.0
    %vm231 = vcmp.gt.f32.partialorder %v145, 0.0
    %vm232 = vcmp.gt.f32.partialorder %v148, 0.0
    %vm233 = vcmp.gt.f32.partialorder %v151, 0.0
    %vm234 = vcmp.gt.f32.partialorder %v154, 0.0
    %vm235 = vcmp.gt.f32.partialorder %v157, 0.0
    %vm236 = vcmp.gt.f32.partialorder %v160, 0.0
    %vm237 = vcmp.gt.f32.partialorder %v163, 0.0
    %vm238 = vcmp.gt.f32.partialorder %v166, 0.0
    %vm239 = vcmp.gt.f32.partialorder %v169, 0.0
    %vm240 = vcmp.gt.f32.partialorder %v172, 0.0
    %vm241 = vcmp.gt.f32.partialorder %v175, 0.0
    %vm242 = vcmp.gt.f32.partialorder %v178, 0.0
    %vm243 = vcmp.gt.f32.partialorder %v181, 0.0
    %vm244 = vcmp.gt.f32.partialorder %v184, 0.0
    %vm245 = vcmp.gt.f32.partialorder %v187, 0.0
    %vm246 = vcmp.gt.f32.partialorder %v190, 0.0
    %vm247 = vcmp.gt.f32.partialorder %v193, 0.0
    %vm248 = vcmp.gt.f32.partialorder %v196, 0.0
    %vm249 = vcmp.gt.f32.partialorder %v199, 0.0
    %vm250 = vcmp.gt.f32.partialorder %v202, 0.0
    %vm251 = vcmp.gt.f32.partialorder %v205, 0.0
    %vm252 = vcmp.gt.f32.partialorder %v208, 0.0
    %vm253 = vcmp.gt.f32.partialorder %v211, 0.0
    %vm254 = vcmp.gt.f32.partialorder %v214, 0.0
    %vm255 = vcmp.gt.f32.partialorder %v217, 0.0
    %vm256 = vcmp.gt.f32.partialorder %v220, 0.0
    %vm257 = vcmp.gt.f32.partialorder %v223, 0.0
    %vm258 = vcmp.gt.f32.partialorder %v226, 0.0
    %v259 = vsel %vm227, 1, 0
    %v260 = vsel %vm228, 1, 0
    %v261 = vsel %vm229, 1, 0
    %v262 = vsel %vm230, 1, 0
    %v263 = vsel %vm231, 1, 0
    %v264 = vsel %vm232, 1, 0
    %v265 = vsel %vm233, 1, 0
    %v266 = vsel %vm234, 1, 0
    %v267 = vsel %vm235, 1, 0
    %v268 = vsel %vm236, 1, 0
    %v269 = vsel %vm237, 1, 0
    %v270 = vsel %vm238, 1, 0
    %v271 = vsel %vm239, 1, 0
    %v272 = vsel %vm240, 1, 0
    %v273 = vsel %vm241, 1, 0
    %v274 = vsel %vm242, 1, 0
    %v275 = vsel %vm243, 1, 0
    %v276 = vsel %vm244, 1, 0
    %v277 = vsel %vm245, 1, 0
    %v278 = vsel %vm246, 1, 0
    %v279 = vsel %vm247, 1, 0
    %v280 = vsel %vm248, 1, 0
    %v281 = vsel %vm249, 1, 0
    %v282 = vsel %vm250, 1, 0
    %v283 = vsel %vm251, 1, 0
    %v284 = vsel %vm252, 1, 0
    %v285 = vsel %vm253, 1, 0
    %v286 = vsel %vm254, 1, 0
    %v287 = vsel %vm255, 1, 0
    %v288 = vsel %vm256, 1, 0
    %v289 = vsel %vm257, 1, 0
    %v290 = vsel %vm258, 1, 0
    %v291 = vcvt.s32.f32 %v259
    %v292 = vcvt.s32.f32 %v260
    %v293 = vcvt.s32.f32 %v261
    %v294 = vcvt.s32.f32 %v262
    %v295 = vcvt.s32.f32 %v263
    %v296 = vcvt.s32.f32 %v264
    %v297 = vcvt.s32.f32 %v265
    %v298 = vcvt.s32.f32 %v266
    %v299 = vcvt.s32.f32 %v267
    %v300 = vcvt.s32.f32 %v268
    %v301 = vcvt.s32.f32 %v269
    %v302 = vcvt.s32.f32 %v270
    %v303 = vcvt.s32.f32 %v271
    %v304 = vcvt.s32.f32 %v272
    %v305 = vcvt.s32.f32 %v273
    %v306 = vcvt.s32.f32 %v274
    %v307 = vcvt.s32.f32 %v275
    %v308 = vcvt.s32.f32 %v276
    %v309 = vcvt.s32.f32 %v277
    %v310 = vcvt.s32.f32 %v278
    %v311 = vcvt.s32.f32 %v279
    %v312 = vcvt.s32.f32 %v280
    %v313 = vcvt.s32.f32 %v281
    %v314 = vcvt.s32.f32 %v282
    %v315 = vcvt.s32.f32 %v283
    %v316 = vcvt.s32.f32 %v284
    %v317 = vcvt.s32.f32 %v285
    %v318 = vcvt.s32.f32 %v286
    %v319 = vcvt.s32.f32 %v287
    %v320 = vcvt.s32.f32 %v288
    %v321 = vcvt.s32.f32 %v289
    %v322 = vcvt.s32.f32 %v290
    %v355 = vlaneseq
    %v356 = vand.u32 %v355, 127
    %v357 = vlaneseq
    %v358 = vshrl.u32 %v357, 7
    %v359 = vsub.s32 %v356, %v358
    %v360 = vrot.slane %v291, %v359
    %v361 = vlaneseq
    %v362 = vshrl.u32 %v361, 7
    %v363 = vsub.s32 %v356, %v362
    %v364 = vrot.slane %v292, %v363
    %v365 = vlaneseq
    %v366 = vshrl.u32 %v365, 7
    %v367 = vsub.s32 %v356, %v366
    %v368 = vrot.slane %v293, %v367
    %v369 = vlaneseq
    %v370 = vshrl.u32 %v369, 7
    %v371 = vsub.s32 %v356, %v370
    %v372 = vrot.slane %v294, %v371
    %v373 = vlaneseq
    %v374 = vshrl.u32 %v373, 7
    %v375 = vsub.s32 %v356, %v374
    %v376 = vrot.slane %v295, %v375
    %v377 = vlaneseq
    %v378 = vshrl.u32 %v377, 7
    %v379 = vsub.s32 %v356, %v378
    %v380 = vrot.slane %v296, %v379
    %v381 = vlaneseq
    %v382 = vshrl.u32 %v381, 7
    %v383 = vsub.s32 %v356, %v382
    %v384 = vrot.slane %v297, %v383
    %v385 = vlaneseq
    %v386 = vshrl.u32 %v385, 7
    %v387 = vsub.s32 %v356, %v386
    %v388 = vrot.slane %v298, %v387
    %v389 = vlaneseq
    %v390 = vshrl.u32 %v389, 7
    %v391 = vsub.s32 %v356, %v390
    %v392 = vrot.slane %v299, %v391
    %v393 = vlaneseq
    %v394 = vshrl.u32 %v393, 7
    %v395 = vsub.s32 %v356, %v394
    %v396 = vrot.slane %v300, %v395
    %v397 = vlaneseq
    %v398 = vshrl.u32 %v397, 7
    %v399 = vsub.s32 %v356, %v398
    %v400 = vrot.slane %v301, %v399
    %v401 = vlaneseq
    %v402 = vshrl.u32 %v401, 7
    %v403 = vsub.s32 %v356, %v402
    %v404 = vrot.slane %v302, %v403
    %v405 = vlaneseq
    %v406 = vshrl.u32 %v405, 7
    %v407 = vsub.s32 %v356, %v406
    %v408 = vrot.slane %v303, %v407
    %v409 = vlaneseq
    %v410 = vshrl.u32 %v409, 7
    %v411 = vsub.s32 %v356, %v410
    %v412 = vrot.slane %v304, %v411
    %v413 = vlaneseq
    %v414 = vshrl.u32 %v413, 7
    %v415 = vsub.s32 %v356, %v414
    %v416 = vrot.slane %v305, %v415
    %v417 = vlaneseq
    %v418 = vshrl.u32 %v417, 7
    %v419 = vsub.s32 %v356, %v418
    %v420 = vrot.slane %v306, %v419
    %v421 = vlaneseq
    %v422 = vshrl.u32 %v421, 7
    %v423 = vsub.s32 %v356, %v422
    %v424 = vrot.slane %v307, %v423
    %v425 = vlaneseq
    %v426 = vshrl.u32 %v425, 7
    %v427 = vsub.s32 %v356, %v426
    %v428 = vrot.slane %v308, %v427
    %v429 = vlaneseq
    %v430 = vshrl.u32 %v429, 7
    %v431 = vsub.s32 %v356, %v430
    %v432 = vrot.slane %v309, %v431
    %v433 = vlaneseq
    %v434 = vshrl.u32 %v433, 7
    %v435 = vsub.s32 %v356, %v434
    %v436 = vrot.slane %v310, %v435
    %v437 = vlaneseq
    %v438 = vshrl.u32 %v437, 7
    %v439 = vsub.s32 %v356, %v438
    %v440 = vrot.slane %v311, %v439
    %v441 = vlaneseq
    %v442 = vshrl.u32 %v441, 7
    %v443 = vsub.s32 %v356, %v442
    %v444 = vrot.slane %v312, %v443
    %v445 = vlaneseq
    %v446 = vshrl.u32 %v445, 7
    %v447 = vsub.s32 %v356, %v446
    %v448 = vrot.slane %v313, %v447
    %v449 = vlaneseq
    %v450 = vshrl.u32 %v449, 7
    %v451 = vsub.s32 %v356, %v450
    %v452 = vrot.slane %v314, %v451
    %v453 = vlaneseq
    %v454 = vshrl.u32 %v453, 7
    %v455 = vsub.s32 %v356, %v454
    %v456 = vrot.slane %v315, %v455
    %v457 = vlaneseq
    %v458 = vshrl.u32 %v457, 7
    %v459 = vsub.s32 %v356, %v458
    %v460 = vrot.slane %v316, %v459
    %v461 = vlaneseq
    %v462 = vshrl.u32 %v461, 7
    %v463 = vsub.s32 %v356, %v462
    %v464 = vrot.slane %v317, %v463
    %v465 = vlaneseq
    %v466 = vshrl.u32 %v465, 7
    %v467 = vsub.s32 %v356, %v466
    %v468 = vrot.slane %v318, %v467
    %v469 = vlaneseq
    %v470 = vshrl.u32 %v469, 7
    %v471 = vsub.s32 %v356, %v470
    %v472 = vrot.slane %v319, %v471
    %v473 = vlaneseq
    %v474 = vshrl.u32 %v473, 7
    %v475 = vsub.s32 %v356, %v474
    %v476 = vrot.slane %v320, %v475
    %v477 = vlaneseq
    %v478 = vshrl.u32 %v477, 7
    %v479 = vsub.s32 %v356, %v478
    %v480 = vrot.slane %v321, %v479
    %v481 = vlaneseq
    %v482 = vshrl.u32 %v481, 7
    %v483 = vsub.s32 %v356, %v482
    %v484 = vrot.slane %v322, %v483
    %vm485 = vcmask 1041409
    %v486 = vsel %vm485, %v364, %v360
    %vm487 = vcmask 1042434
    %v488 = vsel %vm487, %v368, %v486
    %vm489 = vcmask 1043459
    %v490 = vsel %vm489, %v372, %v488
    %vm491 = vcmask 1044484
    %v492 = vsel %vm491, %v376, %v490
    %vm493 = vcmask 1045509
    %v494 = vsel %vm493, %v380, %v492
    %vm495 = vcmask 1046534
    %v496 = vsel %vm495, %v384, %v494
    %vm497 = vcmask 1047559
    %v498 = vsel %vm497, %v388, %v496
    %v499 = vsel %vm485, %v396, %v392
    %v500 = vsel %vm487, %v400, %v499
    %v501 = vsel %vm489, %v404, %v500
    %v502 = vsel %vm491, %v408, %v501
    %v503 = vsel %vm493, %v412, %v502
    %v504 = vsel %vm495, %v416, %v503
    %v505 = vsel %vm497, %v420, %v504
    %v506 = vsel %vm485, %v428, %v424
    %v507 = vsel %vm487, %v432, %v506
    %v508 = vsel %vm489, %v436, %v507
    %v509 = vsel %vm491, %v440, %v508
    %v510 = vsel %vm493, %v444, %v509
    %v511 = vsel %vm495, %v448, %v510
    %v512 = vsel %vm497, %v452, %v511
    %v513 = vsel %vm485, %v460, %v456
    %v514 = vsel %vm487, %v464, %v513
    %v515 = vsel %vm489, %v468, %v514
    %v516 = vsel %vm491, %v472, %v515
    %v517 = vsel %vm493, %v476, %v516
    %v518 = vsel %vm495, %v480, %v517
    %v519 = vsel %vm497, %v484, %v518
    %vm524 = vcmask 64512
    %v525 = vsel %vm524, %v498, 0.0
    %526 = vadd.xlane.f32.xlu0 %v525
    %v527 = vpop.xlane.xlu0 %526
    %v528 = vsel %vm524, %v505, 0.0
    %529 = vadd.xlane.f32.xlu0 %v528
    %v530 = vpop.xlane.xlu0 %529
    %v531 = vsel %vm524, %v512, 0.0
    %532 = vadd.xlane.f32.xlu0 %v531
    %v533 = vpop.xlane.xlu0 %532
    %v534 = vsel %vm524, %v519, 0.0
    %535 = vadd.xlane.f32.xlu0 %v534
    %v536 = vpop.xlane.xlu0 %535
    %v537 = vmax.f32 %v527, 1.0
    %v538 = vmax.f32 %v530, 1.0
    %v539 = vmax.f32 %v533, 1.0
    %v540 = vmax.f32 %v536, 1.0
    %v541 = vrcp.pop %v537
    %v542 = vrcp.pop %v538
    %v543 = vrcp.pop %v539
    %v544 = vrcp.pop %v540
    %v549 = vlaneseq
    %v550 = vshrl.u32 %v549, 7
    %v551 = vsub.s32 0, %v550
    %v552 = vrot.slane %v541, %v551
    %v553 = vlaneseq
    %v554 = vshrl.u32 %v553, 7
    %v555 = vsub.s32 1, %v554
    %v556 = vrot.slane %v541, %v555
    %v557 = vlaneseq
    %v558 = vshrl.u32 %v557, 7
    %v559 = vsub.s32 2, %v558
    %v560 = vrot.slane %v541, %v559
    %v561 = vlaneseq
    %v562 = vshrl.u32 %v561, 7
    %v563 = vsub.s32 3, %v562
    %v564 = vrot.slane %v541, %v563
    %v565 = vlaneseq
    %v566 = vshrl.u32 %v565, 7
    %v567 = vsub.s32 4, %v566
    %v568 = vrot.slane %v541, %v567
    %v569 = vlaneseq
    %v570 = vshrl.u32 %v569, 7
    %v571 = vsub.s32 5, %v570
    %v572 = vrot.slane %v541, %v571
    %v573 = vlaneseq
    %v574 = vshrl.u32 %v573, 7
    %v575 = vsub.s32 6, %v574
    %v576 = vrot.slane %v541, %v575
    %v577 = vlaneseq
    %v578 = vshrl.u32 %v577, 7
    %v579 = vsub.s32 7, %v578
    %v580 = vrot.slane %v541, %v579
    %v581 = vlaneseq
    %v582 = vshrl.u32 %v581, 7
    %v583 = vsub.s32 0, %v582
    %v584 = vrot.slane %v542, %v583
    %v585 = vlaneseq
    %v586 = vshrl.u32 %v585, 7
    %v587 = vsub.s32 1, %v586
    %v588 = vrot.slane %v542, %v587
    %v589 = vlaneseq
    %v590 = vshrl.u32 %v589, 7
    %v591 = vsub.s32 2, %v590
    %v592 = vrot.slane %v542, %v591
    %v593 = vlaneseq
    %v594 = vshrl.u32 %v593, 7
    %v595 = vsub.s32 3, %v594
    %v596 = vrot.slane %v542, %v595
    %v597 = vlaneseq
    %v598 = vshrl.u32 %v597, 7
    %v599 = vsub.s32 4, %v598
    %v600 = vrot.slane %v542, %v599
    %v601 = vlaneseq
    %v602 = vshrl.u32 %v601, 7
    %v603 = vsub.s32 5, %v602
    %v604 = vrot.slane %v542, %v603
    %v605 = vlaneseq
    %v606 = vshrl.u32 %v605, 7
    %v607 = vsub.s32 6, %v606
    %v608 = vrot.slane %v542, %v607
    %v609 = vlaneseq
    %v610 = vshrl.u32 %v609, 7
    %v611 = vsub.s32 7, %v610
    %v612 = vrot.slane %v542, %v611
    %v613 = vlaneseq
    %v614 = vshrl.u32 %v613, 7
    %v615 = vsub.s32 0, %v614
    %v616 = vrot.slane %v543, %v615
    %v617 = vlaneseq
    %v618 = vshrl.u32 %v617, 7
    %v619 = vsub.s32 1, %v618
    %v620 = vrot.slane %v543, %v619
    %v621 = vlaneseq
    %v622 = vshrl.u32 %v621, 7
    %v623 = vsub.s32 2, %v622
    %v624 = vrot.slane %v543, %v623
    %v625 = vlaneseq
    %v626 = vshrl.u32 %v625, 7
    %v627 = vsub.s32 3, %v626
    %v628 = vrot.slane %v543, %v627
    %v629 = vlaneseq
    %v630 = vshrl.u32 %v629, 7
    %v631 = vsub.s32 4, %v630
    %v632 = vrot.slane %v543, %v631
    %v633 = vlaneseq
    %v634 = vshrl.u32 %v633, 7
    %v635 = vsub.s32 5, %v634
    %v636 = vrot.slane %v543, %v635
    %v637 = vlaneseq
    %v638 = vshrl.u32 %v637, 7
    %v639 = vsub.s32 6, %v638
    %v640 = vrot.slane %v543, %v639
    %v641 = vlaneseq
    %v642 = vshrl.u32 %v641, 7
    %v643 = vsub.s32 7, %v642
    %v644 = vrot.slane %v543, %v643
    %v645 = vlaneseq
    %v646 = vshrl.u32 %v645, 7
    %v647 = vsub.s32 0, %v646
    %v648 = vrot.slane %v544, %v647
    %v649 = vlaneseq
    %v650 = vshrl.u32 %v649, 7
    %v651 = vsub.s32 1, %v650
    %v652 = vrot.slane %v544, %v651
    %v653 = vlaneseq
    %v654 = vshrl.u32 %v653, 7
    %v655 = vsub.s32 2, %v654
    %v656 = vrot.slane %v544, %v655
    %v657 = vlaneseq
    %v658 = vshrl.u32 %v657, 7
    %v659 = vsub.s32 3, %v658
    %v660 = vrot.slane %v544, %v659
    %v661 = vlaneseq
    %v662 = vshrl.u32 %v661, 7
    %v663 = vsub.s32 4, %v662
    %v664 = vrot.slane %v544, %v663
    %v665 = vlaneseq
    %v666 = vshrl.u32 %v665, 7
    %v667 = vsub.s32 5, %v666
    %v668 = vrot.slane %v544, %v667
    %v669 = vlaneseq
    %v670 = vshrl.u32 %v669, 7
    %v671 = vsub.s32 6, %v670
    %v672 = vrot.slane %v544, %v671
    %v673 = vlaneseq
    %v674 = vshrl.u32 %v673, 7
    %v675 = vsub.s32 7, %v674
    %v676 = vrot.slane %v544, %v675
    %v709 = vmul.f32 %v291, %v552
    %v710 = vmul.f32 %v292, %v556
    %v711 = vmul.f32 %v293, %v560
    %v712 = vmul.f32 %v294, %v564
    %v713 = vmul.f32 %v295, %v568
    %v714 = vmul.f32 %v296, %v572
    %v715 = vmul.f32 %v297, %v576
    %v716 = vmul.f32 %v298, %v580
    %v717 = vmul.f32 %v299, %v584
    %v718 = vmul.f32 %v300, %v588
    %v719 = vmul.f32 %v301, %v592
    %v720 = vmul.f32 %v302, %v596
    %v721 = vmul.f32 %v303, %v600
    %v722 = vmul.f32 %v304, %v604
    %v723 = vmul.f32 %v305, %v608
    %v724 = vmul.f32 %v306, %v612
    %v725 = vmul.f32 %v307, %v616
    %v726 = vmul.f32 %v308, %v620
    %v727 = vmul.f32 %v309, %v624
    %v728 = vmul.f32 %v310, %v628
    %v729 = vmul.f32 %v311, %v632
    %v730 = vmul.f32 %v312, %v636
    %v731 = vmul.f32 %v313, %v640
    %v732 = vmul.f32 %v314, %v644
    %v733 = vmul.f32 %v315, %v648
    %v734 = vmul.f32 %v316, %v652
    %v735 = vmul.f32 %v317, %v656
    %v736 = vmul.f32 %v318, %v660
    %v737 = vmul.f32 %v319, %v664
    %v738 = vmul.f32 %v320, %v668
    %v739 = vmul.f32 %v321, %v672
    %v740 = vmul.f32 %v322, %v676
    %773 = vset.pattern.permute.xlu0 0
    %774 = vperm.xlu0 %773, %v709
    %v775 = vpop.permute.xlu0 %774
    %776 = vset.pattern.permute.xlu0 0
    %777 = vperm.xlu0 %776, %v710
    %v778 = vpop.permute.xlu0 %777
    %779 = vset.pattern.permute.xlu0 0
    %780 = vperm.xlu0 %779, %v711
    %v781 = vpop.permute.xlu0 %780
    %782 = vset.pattern.permute.xlu0 0
    %783 = vperm.xlu0 %782, %v712
    %v784 = vpop.permute.xlu0 %783
    %785 = vset.pattern.permute.xlu0 0
    %786 = vperm.xlu0 %785, %v713
    %v787 = vpop.permute.xlu0 %786
    %788 = vset.pattern.permute.xlu0 0
    %789 = vperm.xlu0 %788, %v714
    %v790 = vpop.permute.xlu0 %789
    %791 = vset.pattern.permute.xlu0 0
    %792 = vperm.xlu0 %791, %v715
    %v793 = vpop.permute.xlu0 %792
    %794 = vset.pattern.permute.xlu0 0
    %795 = vperm.xlu0 %794, %v716
    %v796 = vpop.permute.xlu0 %795
    %797 = vset.pattern.permute.xlu0 0
    %798 = vperm.xlu0 %797, %v717
    %v799 = vpop.permute.xlu0 %798
    %800 = vset.pattern.permute.xlu0 0
    %801 = vperm.xlu0 %800, %v718
    %v802 = vpop.permute.xlu0 %801
    %803 = vset.pattern.permute.xlu0 0
    %804 = vperm.xlu0 %803, %v719
    %v805 = vpop.permute.xlu0 %804
    %806 = vset.pattern.permute.xlu0 0
    %807 = vperm.xlu0 %806, %v720
    %v808 = vpop.permute.xlu0 %807
    %809 = vset.pattern.permute.xlu0 0
    %810 = vperm.xlu0 %809, %v721
    %v811 = vpop.permute.xlu0 %810
    %812 = vset.pattern.permute.xlu0 0
    %813 = vperm.xlu0 %812, %v722
    %v814 = vpop.permute.xlu0 %813
    %815 = vset.pattern.permute.xlu0 0
    %816 = vperm.xlu0 %815, %v723
    %v817 = vpop.permute.xlu0 %816
    %818 = vset.pattern.permute.xlu0 0
    %819 = vperm.xlu0 %818, %v724
    %v820 = vpop.permute.xlu0 %819
    %821 = vset.pattern.permute.xlu0 0
    %822 = vperm.xlu0 %821, %v725
    %v823 = vpop.permute.xlu0 %822
    %824 = vset.pattern.permute.xlu0 0
    %825 = vperm.xlu0 %824, %v726
    %v826 = vpop.permute.xlu0 %825
    %827 = vset.pattern.permute.xlu0 0
    %828 = vperm.xlu0 %827, %v727
    %v829 = vpop.permute.xlu0 %828
    %830 = vset.pattern.permute.xlu0 0
    %831 = vperm.xlu0 %830, %v728
    %v832 = vpop.permute.xlu0 %831
    %833 = vset.pattern.permute.xlu0 0
    %834 = vperm.xlu0 %833, %v729
    %v835 = vpop.permute.xlu0 %834
    %836 = vset.pattern.permute.xlu0 0
    %837 = vperm.xlu0 %836, %v730
    %v838 = vpop.permute.xlu0 %837
    %839 = vset.pattern.permute.xlu0 0
    %840 = vperm.xlu0 %839, %v731
    %v841 = vpop.permute.xlu0 %840
    %842 = vset.pattern.permute.xlu0 0
    %843 = vperm.xlu0 %842, %v732
    %v844 = vpop.permute.xlu0 %843
    %845 = vset.pattern.permute.xlu0 0
    %846 = vperm.xlu0 %845, %v733
    %v847 = vpop.permute.xlu0 %846
    %848 = vset.pattern.permute.xlu0 0
    %849 = vperm.xlu0 %848, %v734
    %v850 = vpop.permute.xlu0 %849
    %851 = vset.pattern.permute.xlu0 0
    %852 = vperm.xlu0 %851, %v735
    %v853 = vpop.permute.xlu0 %852
    %854 = vset.pattern.permute.xlu0 0
    %855 = vperm.xlu0 %854, %v736
    %v856 = vpop.permute.xlu0 %855
    %857 = vset.pattern.permute.xlu0 0
    %858 = vperm.xlu0 %857, %v737
    %v859 = vpop.permute.xlu0 %858
    %860 = vset.pattern.permute.xlu0 0
    %861 = vperm.xlu0 %860, %v738
    %v862 = vpop.permute.xlu0 %861
    %863 = vset.pattern.permute.xlu0 0
    %864 = vperm.xlu0 %863, %v739
    %v865 = vpop.permute.xlu0 %864
    %866 = vset.pattern.permute.xlu0 0
    %867 = vperm.xlu0 %866, %v740
    %v868 = vpop.permute.xlu0 %867
    %v869 = vlaneseq
    %v870 = vshrl.u32 %v869, 7
    %v871 = vsub.s32 %v356, %v870
    %v872 = vrot.slane %v775, %v871
    %v873 = vlaneseq
    %v874 = vshrl.u32 %v873, 7
    %v875 = vsub.s32 %v356, %v874
    %v876 = vrot.slane %v778, %v875
    %v877 = vlaneseq
    %v878 = vshrl.u32 %v877, 7
    %v879 = vsub.s32 %v356, %v878
    %v880 = vrot.slane %v781, %v879
    %v881 = vlaneseq
    %v882 = vshrl.u32 %v881, 7
    %v883 = vsub.s32 %v356, %v882
    %v884 = vrot.slane %v784, %v883
    %v885 = vlaneseq
    %v886 = vshrl.u32 %v885, 7
    %v887 = vsub.s32 %v356, %v886
    %v888 = vrot.slane %v787, %v887
    %v889 = vlaneseq
    %v890 = vshrl.u32 %v889, 7
    %v891 = vsub.s32 %v356, %v890
    %v892 = vrot.slane %v790, %v891
    %v893 = vlaneseq
    %v894 = vshrl.u32 %v893, 7
    %v895 = vsub.s32 %v356, %v894
    %v896 = vrot.slane %v793, %v895
    %v897 = vlaneseq
    %v898 = vshrl.u32 %v897, 7
    %v899 = vsub.s32 %v356, %v898
    %v900 = vrot.slane %v796, %v899
    %v901 = vlaneseq
    %v902 = vshrl.u32 %v901, 7
    %v903 = vsub.s32 %v356, %v902
    %v904 = vrot.slane %v799, %v903
    %v905 = vlaneseq
    %v906 = vshrl.u32 %v905, 7
    %v907 = vsub.s32 %v356, %v906
    %v908 = vrot.slane %v802, %v907
    %v909 = vlaneseq
    %v910 = vshrl.u32 %v909, 7
    %v911 = vsub.s32 %v356, %v910
    %v912 = vrot.slane %v805, %v911
    %v913 = vlaneseq
    %v914 = vshrl.u32 %v913, 7
    %v915 = vsub.s32 %v356, %v914
    %v916 = vrot.slane %v808, %v915
    %v917 = vlaneseq
    %v918 = vshrl.u32 %v917, 7
    %v919 = vsub.s32 %v356, %v918
    %v920 = vrot.slane %v811, %v919
    %v921 = vlaneseq
    %v922 = vshrl.u32 %v921, 7
    %v923 = vsub.s32 %v356, %v922
    %v924 = vrot.slane %v814, %v923
    %v925 = vlaneseq
    %v926 = vshrl.u32 %v925, 7
    %v927 = vsub.s32 %v356, %v926
    %v928 = vrot.slane %v817, %v927
    %v929 = vlaneseq
    %v930 = vshrl.u32 %v929, 7
    %v931 = vsub.s32 %v356, %v930
    %v932 = vrot.slane %v820, %v931
    %v933 = vlaneseq
    %v934 = vshrl.u32 %v933, 7
    %v935 = vsub.s32 %v356, %v934
    %v936 = vrot.slane %v823, %v935
    %v937 = vlaneseq
    %v938 = vshrl.u32 %v937, 7
    %v939 = vsub.s32 %v356, %v938
    %v940 = vrot.slane %v826, %v939
    %v941 = vlaneseq
    %v942 = vshrl.u32 %v941, 7
    %v943 = vsub.s32 %v356, %v942
    %v944 = vrot.slane %v829, %v943
    %v945 = vlaneseq
    %v946 = vshrl.u32 %v945, 7
    %v947 = vsub.s32 %v356, %v946
    %v948 = vrot.slane %v832, %v947
    %v949 = vlaneseq
    %v950 = vshrl.u32 %v949, 7
    %v951 = vsub.s32 %v356, %v950
    %v952 = vrot.slane %v835, %v951
    %v953 = vlaneseq
    %v954 = vshrl.u32 %v953, 7
    %v955 = vsub.s32 %v356, %v954
    %v956 = vrot.slane %v838, %v955
    %v957 = vlaneseq
    %v958 = vshrl.u32 %v957, 7
    %v959 = vsub.s32 %v356, %v958
    %v960 = vrot.slane %v841, %v959
    %v961 = vlaneseq
    %v962 = vshrl.u32 %v961, 7
    %v963 = vsub.s32 %v356, %v962
    %v964 = vrot.slane %v844, %v963
    %v965 = vlaneseq
    %v966 = vshrl.u32 %v965, 7
    %v967 = vsub.s32 %v356, %v966
    %v968 = vrot.slane %v847, %v967
    %v969 = vlaneseq
    %v970 = vshrl.u32 %v969, 7
    %v971 = vsub.s32 %v356, %v970
    %v972 = vrot.slane %v850, %v971
    %v973 = vlaneseq
    %v974 = vshrl.u32 %v973, 7
    %v975 = vsub.s32 %v356, %v974
    %v976 = vrot.slane %v853, %v975
    %v977 = vlaneseq
    %v978 = vshrl.u32 %v977, 7
    %v979 = vsub.s32 %v356, %v978
    %v980 = vrot.slane %v856, %v979
    %v981 = vlaneseq
    %v982 = vshrl.u32 %v981, 7
    %v983 = vsub.s32 %v356, %v982
    %v984 = vrot.slane %v859, %v983
    %v985 = vlaneseq
    %v986 = vshrl.u32 %v985, 7
    %v987 = vsub.s32 %v356, %v986
    %v988 = vrot.slane %v862, %v987
    %v989 = vlaneseq
    %v990 = vshrl.u32 %v989, 7
    %v991 = vsub.s32 %v356, %v990
    %v992 = vrot.slane %v865, %v991
    %v993 = vlaneseq
    %v994 = vshrl.u32 %v993, 7
    %v995 = vsub.s32 %v356, %v994
    %v996 = vrot.slane %v868, %v995
    %v997 = vsel %vm485, %v876, %v872
    %v998 = vsel %vm487, %v880, %v997
    %v999 = vsel %vm489, %v884, %v998
    %v1000 = vsel %vm491, %v888, %v999
    %v1001 = vsel %vm493, %v892, %v1000
    %v1002 = vsel %vm495, %v896, %v1001
    %v1003 = vsel %vm497, %v900, %v1002
    %v1004 = vsel %vm485, %v908, %v904
    %v1005 = vsel %vm487, %v912, %v1004
    %v1006 = vsel %vm489, %v916, %v1005
    %v1007 = vsel %vm491, %v920, %v1006
    %v1008 = vsel %vm493, %v924, %v1007
    %v1009 = vsel %vm495, %v928, %v1008
    %v1010 = vsel %vm497, %v932, %v1009
    %v1011 = vsel %vm485, %v940, %v936
    %v1012 = vsel %vm487, %v944, %v1011
    %v1013 = vsel %vm489, %v948, %v1012
    %v1014 = vsel %vm491, %v952, %v1013
    %v1015 = vsel %vm493, %v956, %v1014
    %v1016 = vsel %vm495, %v960, %v1015
    %v1017 = vsel %vm497, %v964, %v1016
    %v1018 = vsel %vm485, %v972, %v968
    %v1019 = vsel %vm487, %v976, %v1018
    %v1020 = vsel %vm489, %v980, %v1019
    %v1021 = vsel %vm491, %v984, %v1020
    %v1022 = vsel %vm493, %v988, %v1021
    %v1023 = vsel %vm495, %v992, %v1022
    %v1024 = vsel %vm497, %v996, %v1023
    %v1029 = vsel %vm524, %v1003, 0.0
    %1030 = vadd.xlane.f32.xlu0 %v1029
    %v1031 = vpop.xlane.xlu0 %1030
    %v1032 = vsel %vm524, %v1010, 0.0
    %1033 = vadd.xlane.f32.xlu0 %v1032
    %v1034 = vpop.xlane.xlu0 %1033
    %v1035 = vsel %vm524, %v1017, 0.0
    %1036 = vadd.xlane.f32.xlu0 %v1035
    %v1037 = vpop.xlane.xlu0 %1036
    %v1038 = vsel %vm524, %v1024, 0.0
    %1039 = vadd.xlane.f32.xlu0 %v1038
    %v1040 = vpop.xlane.xlu0 %1039
    %v1041 = vpack.c.bf16 %v34, %v34
    %v1042 = vpack.c.bf16 %v35, %v35
    %v1043 = vpack.c.bf16 %v36, %v36
    %v1044 = vpack.c.bf16 %v37, %v37
    %v1045 = vpack.c.bf16 %v38, %v38
    %v1046 = vpack.c.bf16 %v39, %v39
    %v1047 = vpack.c.bf16 %v40, %v40
    %v1048 = vpack.c.bf16 %v41, %v41
    %v1049 = vpack.c.bf16 %v42, %v42
    %v1050 = vpack.c.bf16 %v43, %v43
    %v1051 = vpack.c.bf16 %v44, %v44
    %v1052 = vpack.c.bf16 %v45, %v45
    %v1053 = vpack.c.bf16 %v46, %v46
    %v1054 = vpack.c.bf16 %v47, %v47
    %v1055 = vpack.c.bf16 %v48, %v48
    %v1056 = vpack.c.bf16 %v49, %v49
    %v1057 = vpack.c.bf16 %v50, %v50
    %v1058 = vpack.c.bf16 %v51, %v51
    %v1059 = vpack.c.bf16 %v52, %v52
    %v1060 = vpack.c.bf16 %v53, %v53
    %v1061 = vpack.c.bf16 %v54, %v54
    %v1062 = vpack.c.bf16 %v55, %v55
    %v1063 = vpack.c.bf16 %v56, %v56
    %v1064 = vpack.c.bf16 %v57, %v57
    %v1065 = vpack.c.bf16 %v58, %v58
    %v1066 = vpack.c.bf16 %v59, %v59
    %v1067 = vpack.c.bf16 %v60, %v60
    %v1068 = vpack.c.bf16 %v61, %v61
    %v1069 = vpack.c.bf16 %v62, %v62
    %v1070 = vpack.c.bf16 %v63, %v63
    %v1071 = vpack.c.bf16 %v64, %v64
    %v1072 = vpack.c.bf16 %v65, %v65
    %v1073 = vld [vmem:[%s1] sm:$0xf]
    %v1074 = vld [vmem:[%s1 + $0x4] sm:$0xf]
    %v1075 = vld [vmem:[%s2] sm:$0x1]
    %v1077 = vlaneseq
    %v1078 = vshrl.u32 %v1077, 7
    %v1079 = vsub.s32 0, %v1078
    %v1080 = vrot.slane %v1075, %v1079
    %v1114 = vunpack.c.l.b16 %v1041
    %v1115 = vunpack.c.l.b16 %v1042
    %v1116 = vunpack.c.l.b16 %v1043
    %v1117 = vunpack.c.l.b16 %v1044
    %v1118 = vunpack.c.l.b16 %v1045
    %v1119 = vunpack.c.l.b16 %v1046
    %v1120 = vunpack.c.l.b16 %v1047
    %v1121 = vunpack.c.l.b16 %v1048
    %v1122 = vunpack.c.l.b16 %v1049
    %v1123 = vunpack.c.l.b16 %v1050
    %v1124 = vunpack.c.l.b16 %v1051
    %v1125 = vunpack.c.l.b16 %v1052
    %v1126 = vunpack.c.l.b16 %v1053
    %v1127 = vunpack.c.l.b16 %v1054
    %v1128 = vunpack.c.l.b16 %v1055
    %v1129 = vunpack.c.l.b16 %v1056
    %v1130 = vunpack.c.l.b16 %v1057
    %v1131 = vunpack.c.l.b16 %v1058
    %v1132 = vunpack.c.l.b16 %v1059
    %v1133 = vunpack.c.l.b16 %v1060
    %v1134 = vunpack.c.l.b16 %v1061
    %v1135 = vunpack.c.l.b16 %v1062
    %v1136 = vunpack.c.l.b16 %v1063
    %v1137 = vunpack.c.l.b16 %v1064
    %v1138 = vunpack.c.l.b16 %v1065
    %v1139 = vunpack.c.l.b16 %v1066
    %v1140 = vunpack.c.l.b16 %v1067
    %v1141 = vunpack.c.l.b16 %v1068
    %v1142 = vunpack.c.l.b16 %v1069
    %v1143 = vunpack.c.l.b16 %v1070
    %v1144 = vunpack.c.l.b16 %v1071
    %v1145 = vunpack.c.l.b16 %v1072
    %v1146 = vpack.c.b16 %v1115, %v1114
    %v1147 = vpack.c.b16 %v1117, %v1116
    %v1148 = vpack.c.b16 %v1119, %v1118
    %v1149 = vpack.c.b16 %v1121, %v1120
    %v1150 = vpack.c.b16 %v1123, %v1122
    %v1151 = vpack.c.b16 %v1125, %v1124
    %v1152 = vpack.c.b16 %v1127, %v1126
    %v1153 = vpack.c.b16 %v1129, %v1128
    %v1154 = vpack.c.b16 %v1131, %v1130
    %v1155 = vpack.c.b16 %v1133, %v1132
    %v1156 = vpack.c.b16 %v1135, %v1134
    %v1157 = vpack.c.b16 %v1137, %v1136
    %v1158 = vpack.c.b16 %v1139, %v1138
    %v1159 = vpack.c.b16 %v1141, %v1140
    %v1160 = vpack.c.b16 %v1143, %v1142
    %v1161 = vpack.c.b16 %v1145, %v1144
    %v1164 = vunpack.c.l.b16 %v1073
    %v1165 = vunpack.c.l.b16 %v1074
    %v1166 = vpack.c.b16 %v1165, %v1164
    %v1169 = vsel %vm130, %v1146, 0
    %v1172 = vsel %vm130, %v1147, 0
    %v1175 = vsel %vm130, %v1148, 0
    %v1178 = vsel %vm130, %v1149, 0
    %v1181 = vsel %vm130, %v1150, 0
    %v1184 = vsel %vm130, %v1151, 0
    %v1187 = vsel %vm130, %v1152, 0
    %v1190 = vsel %vm130, %v1153, 0
    %v1193 = vsel %vm130, %v1154, 0
    %v1196 = vsel %vm130, %v1155, 0
    %v1199 = vsel %vm130, %v1156, 0
    %v1202 = vsel %vm130, %v1157, 0
    %v1205 = vsel %vm130, %v1158, 0
    %v1208 = vsel %vm130, %v1159, 0
    %v1211 = vsel %vm130, %v1160, 0
    %v1214 = vsel %vm130, %v1161, 0
    %1216 = vmatprep.subr.bf16.mxu0 0
    %1217 = vmatpush1.bf16.msra.mxu0 0
    %1218 = vmatprep.subr.bf16.mxu0 0
    %1219 = vmatpush1.bf16.msra.mxu0 0
    %1220 = vmatprep.subr.bf16.mxu0 0
    %1221 = vmatpush1.bf16.msra.mxu0 0
    %1222 = vmatprep.subr.bf16.mxu0 0
    %1223 = vmatpush1.bf16.msra.mxu0 0
    %1224 = vmatprep.subr.bf16.mxu0 0
    %1225 = vmatpush1.bf16.msra.mxu0 0
    %1226 = vmatprep.subr.bf16.mxu0 0
    %1227 = vmatpush1.bf16.msra.mxu0 0
    %1228 = vmatprep.subr.bf16.mxu0 0
    %1229 = vmatpush1.bf16.msra.mxu0 0
    %1230 = vmatprep.subr.bf16.mxu0 0
    %1231 = vmatpush1.bf16.msra.mxu0 %v1166
    %1232 = vmatprep.subr.bf16.mxu0 0
    %1233 = vmatpush2.bf16.msra.mxu0 0
    %1234 = vmatprep.subr.bf16.mxu0 0
    %1235 = vmatpush2.bf16.msra.mxu0 0
    %1236 = vmatprep.subr.bf16.mxu0 0
    %1237 = vmatpush2.bf16.msra.mxu0 0
    %1238 = vmatprep.subr.bf16.mxu0 0
    %1239 = vmatpush2.bf16.msra.mxu0 0
    %1240 = vmatprep.subr.bf16.mxu0 0
    %1241 = vmatpush2.bf16.msra.mxu0 0
    %1242 = vmatprep.subr.bf16.mxu0 0
    %1243 = vmatpush2.bf16.msra.mxu0 0
    %1244 = vmatprep.subr.bf16.mxu0 0
    %1245 = vmatpush2.bf16.msra.mxu0 0
    %1246 = vmatprep.subr.bf16.mxu0 0
    %1247 = vmatpush2.bf16.msra.mxu0 0
    %1248 = vmatprep.mubr.bf16.mxu0 0
    %1249 = vmatmul.mubr.bf16.gmra.mxu0 %v1169
    %v1250 = vpop.f32.mrf.mxu0
    %v1251 = vadd.f32 %v1080, %v1250
    %v1252 = vpop.f32.mrf.mxu0
    %v1253 = vpop.f32.mrf.mxu0
    %v1254 = vadd.f32 %v1080, %v1253
    %v1255 = vpop.f32.mrf.mxu0
    %1256 = vmatprep.mubr.bf16.mxu0 0
    %1257 = vmatmul.mubr.bf16.gmra.mxu0 %v1172
    %v1258 = vpop.f32.mrf.mxu0
    %v1259 = vadd.f32 %v1080, %v1258
    %v1260 = vpop.f32.mrf.mxu0
    %v1261 = vpop.f32.mrf.mxu0
    %v1262 = vadd.f32 %v1080, %v1261
    %v1263 = vpop.f32.mrf.mxu0
    %1264 = vmatprep.mubr.bf16.mxu0 0
    %1265 = vmatmul.mubr.bf16.gmra.mxu0 %v1175
    %v1266 = vpop.f32.mrf.mxu0
    %v1267 = vadd.f32 %v1080, %v1266
    %v1268 = vpop.f32.mrf.mxu0
    %v1269 = vpop.f32.mrf.mxu0
    %v1270 = vadd.f32 %v1080, %v1269
    %v1271 = vpop.f32.mrf.mxu0
    %1272 = vmatprep.mubr.bf16.mxu0 0
    %1273 = vmatmul.mubr.bf16.gmra.mxu0 %v1178
    %v1274 = vpop.f32.mrf.mxu0
    %v1275 = vadd.f32 %v1080, %v1274
    %v1276 = vpop.f32.mrf.mxu0
    %v1277 = vpop.f32.mrf.mxu0
    %v1278 = vadd.f32 %v1080, %v1277
    %v1279 = vpop.f32.mrf.mxu0
    %1280 = vmatprep.mubr.bf16.mxu0 0
    %1281 = vmatmul.mubr.bf16.gmra.mxu0 %v1181
    %v1282 = vpop.f32.mrf.mxu0
    %v1283 = vadd.f32 %v1080, %v1282
    %v1284 = vpop.f32.mrf.mxu0
    %v1285 = vpop.f32.mrf.mxu0
    %v1286 = vadd.f32 %v1080, %v1285
    %v1287 = vpop.f32.mrf.mxu0
    %1288 = vmatprep.mubr.bf16.mxu0 0
    %1289 = vmatmul.mubr.bf16.gmra.mxu0 %v1184
    %v1290 = vpop.f32.mrf.mxu0
    %v1291 = vadd.f32 %v1080, %v1290
    %v1292 = vpop.f32.mrf.mxu0
    %v1293 = vpop.f32.mrf.mxu0
    %v1294 = vadd.f32 %v1080, %v1293
    %v1295 = vpop.f32.mrf.mxu0
    %1296 = vmatprep.mubr.bf16.mxu0 0
    %1297 = vmatmul.mubr.bf16.gmra.mxu0 %v1187
    %v1298 = vpop.f32.mrf.mxu0
    %v1299 = vadd.f32 %v1080, %v1298
    %v1300 = vpop.f32.mrf.mxu0
    %v1301 = vpop.f32.mrf.mxu0
    %v1302 = vadd.f32 %v1080, %v1301
    %v1303 = vpop.f32.mrf.mxu0
    %1304 = vmatprep.mubr.bf16.mxu0 0
    %1305 = vmatmul.mubr.bf16.gmra.mxu0 %v1190
    %v1306 = vpop.f32.mrf.mxu0
    %v1307 = vadd.f32 %v1080, %v1306
    %v1308 = vpop.f32.mrf.mxu0
    %v1309 = vpop.f32.mrf.mxu0
    %v1310 = vadd.f32 %v1080, %v1309
    %v1311 = vpop.f32.mrf.mxu0
    %1312 = vmatprep.mubr.bf16.mxu0 0
    %1313 = vmatmul.mubr.bf16.gmra.mxu0 %v1193
    %v1314 = vpop.f32.mrf.mxu0
    %v1315 = vadd.f32 %v1080, %v1314
    %v1316 = vpop.f32.mrf.mxu0
    %v1317 = vpop.f32.mrf.mxu0
    %v1318 = vadd.f32 %v1080, %v1317
    %v1319 = vpop.f32.mrf.mxu0
    %1320 = vmatprep.mubr.bf16.mxu0 0
    %1321 = vmatmul.mubr.bf16.gmra.mxu0 %v1196
    %v1322 = vpop.f32.mrf.mxu0
    %v1323 = vadd.f32 %v1080, %v1322
    %v1324 = vpop.f32.mrf.mxu0
    %v1325 = vpop.f32.mrf.mxu0
    %v1326 = vadd.f32 %v1080, %v1325
    %v1327 = vpop.f32.mrf.mxu0
    %1328 = vmatprep.mubr.bf16.mxu0 0
    %1329 = vmatmul.mubr.bf16.gmra.mxu0 %v1199
    %v1330 = vpop.f32.mrf.mxu0
    %v1331 = vadd.f32 %v1080, %v1330
    %v1332 = vpop.f32.mrf.mxu0
    %v1333 = vpop.f32.mrf.mxu0
    %v1334 = vadd.f32 %v1080, %v1333
    %v1335 = vpop.f32.mrf.mxu0
    %1336 = vmatprep.mubr.bf16.mxu0 0
    %1337 = vmatmul.mubr.bf16.gmra.mxu0 %v1202
    %v1338 = vpop.f32.mrf.mxu0
    %v1339 = vadd.f32 %v1080, %v1338
    %v1340 = vpop.f32.mrf.mxu0
    %v1341 = vpop.f32.mrf.mxu0
    %v1342 = vadd.f32 %v1080, %v1341
    %v1343 = vpop.f32.mrf.mxu0
    %1344 = vmatprep.mubr.bf16.mxu0 0
    %1345 = vmatmul.mubr.bf16.gmra.mxu0 %v1205
    %v1346 = vpop.f32.mrf.mxu0
    %v1347 = vadd.f32 %v1080, %v1346
    %v1348 = vpop.f32.mrf.mxu0
    %v1349 = vpop.f32.mrf.mxu0
    %v1350 = vadd.f32 %v1080, %v1349
    %v1351 = vpop.f32.mrf.mxu0
    %1352 = vmatprep.mubr.bf16.mxu0 0
    %1353 = vmatmul.mubr.bf16.gmra.mxu0 %v1208
    %v1354 = vpop.f32.mrf.mxu0
    %v1355 = vadd.f32 %v1080, %v1354
    %v1356 = vpop.f32.mrf.mxu0
    %v1357 = vpop.f32.mrf.mxu0
    %v1358 = vadd.f32 %v1080, %v1357
    %v1359 = vpop.f32.mrf.mxu0
    %1360 = vmatprep.mubr.bf16.mxu0 0
    %1361 = vmatmul.mubr.bf16.gmra.mxu0 %v1211
    %v1362 = vpop.f32.mrf.mxu0
    %v1363 = vadd.f32 %v1080, %v1362
    %v1364 = vpop.f32.mrf.mxu0
    %v1365 = vpop.f32.mrf.mxu0
    %v1366 = vadd.f32 %v1080, %v1365
    %v1367 = vpop.f32.mrf.mxu0
    %1368 = vmatprep.mubr.bf16.mxu0 0
    %1369 = vmatmul.mubr.bf16.gmra.mxu0 %v1214
    %v1370 = vpop.f32.mrf.mxu0
    %v1371 = vadd.f32 %v1080, %v1370
    %v1372 = vpop.f32.mrf.mxu0
    %v1373 = vpop.f32.mrf.mxu0
    %v1374 = vadd.f32 %v1080, %v1373
    %v1375 = vpop.f32.mrf.mxu0
    %1376 = vdwg.mxu0
    %v1377 = vmax.f32 %v1251, 0.0
    %v1378 = vmax.f32 %v1254, 0.0
    %v1379 = vmax.f32 %v1259, 0.0
    %v1380 = vmax.f32 %v1262, 0.0
    %v1381 = vmax.f32 %v1267, 0.0
    %v1382 = vmax.f32 %v1270, 0.0
    %v1383 = vmax.f32 %v1275, 0.0
    %v1384 = vmax.f32 %v1278, 0.0
    %v1385 = vmax.f32 %v1283, 0.0
    %v1386 = vmax.f32 %v1286, 0.0
    %v1387 = vmax.f32 %v1291, 0.0
    %v1388 = vmax.f32 %v1294, 0.0
    %v1389 = vmax.f32 %v1299, 0.0
    %v1390 = vmax.f32 %v1302, 0.0
    %v1391 = vmax.f32 %v1307, 0.0
    %v1392 = vmax.f32 %v1310, 0.0
    %v1393 = vmax.f32 %v1315, 0.0
    %v1394 = vmax.f32 %v1318, 0.0
    %v1395 = vmax.f32 %v1323, 0.0
    %v1396 = vmax.f32 %v1326, 0.0
    %v1397 = vmax.f32 %v1331, 0.0
    %v1398 = vmax.f32 %v1334, 0.0
    %v1399 = vmax.f32 %v1339, 0.0
    %v1400 = vmax.f32 %v1342, 0.0
    %v1401 = vmax.f32 %v1347, 0.0
    %v1402 = vmax.f32 %v1350, 0.0
    %v1403 = vmax.f32 %v1355, 0.0
    %v1404 = vmax.f32 %v1358, 0.0
    %v1405 = vmax.f32 %v1363, 0.0
    %v1406 = vmax.f32 %v1366, 0.0
    %v1407 = vmax.f32 %v1371, 0.0
    %v1408 = vmax.f32 %v1374, 0.0
    %v1441 = vmul.f32 %v1377, %v775
    %v1442 = vmul.f32 %v1378, %v778
    %v1443 = vmul.f32 %v1379, %v781
    %v1444 = vmul.f32 %v1380, %v784
    %v1445 = vmul.f32 %v1381, %v787
    %v1446 = vmul.f32 %v1382, %v790
    %v1447 = vmul.f32 %v1383, %v793
    %v1448 = vmul.f32 %v1384, %v796
    %v1449 = vmul.f32 %v1385, %v799
    %v1450 = vmul.f32 %v1386, %v802
    %v1451 = vmul.f32 %v1387, %v805
    %v1452 = vmul.f32 %v1388, %v808
    %v1453 = vmul.f32 %v1389, %v811
    %v1454 = vmul.f32 %v1390, %v814
    %v1455 = vmul.f32 %v1391, %v817
    %v1456 = vmul.f32 %v1392, %v820
    %v1457 = vmul.f32 %v1393, %v823
    %v1458 = vmul.f32 %v1394, %v826
    %v1459 = vmul.f32 %v1395, %v829
    %v1460 = vmul.f32 %v1396, %v832
    %v1461 = vmul.f32 %v1397, %v835
    %v1462 = vmul.f32 %v1398, %v838
    %v1463 = vmul.f32 %v1399, %v841
    %v1464 = vmul.f32 %v1400, %v844
    %v1465 = vmul.f32 %v1401, %v847
    %v1466 = vmul.f32 %v1402, %v850
    %v1467 = vmul.f32 %v1403, %v853
    %v1468 = vmul.f32 %v1404, %v856
    %v1469 = vmul.f32 %v1405, %v859
    %v1470 = vmul.f32 %v1406, %v862
    %v1471 = vmul.f32 %v1407, %v865
    %v1472 = vmul.f32 %v1408, %v868
    %vm1473 = vcmask 261120
    %v1474 = vsel %vm1473, %v1441, 0.0
    %v1475 = vrot.slane %v1474, 4
    %v1476 = vadd.f32 %v1474, %v1475
    %v1477 = vrot.slane %v1476, 2
    %v1478 = vadd.f32 %v1476, %v1477
    %v1479 = vrot.slane %v1478, 1
    %v1480 = vadd.f32 %v1478, %v1479
    %v1481 = vsel %vm1473, %v1442, 0.0
    %v1482 = vrot.slane %v1481, 4
    %v1483 = vadd.f32 %v1481, %v1482
    %v1484 = vrot.slane %v1483, 2
    %v1485 = vadd.f32 %v1483, %v1484
    %v1486 = vrot.slane %v1485, 1
    %v1487 = vadd.f32 %v1485, %v1486
    %v1488 = vsel %vm1473, %v1443, 0.0
    %v1489 = vrot.slane %v1488, 4
    %v1490 = vadd.f32 %v1488, %v1489
    %v1491 = vrot.slane %v1490, 2
    %v1492 = vadd.f32 %v1490, %v1491
    %v1493 = vrot.slane %v1492, 1
    %v1494 = vadd.f32 %v1492, %v1493
    %v1495 = vsel %vm1473, %v1444, 0.0
    %v1496 = vrot.slane %v1495, 4
    %v1497 = vadd.f32 %v1495, %v1496
    %v1498 = vrot.slane %v1497, 2
    %v1499 = vadd.f32 %v1497, %v1498
    %v1500 = vrot.slane %v1499, 1
    %v1501 = vadd.f32 %v1499, %v1500
    %v1502 = vsel %vm1473, %v1445, 0.0
    %v1503 = vrot.slane %v1502, 4
    %v1504 = vadd.f32 %v1502, %v1503
    %v1505 = vrot.slane %v1504, 2
    %v1506 = vadd.f32 %v1504, %v1505
    %v1507 = vrot.slane %v1506, 1
    %v1508 = vadd.f32 %v1506, %v1507
    %v1509 = vsel %vm1473, %v1446, 0.0
    %v1510 = vrot.slane %v1509, 4
    %v1511 = vadd.f32 %v1509, %v1510
    %v1512 = vrot.slane %v1511, 2
    %v1513 = vadd.f32 %v1511, %v1512
    %v1514 = vrot.slane %v1513, 1
    %v1515 = vadd.f32 %v1513, %v1514
    %v1516 = vsel %vm1473, %v1447, 0.0
    %v1517 = vrot.slane %v1516, 4
    %v1518 = vadd.f32 %v1516, %v1517
    %v1519 = vrot.slane %v1518, 2
    %v1520 = vadd.f32 %v1518, %v1519
    %v1521 = vrot.slane %v1520, 1
    %v1522 = vadd.f32 %v1520, %v1521
    %v1523 = vsel %vm1473, %v1448, 0.0
    %v1524 = vrot.slane %v1523, 4
    %v1525 = vadd.f32 %v1523, %v1524
    %v1526 = vrot.slane %v1525, 2
    %v1527 = vadd.f32 %v1525, %v1526
    %v1528 = vrot.slane %v1527, 1
    %v1529 = vadd.f32 %v1527, %v1528
    %v1530 = vsel %vm1473, %v1449, 0.0
    %v1531 = vrot.slane %v1530, 4
    %v1532 = vadd.f32 %v1530, %v1531
    %v1533 = vrot.slane %v1532, 2
    %v1534 = vadd.f32 %v1532, %v1533
    %v1535 = vrot.slane %v1534, 1
    %v1536 = vadd.f32 %v1534, %v1535
    %v1537 = vsel %vm1473, %v1450, 0.0
    %v1538 = vrot.slane %v1537, 4
    %v1539 = vadd.f32 %v1537, %v1538
    %v1540 = vrot.slane %v1539, 2
    %v1541 = vadd.f32 %v1539, %v1540
    %v1542 = vrot.slane %v1541, 1
    %v1543 = vadd.f32 %v1541, %v1542
    %v1544 = vsel %vm1473, %v1451, 0.0
    %v1545 = vrot.slane %v1544, 4
    %v1546 = vadd.f32 %v1544, %v1545
    %v1547 = vrot.slane %v1546, 2
    %v1548 = vadd.f32 %v1546, %v1547
    %v1549 = vrot.slane %v1548, 1
    %v1550 = vadd.f32 %v1548, %v1549
    %v1551 = vsel %vm1473, %v1452, 0.0
    %v1552 = vrot.slane %v1551, 4
    %v1553 = vadd.f32 %v1551, %v1552
    %v1554 = vrot.slane %v1553, 2
    %v1555 = vadd.f32 %v1553, %v1554
    %v1556 = vrot.slane %v1555, 1
    %v1557 = vadd.f32 %v1555, %v1556
    %v1558 = vsel %vm1473, %v1453, 0.0
    %v1559 = vrot.slane %v1558, 4
    %v1560 = vadd.f32 %v1558, %v1559
    %v1561 = vrot.slane %v1560, 2
    %v1562 = vadd.f32 %v1560, %v1561
    %v1563 = vrot.slane %v1562, 1
    %v1564 = vadd.f32 %v1562, %v1563
    %v1565 = vsel %vm1473, %v1454, 0.0
    %v1566 = vrot.slane %v1565, 4
    %v1567 = vadd.f32 %v1565, %v1566
    %v1568 = vrot.slane %v1567, 2
    %v1569 = vadd.f32 %v1567, %v1568
    %v1570 = vrot.slane %v1569, 1
    %v1571 = vadd.f32 %v1569, %v1570
    %v1572 = vsel %vm1473, %v1455, 0.0
    %v1573 = vrot.slane %v1572, 4
    %v1574 = vadd.f32 %v1572, %v1573
    %v1575 = vrot.slane %v1574, 2
    %v1576 = vadd.f32 %v1574, %v1575
    %v1577 = vrot.slane %v1576, 1
    %v1578 = vadd.f32 %v1576, %v1577
    %v1579 = vsel %vm1473, %v1456, 0.0
    %v1580 = vrot.slane %v1579, 4
    %v1581 = vadd.f32 %v1579, %v1580
    %v1582 = vrot.slane %v1581, 2
    %v1583 = vadd.f32 %v1581, %v1582
    %v1584 = vrot.slane %v1583, 1
    %v1585 = vadd.f32 %v1583, %v1584
    %v1586 = vsel %vm1473, %v1457, 0.0
    %v1587 = vrot.slane %v1586, 4
    %v1588 = vadd.f32 %v1586, %v1587
    %v1589 = vrot.slane %v1588, 2
    %v1590 = vadd.f32 %v1588, %v1589
    %v1591 = vrot.slane %v1590, 1
    %v1592 = vadd.f32 %v1590, %v1591
    %v1593 = vsel %vm1473, %v1458, 0.0
    %v1594 = vrot.slane %v1593, 4
    %v1595 = vadd.f32 %v1593, %v1594
    %v1596 = vrot.slane %v1595, 2
    %v1597 = vadd.f32 %v1595, %v1596
    %v1598 = vrot.slane %v1597, 1
    %v1599 = vadd.f32 %v1597, %v1598
    %v1600 = vsel %vm1473, %v1459, 0.0
    %v1601 = vrot.slane %v1600, 4
    %v1602 = vadd.f32 %v1600, %v1601
    %v1603 = vrot.slane %v1602, 2
    %v1604 = vadd.f32 %v1602, %v1603
    %v1605 = vrot.slane %v1604, 1
    %v1606 = vadd.f32 %v1604, %v1605
    %v1607 = vsel %vm1473, %v1460, 0.0
    %v1608 = vrot.slane %v1607, 4
    %v1609 = vadd.f32 %v1607, %v1608
    %v1610 = vrot.slane %v1609, 2
    %v1611 = vadd.f32 %v1609, %v1610
    %v1612 = vrot.slane %v1611, 1
    %v1613 = vadd.f32 %v1611, %v1612
    %v1614 = vsel %vm1473, %v1461, 0.0
    %v1615 = vrot.slane %v1614, 4
    %v1616 = vadd.f32 %v1614, %v1615
    %v1617 = vrot.slane %v1616, 2
    %v1618 = vadd.f32 %v1616, %v1617
    %v1619 = vrot.slane %v1618, 1
    %v1620 = vadd.f32 %v1618, %v1619
    %v1621 = vsel %vm1473, %v1462, 0.0
    %v1622 = vrot.slane %v1621, 4
    %v1623 = vadd.f32 %v1621, %v1622
    %v1624 = vrot.slane %v1623, 2
    %v1625 = vadd.f32 %v1623, %v1624
    %v1626 = vrot.slane %v1625, 1
    %v1627 = vadd.f32 %v1625, %v1626
    %v1628 = vsel %vm1473, %v1463, 0.0
    %v1629 = vrot.slane %v1628, 4
    %v1630 = vadd.f32 %v1628, %v1629
    %v1631 = vrot.slane %v1630, 2
    %v1632 = vadd.f32 %v1630, %v1631
    %v1633 = vrot.slane %v1632, 1
    %v1634 = vadd.f32 %v1632, %v1633
    %v1635 = vsel %vm1473, %v1464, 0.0
    %v1636 = vrot.slane %v1635, 4
    %v1637 = vadd.f32 %v1635, %v1636
    %v1638 = vrot.slane %v1637, 2
    %v1639 = vadd.f32 %v1637, %v1638
    %v1640 = vrot.slane %v1639, 1
    %v1641 = vadd.f32 %v1639, %v1640
    %v1642 = vsel %vm1473, %v1465, 0.0
    %v1643 = vrot.slane %v1642, 4
    %v1644 = vadd.f32 %v1642, %v1643
    %v1645 = vrot.slane %v1644, 2
    %v1646 = vadd.f32 %v1644, %v1645
    %v1647 = vrot.slane %v1646, 1
    %v1648 = vadd.f32 %v1646, %v1647
    %v1649 = vsel %vm1473, %v1466, 0.0
    %v1650 = vrot.slane %v1649, 4
    %v1651 = vadd.f32 %v1649, %v1650
    %v1652 = vrot.slane %v1651, 2
    %v1653 = vadd.f32 %v1651, %v1652
    %v1654 = vrot.slane %v1653, 1
    %v1655 = vadd.f32 %v1653, %v1654
    %v1656 = vsel %vm1473, %v1467, 0.0
    %v1657 = vrot.slane %v1656, 4
    %v1658 = vadd.f32 %v1656, %v1657
    %v1659 = vrot.slane %v1658, 2
    %v1660 = vadd.f32 %v1658, %v1659
    %v1661 = vrot.slane %v1660, 1
    %v1662 = vadd.f32 %v1660, %v1661
    %v1663 = vsel %vm1473, %v1468, 0.0
    %v1664 = vrot.slane %v1663, 4
    %v1665 = vadd.f32 %v1663, %v1664
    %v1666 = vrot.slane %v1665, 2
    %v1667 = vadd.f32 %v1665, %v1666
    %v1668 = vrot.slane %v1667, 1
    %v1669 = vadd.f32 %v1667, %v1668
    %v1670 = vsel %vm1473, %v1469, 0.0
    %v1671 = vrot.slane %v1670, 4
    %v1672 = vadd.f32 %v1670, %v1671
    %v1673 = vrot.slane %v1672, 2
    %v1674 = vadd.f32 %v1672, %v1673
    %v1675 = vrot.slane %v1674, 1
    %v1676 = vadd.f32 %v1674, %v1675
    %v1677 = vsel %vm1473, %v1470, 0.0
    %v1678 = vrot.slane %v1677, 4
    %v1679 = vadd.f32 %v1677, %v1678
    %v1680 = vrot.slane %v1679, 2
    %v1681 = vadd.f32 %v1679, %v1680
    %v1682 = vrot.slane %v1681, 1
    %v1683 = vadd.f32 %v1681, %v1682
    %v1684 = vsel %vm1473, %v1471, 0.0
    %v1685 = vrot.slane %v1684, 4
    %v1686 = vadd.f32 %v1684, %v1685
    %v1687 = vrot.slane %v1686, 2
    %v1688 = vadd.f32 %v1686, %v1687
    %v1689 = vrot.slane %v1688, 1
    %v1690 = vadd.f32 %v1688, %v1689
    %v1691 = vsel %vm1473, %v1472, 0.0
    %v1692 = vrot.slane %v1691, 4
    %v1693 = vadd.f32 %v1691, %v1692
    %v1694 = vrot.slane %v1693, 2
    %v1695 = vadd.f32 %v1693, %v1694
    %v1696 = vrot.slane %v1695, 1
    %v1697 = vadd.f32 %v1695, %v1696
    %v1698 = vpack.c.bf16 %v1480, %v1480
    %v1699 = vpack.c.bf16 %v1487, %v1487
    %v1700 = vpack.c.bf16 %v1494, %v1494
    %v1701 = vpack.c.bf16 %v1501, %v1501
    %v1702 = vpack.c.bf16 %v1508, %v1508
    %v1703 = vpack.c.bf16 %v1515, %v1515
    %v1704 = vpack.c.bf16 %v1522, %v1522
    %v1705 = vpack.c.bf16 %v1529, %v1529
    %v1706 = vpack.c.bf16 %v1536, %v1536
    %v1707 = vpack.c.bf16 %v1543, %v1543
    %v1708 = vpack.c.bf16 %v1550, %v1550
    %v1709 = vpack.c.bf16 %v1557, %v1557
    %v1710 = vpack.c.bf16 %v1564, %v1564
    %v1711 = vpack.c.bf16 %v1571, %v1571
    %v1712 = vpack.c.bf16 %v1578, %v1578
    %v1713 = vpack.c.bf16 %v1585, %v1585
    %v1714 = vpack.c.bf16 %v1592, %v1592
    %v1715 = vpack.c.bf16 %v1599, %v1599
    %v1716 = vpack.c.bf16 %v1606, %v1606
    %v1717 = vpack.c.bf16 %v1613, %v1613
    %v1718 = vpack.c.bf16 %v1620, %v1620
    %v1719 = vpack.c.bf16 %v1627, %v1627
    %v1720 = vpack.c.bf16 %v1634, %v1634
    %v1721 = vpack.c.bf16 %v1641, %v1641
    %v1722 = vpack.c.bf16 %v1648, %v1648
    %v1723 = vpack.c.bf16 %v1655, %v1655
    %v1724 = vpack.c.bf16 %v1662, %v1662
    %v1725 = vpack.c.bf16 %v1669, %v1669
    %v1726 = vpack.c.bf16 %v1676, %v1676
    %v1727 = vpack.c.bf16 %v1683, %v1683
    %v1728 = vpack.c.bf16 %v1690, %v1690
    %v1729 = vpack.c.bf16 %v1697, %v1697
    %v1730 = vld [vmem:[%s3] sm:$0xf]
    %v1731 = vld [vmem:[%s3 + $0x4] sm:$0xf]
    %v1732 = vld [vmem:[%s3 + $0x8] sm:$0xf]
    %v1733 = vld [vmem:[%s3 + $0xc] sm:$0xf]
    %v1734 = vld [vmem:[%s4] sm:$0x1]
    %v1736 = vlaneseq
    %v1737 = vshrl.u32 %v1736, 7
    %v1738 = vsub.s32 0, %v1737
    %v1739 = vrot.slane %v1734, %v1738
    %v1741 = vmul.f32 %v1031, %v1739
    %v1742 = vmul.f32 %v1034, %v1739
    %v1743 = vmul.f32 %v1037, %v1739
    %v1744 = vmul.f32 %v1040, %v1739
    %v1777 = vunpack.c.l.b16 %v1698
    %v1778 = vunpack.c.l.b16 %v1699
    %v1779 = vunpack.c.l.b16 %v1700
    %v1780 = vunpack.c.l.b16 %v1701
    %v1781 = vunpack.c.l.b16 %v1702
    %v1782 = vunpack.c.l.b16 %v1703
    %v1783 = vunpack.c.l.b16 %v1704
    %v1784 = vunpack.c.l.b16 %v1705
    %v1785 = vunpack.c.l.b16 %v1706
    %v1786 = vunpack.c.l.b16 %v1707
    %v1787 = vunpack.c.l.b16 %v1708
    %v1788 = vunpack.c.l.b16 %v1709
    %v1789 = vunpack.c.l.b16 %v1710
    %v1790 = vunpack.c.l.b16 %v1711
    %v1791 = vunpack.c.l.b16 %v1712
    %v1792 = vunpack.c.l.b16 %v1713
    %v1793 = vunpack.c.l.b16 %v1714
    %v1794 = vunpack.c.l.b16 %v1715
    %v1795 = vunpack.c.l.b16 %v1716
    %v1796 = vunpack.c.l.b16 %v1717
    %v1797 = vunpack.c.l.b16 %v1718
    %v1798 = vunpack.c.l.b16 %v1719
    %v1799 = vunpack.c.l.b16 %v1720
    %v1800 = vunpack.c.l.b16 %v1721
    %v1801 = vunpack.c.l.b16 %v1722
    %v1802 = vunpack.c.l.b16 %v1723
    %v1803 = vunpack.c.l.b16 %v1724
    %v1804 = vunpack.c.l.b16 %v1725
    %v1805 = vunpack.c.l.b16 %v1726
    %v1806 = vunpack.c.l.b16 %v1727
    %v1807 = vunpack.c.l.b16 %v1728
    %v1808 = vunpack.c.l.b16 %v1729
    %v1809 = vsel %vm485, %v1778, %v1777
    %v1810 = vsel %vm487, %v1779, %v1809
    %v1811 = vsel %vm489, %v1780, %v1810
    %v1812 = vsel %vm491, %v1781, %v1811
    %v1813 = vsel %vm493, %v1782, %v1812
    %v1814 = vsel %vm495, %v1783, %v1813
    %v1815 = vsel %vm497, %v1784, %v1814
    %v1816 = vsel %vm485, %v1786, %v1785
    %v1817 = vsel %vm487, %v1787, %v1816
    %v1818 = vsel %vm489, %v1788, %v1817
    %v1819 = vsel %vm491, %v1789, %v1818
    %v1820 = vsel %vm493, %v1790, %v1819
    %v1821 = vsel %vm495, %v1791, %v1820
    %v1822 = vsel %vm497, %v1792, %v1821
    %v1823 = vsel %vm485, %v1794, %v1793
    %v1824 = vsel %vm487, %v1795, %v1823
    %v1825 = vsel %vm489, %v1796, %v1824
    %v1826 = vsel %vm491, %v1797, %v1825
    %v1827 = vsel %vm493, %v1798, %v1826
    %v1828 = vsel %vm495, %v1799, %v1827
    %v1829 = vsel %vm497, %v1800, %v1828
    %v1830 = vsel %vm485, %v1802, %v1801
    %v1831 = vsel %vm487, %v1803, %v1830
    %v1832 = vsel %vm489, %v1804, %v1831
    %v1833 = vsel %vm491, %v1805, %v1832
    %v1834 = vsel %vm493, %v1806, %v1833
    %v1835 = vsel %vm495, %v1807, %v1834
    %v1836 = vsel %vm497, %v1808, %v1835
    %v1837 = vpack.c.b16 %v1822, %v1815
    %v1838 = vpack.c.b16 %v1836, %v1829
    %v1843 = vunpack.c.l.b16 %v1730
    %v1844 = vunpack.c.l.b16 %v1731
    %v1845 = vunpack.c.l.b16 %v1732
    %v1846 = vunpack.c.l.b16 %v1733
    %v1847 = vpack.c.b16 %v1844, %v1843
    %v1848 = vpack.c.b16 %v1846, %v1845
    %v1852 = vsel %vm1473, %v1837, 0
    %v1855 = vsel %vm1473, %v1838, 0
    %1857 = vmatprep.subr.bf16.mxu0 0
    %1858 = vmatpush1.bf16.msra.mxu0 0
    %1859 = vmatprep.subr.bf16.mxu0 0
    %1860 = vmatpush1.bf16.msra.mxu0 0
    %1861 = vmatprep.subr.bf16.mxu0 0
    %1862 = vmatpush1.bf16.msra.mxu0 0
    %1863 = vmatprep.subr.bf16.mxu0 0
    %1864 = vmatpush1.bf16.msra.mxu0 0
    %1865 = vmatprep.subr.bf16.mxu0 0
    %1866 = vmatpush1.bf16.msra.mxu0 0
    %1867 = vmatprep.subr.bf16.mxu0 0
    %1868 = vmatpush1.bf16.msra.mxu0 0
    %1869 = vmatprep.subr.bf16.mxu0 0
    %1870 = vmatpush1.bf16.msra.mxu0 %v1848
    %1871 = vmatprep.subr.bf16.mxu0 0
    %1872 = vmatpush1.bf16.msra.mxu0 %v1847
    %1873 = vmatprep.subr.bf16.mxu0 0
    %1874 = vmatpush2.bf16.msra.mxu0 0
    %1875 = vmatprep.subr.bf16.mxu0 0
    %1876 = vmatpush2.bf16.msra.mxu0 0
    %1877 = vmatprep.subr.bf16.mxu0 0
    %1878 = vmatpush2.bf16.msra.mxu0 0
    %1879 = vmatprep.subr.bf16.mxu0 0
    %1880 = vmatpush2.bf16.msra.mxu0 0
    %1881 = vmatprep.subr.bf16.mxu0 0
    %1882 = vmatpush2.bf16.msra.mxu0 0
    %1883 = vmatprep.subr.bf16.mxu0 0
    %1884 = vmatpush2.bf16.msra.mxu0 0
    %1885 = vmatprep.subr.bf16.mxu0 0
    %1886 = vmatpush2.bf16.msra.mxu0 0
    %1887 = vmatprep.subr.bf16.mxu0 0
    %1888 = vmatpush2.bf16.msra.mxu0 0
    %1889 = vmatprep.mubr.bf16.mxu0 0
    %1890 = vmatmul.mubr.bf16.gmra.mxu0 %v1852
    %v1891 = vpop.f32.mrf.mxu0
    %v1892 = vadd.f32 %v1741, %v1891
    %v1893 = vpop.f32.mrf.mxu0
    %v1894 = vpop.f32.mrf.mxu0
    %v1895 = vadd.f32 %v1742, %v1894
    %v1896 = vpop.f32.mrf.mxu0
    %1897 = vmatprep.mubr.bf16.mxu0 0
    %1898 = vmatmul.mubr.bf16.gmra.mxu0 %v1855
    %v1899 = vpop.f32.mrf.mxu0
    %v1900 = vadd.f32 %v1743, %v1899
    %v1901 = vpop.f32.mrf.mxu0
    %v1902 = vpop.f32.mrf.mxu0
    %v1903 = vadd.f32 %v1744, %v1902
    %v1904 = vpop.f32.mrf.mxu0
    %1905 = vdwg.mxu0
    %v1906 = vpack.c.bf16 %v1895, %v1892
    %v1907 = vpack.c.bf16 %v1903, %v1900
    %v1908 = vld [vmem:[%s5] sm:$0xf]
    %v1909 = vld [vmem:[%s5 + $0x4] sm:$0xf]
    %v1910 = vld [vmem:[%s5 + $0x8] sm:$0xf]
    %v1911 = vld [vmem:[%s5 + $0xc] sm:$0xf]
    %v1912 = vld [vmem:[%s6] sm:$0x1]
    %v1914 = vlaneseq
    %v1915 = vshrl.u32 %v1914, 7
    %v1916 = vsub.s32 0, %v1915
    %v1917 = vrot.slane %v1912, %v1916
    %v1923 = vunpack.c.l.b16 %v1908
    %v1924 = vunpack.c.l.b16 %v1909
    %v1925 = vunpack.c.l.b16 %v1910
    %v1926 = vunpack.c.l.b16 %v1911
    %v1927 = vpack.c.b16 %v1924, %v1923
    %v1928 = vpack.c.b16 %v1926, %v1925
    %v1932 = vsel %vm1473, %v1906, 0
    %v1935 = vsel %vm1473, %v1907, 0
    %1937 = vmatprep.subr.bf16.mxu0 0
    %1938 = vmatpush1.bf16.msra.mxu0 0
    %1939 = vmatprep.subr.bf16.mxu0 0
    %1940 = vmatpush1.bf16.msra.mxu0 0
    %1941 = vmatprep.subr.bf16.mxu0 0
    %1942 = vmatpush1.bf16.msra.mxu0 0
    %1943 = vmatprep.subr.bf16.mxu0 0
    %1944 = vmatpush1.bf16.msra.mxu0 0
    %1945 = vmatprep.subr.bf16.mxu0 0
    %1946 = vmatpush1.bf16.msra.mxu0 0
    %1947 = vmatprep.subr.bf16.mxu0 0
    %1948 = vmatpush1.bf16.msra.mxu0 0
    %1949 = vmatprep.subr.bf16.mxu0 0
    %1950 = vmatpush1.bf16.msra.mxu0 %v1928
    %1951 = vmatprep.subr.bf16.mxu0 0
    %1952 = vmatpush1.bf16.msra.mxu0 %v1927
    %1953 = vmatprep.subr.bf16.mxu0 0
    %1954 = vmatpush2.bf16.msra.mxu0 0
    %1955 = vmatprep.subr.bf16.mxu0 0
    %1956 = vmatpush2.bf16.msra.mxu0 0
    %1957 = vmatprep.subr.bf16.mxu0 0
    %1958 = vmatpush2.bf16.msra.mxu0 0
    %1959 = vmatprep.subr.bf16.mxu0 0
    %1960 = vmatpush2.bf16.msra.mxu0 0
    %1961 = vmatprep.subr.bf16.mxu0 0
    %1962 = vmatpush2.bf16.msra.mxu0 0
    %1963 = vmatprep.subr.bf16.mxu0 0
    %1964 = vmatpush2.bf16.msra.mxu0 0
    %1965 = vmatprep.subr.bf16.mxu0 0
    %1966 = vmatpush2.bf16.msra.mxu0 0
    %1967 = vmatprep.subr.bf16.mxu0 0
    %1968 = vmatpush2.bf16.msra.mxu0 0
    %1969 = vmatprep.mubr.bf16.mxu0 0
    %1970 = vmatmul.mubr.bf16.gmra.mxu0 %v1932
    %v1971 = vpop.f32.mrf.mxu0
    %v1972 = vadd.f32 %v1917, %v1971
    %v1973 = vpop.f32.mrf.mxu0
    %v1974 = vpop.f32.mrf.mxu0
    %v1975 = vadd.f32 %v1917, %v1974
    %v1976 = vpop.f32.mrf.mxu0
    %1977 = vmatprep.mubr.bf16.mxu0 0
    %1978 = vmatmul.mubr.bf16.gmra.mxu0 %v1935
    %v1979 = vpop.f32.mrf.mxu0
    %v1980 = vadd.f32 %v1917, %v1979
    %v1981 = vpop.f32.mrf.mxu0
    %v1982 = vpop.f32.mrf.mxu0
    %v1983 = vadd.f32 %v1917, %v1982
    %v1984 = vpop.f32.mrf.mxu0
    %1985 = vdwg.mxu0
    %v1986 = vmax.f32 %v1972, 0.0
    %v1987 = vmax.f32 %v1975, 0.0
    %v1988 = vmax.f32 %v1980, 0.0
    %v1989 = vmax.f32 %v1983, 0.0
    %v1990 = vpack.c.bf16 %v1987, %v1986
    %v1991 = vpack.c.bf16 %v1989, %v1988
    %v1992 = vld [vmem:[%s7] sm:$0xf]
    %v1993 = vld [vmem:[%s7 + $0x4] sm:$0xf]
    %v1994 = vld [vmem:[%s7 + $0x8] sm:$0xf]
    %v1995 = vld [vmem:[%s7 + $0xc] sm:$0xf]
    %v1996 = vld [vmem:[%s8] sm:$0x1]
    %v1998 = vlaneseq
    %v1999 = vshrl.u32 %v1998, 7
    %v2000 = vsub.s32 0, %v1999
    %v2001 = vrot.slane %v1996, %v2000
    %v2007 = vunpack.c.l.b16 %v1992
    %v2008 = vunpack.c.l.b16 %v1993
    %v2009 = vunpack.c.l.b16 %v1994
    %v2010 = vunpack.c.l.b16 %v1995
    %v2011 = vpack.c.b16 %v2008, %v2007
    %v2012 = vpack.c.b16 %v2010, %v2009
    %v2016 = vsel %vm1473, %v1990, 0
    %v2019 = vsel %vm1473, %v1991, 0
    %2021 = vmatprep.subr.bf16.mxu0 0
    %2022 = vmatpush1.bf16.msra.mxu0 0
    %2023 = vmatprep.subr.bf16.mxu0 0
    %2024 = vmatpush1.bf16.msra.mxu0 0
    %2025 = vmatprep.subr.bf16.mxu0 0
    %2026 = vmatpush1.bf16.msra.mxu0 0
    %2027 = vmatprep.subr.bf16.mxu0 0
    %2028 = vmatpush1.bf16.msra.mxu0 0
    %2029 = vmatprep.subr.bf16.mxu0 0
    %2030 = vmatpush1.bf16.msra.mxu0 0
    %2031 = vmatprep.subr.bf16.mxu0 0
    %2032 = vmatpush1.bf16.msra.mxu0 0
    %2033 = vmatprep.subr.bf16.mxu0 0
    %2034 = vmatpush1.bf16.msra.mxu0 %v2012
    %2035 = vmatprep.subr.bf16.mxu0 0
    %2036 = vmatpush1.bf16.msra.mxu0 %v2011
    %2037 = vmatprep.subr.bf16.mxu0 0
    %2038 = vmatpush2.bf16.msra.mxu0 0
    %2039 = vmatprep.subr.bf16.mxu0 0
    %2040 = vmatpush2.bf16.msra.mxu0 0
    %2041 = vmatprep.subr.bf16.mxu0 0
    %2042 = vmatpush2.bf16.msra.mxu0 0
    %2043 = vmatprep.subr.bf16.mxu0 0
    %2044 = vmatpush2.bf16.msra.mxu0 0
    %2045 = vmatprep.subr.bf16.mxu0 0
    %2046 = vmatpush2.bf16.msra.mxu0 0
    %2047 = vmatprep.subr.bf16.mxu0 0
    %2048 = vmatpush2.bf16.msra.mxu0 0
    %2049 = vmatprep.subr.bf16.mxu0 0
    %2050 = vmatpush2.bf16.msra.mxu0 0
    %2051 = vmatprep.subr.bf16.mxu0 0
    %2052 = vmatpush2.bf16.msra.mxu0 0
    %2053 = vmatprep.mubr.bf16.mxu0 0
    %2054 = vmatmul.mubr.bf16.gmra.mxu0 %v2016
    %v2055 = vpop.f32.mrf.mxu0
    %v2056 = vadd.f32 %v2001, %v2055
    %v2057 = vpop.f32.mrf.mxu0
    %v2058 = vpop.f32.mrf.mxu0
    %v2059 = vadd.f32 %v2001, %v2058
    %v2060 = vpop.f32.mrf.mxu0
    %2061 = vmatprep.mubr.bf16.mxu0 0
    %2062 = vmatmul.mubr.bf16.gmra.mxu0 %v2019
    %v2063 = vpop.f32.mrf.mxu0
    %v2064 = vadd.f32 %v2001, %v2063
    %v2065 = vpop.f32.mrf.mxu0
    %v2066 = vpop.f32.mrf.mxu0
    %v2067 = vadd.f32 %v2001, %v2066
    %v2068 = vpop.f32.mrf.mxu0
    %2069 = vdwg.mxu0
    %2070 = vst [vmem:[#allocation2] sm:$0xff] %v2056
    %2071 = vst [vmem:[#allocation2 + $0x8] sm:$0xff] %v2059
    %2072 = vst [vmem:[#allocation2 + $0x10] sm:$0xff] %v2064
    %2073 = vst [vmem:[#allocation2 + $0x18] sm:$0xff] %v2067
    // Predicated region
    $region38: #{tpu_custom_call.1} parent=1 // pred_check
      _
    $region39: #{tpu_custom_call.1} parent=1 // pred_check_branch
      %2075 = sbr.rel (0) target = $region41
    $region40: #{tpu_custom_call.1} parent=1 // pred_region
      %s2077 = ssub.s32 512, 512
      %2078 = vsyncadd [#allocation3], %s2077
      %s2079 = sshll.u32 [#allocation2], 4
      %s2080 = int_to_ptr.vmem [resolvable:$true] %s2079
      %2085 = dma.vmem_to_hbm [thread:$0]  %s2080, 512, %s9, [#allocation3], 128, 128, 8
    $region41: #{tpu_custom_call.1} parent=1 // pred_fallthru
      _
    // Predicated region
    $region42: #{tpu_custom_call.1} parent=1 // pred_check
      _
    $region43: #{tpu_custom_call.1} parent=1 // pred_check_branch
      %2087 = sbr.rel (0) target = $region45
    $region44: #{tpu_custom_call.1} parent=1 // pred_region
      %2088 = dma.done [#allocation3], 512
    $region45: #{tpu_custom_call.1} parent=1 // pred_fallthru
      _
    %2089 = vsyncpa [#allocation3], 1

// kernel: tpu_custom_call.1
$region0: #{tpu_custom_call.1}
  #allocation0 [shape = 'u32[]', space=smem, size = 0x4, offset = 0x4, fixed_abs, tag = 'smem constant byte address 0x4 - core index']
  #allocation1 [shape = 'u32[144,128]{1,0:T(1,128)}', space=vmem, size = 0x12000, scoped, tag = 'internal scratch']
  %s0 = inlined_call_operand.vmem [shape: f32[32,8,16], index: 0, kind: input, shape index: {}]
  %s1 = inlined_call_operand.vmem [shape: bf16[16,32], index: 1, kind: input, shape index: {}]
  %s2 = inlined_call_operand.vmem [shape: f32[1,32], index: 2, kind: input, shape index: {}]
  %s3 = inlined_call_operand.vmem [shape: bf16[32,32], index: 3, kind: input, shape index: {}]
  %s4 = inlined_call_operand.vmem [shape: f32[1,32], index: 4, kind: input, shape index: {}]
  %s5 = inlined_call_operand.vmem [shape: bf16[32,32], index: 5, kind: input, shape index: {}]
  %s6 = inlined_call_operand.vmem [shape: f32[1,32], index: 6, kind: input, shape index: {}]
  %s7 = inlined_call_operand.vmem [shape: bf16[32,128], index: 7, kind: input, shape index: {}]
  %s8 = inlined_call_operand.vmem [shape: f32[1,128], index: 8, kind: input, shape index: {}]
  %s9 = inlined_call_operand.hbm [shape: f32[32,128], index: 9, kind: output, shape index: {}]
  %s10 = sld [smem:[#allocation0]]
  $region46: #{tpu_custom_call.1} parent=0
    _
  %s12 = ssub.s32 1, %s10
  %s13 = scalar_select 0, %s12, %s10
  $region1: #{tpu_custom_call.1} parent=0
    #allocation2 [shape = 'u8[16384]{0}', space=vmem, size = 0x4000, scoped, tag = 'output window, operand 0, single buffered']
    #allocation3 [shape = 's32[1]{0}', space=sflag, size = 0x4, scoped, tag = 'scoped memory for tpu_custom_call.1']
    %14 = vsyncpa [#allocation3], 0
    // Predicated region
    $region2: #{tpu_custom_call.1} parent=1 // pred_check
      _
    $region3: #{tpu_custom_call.1} parent=1 // pred_check_branch
      %16 = sbr.rel (0) target = $region5
    $region4: #{tpu_custom_call.1} parent=1 // pred_region
      _
    $region5: #{tpu_custom_call.1} parent=1 // pred_fallthru
      _
    // Predicated region
    $region6: #{tpu_custom_call.1} parent=1 // pred_check
      _
    $region7: #{tpu_custom_call.1} parent=1 // pred_check_branch
      %18 = sbr.rel (0) target = $region9
    $region8: #{tpu_custom_call.1} parent=1 // pred_region
      _
    $region9: #{tpu_custom_call.1} parent=1 // pred_fallthru
      _
    // Predicated region
    $region10: #{tpu_custom_call.1} parent=1 // pred_check
      _
    $region11: #{tpu_custom_call.1} parent=1 // pred_check_branch
      %20 = sbr.rel (0) target = $region13
    $region12: #{tpu_custom_call.1} parent=1 // pred_region
      _
    $region13: #{tpu_custom_call.1} parent=1 // pred_fallthru
      _
    // Predicated region
    $region14: #{tpu_custom_call.1} parent=1 // pred_check
      _
    $region15: #{tpu_custom_call.1} parent=1 // pred_check_branch
      %22 = sbr.rel (0) target = $region17
    $region16: #{tpu_custom_call.1} parent=1 // pred_region
      _
    $region17: #{tpu_custom_call.1} parent=1 // pred_fallthru
      _
    // Predicated region
    $region18: #{tpu_custom_call.1} parent=1 // pred_check
      _
    $region19: #{tpu_custom_call.1} parent=1 // pred_check_branch
      %24 = sbr.rel (0) target = $region21
    $region20: #{tpu_custom_call.1} parent=1 // pred_region
      _
    $region21: #{tpu_custom_call.1} parent=1 // pred_fallthru
      _
    // Predicated region
    $region22: #{tpu_custom_call.1} parent=1 // pred_check
      _
    $region23: #{tpu_custom_call.1} parent=1 // pred_check_branch
      %26 = sbr.rel (0) target = $region25
    $region24: #{tpu_custom_call.1} parent=1 // pred_region
      _
    $region25: #{tpu_custom_call.1} parent=1 // pred_fallthru
      _
    // Predicated region
    $region26: #{tpu_custom_call.1} parent=1 // pred_check
      _
    $region27: #{tpu_custom_call.1} parent=1 // pred_check_branch
      %28 = sbr.rel (0) target = $region29
    $region28: #{tpu_custom_call.1} parent=1 // pred_region
      _
    $region29: #{tpu_custom_call.1} parent=1 // pred_fallthru
      _
    // Predicated region
    $region30: #{tpu_custom_call.1} parent=1 // pred_check
      _
    $region31: #{tpu_custom_call.1} parent=1 // pred_check_branch
      %30 = sbr.rel (0) target = $region33
    $region32: #{tpu_custom_call.1} parent=1 // pred_region
      _
    $region33: #{tpu_custom_call.1} parent=1 // pred_fallthru
      _
    // Predicated region
    $region34: #{tpu_custom_call.1} parent=1 // pred_check
      _
    $region35: #{tpu_custom_call.1} parent=1 // pred_check_branch
      %32 = sbr.rel (0) target = $region37
    $region36: #{tpu_custom_call.1} parent=1 // pred_region
      _
    $region37: #{tpu_custom_call.1} parent=1 // pred_fallthru
      _
    %v34 = vld [vmem:[%s0] sm:$0xff]
    %v35 = vld [vmem:[%s0 + $0x8] sm:$0xff]
    %v36 = vld [vmem:[%s0 + $0x10] sm:$0xff]
    %v37 = vld [vmem:[%s0 + $0x18] sm:$0xff]
    %v38 = vld [vmem:[%s0 + $0x20] sm:$0xff]
    %v39 = vld [vmem:[%s0 + $0x28] sm:$0xff]
    %v40 = vld [vmem:[%s0 + $0x30] sm:$0xff]
    %v41 = vld [vmem:[%s0 + $0x38] sm:$0xff]
    %v42 = vld [vmem:[%s0 + $0x40] sm:$0xff]
    %v43 = vld [vmem:[%s0 + $0x48] sm:$0xff]
    %v44 = vld [vmem:[%s0 + $0x50] sm:$0xff]
    %v45 = vld [vmem:[%s0 + $0x58] sm:$0xff]
    %v46 = vld [vmem:[%s0 + $0x60] sm:$0xff]
    %v47 = vld [vmem:[%s0 + $0x68] sm:$0xff]
    %v48 = vld [vmem:[%s0 + $0x70] sm:$0xff]
    %v49 = vld [vmem:[%s0 + $0x78] sm:$0xff]
    %v50 = vld [vmem:[%s0 + $0x80] sm:$0xff]
    %v51 = vld [vmem:[%s0 + $0x88] sm:$0xff]
    %v52 = vld [vmem:[%s0 + $0x90] sm:$0xff]
    %v53 = vld [vmem:[%s0 + $0x98] sm:$0xff]
    %v54 = vld [vmem:[%s0 + $0xa0] sm:$0xff]
    %v55 = vld [vmem:[%s0 + $0xa8] sm:$0xff]
    %v56 = vld [vmem:[%s0 + $0xb0] sm:$0xff]
    %v57 = vld [vmem:[%s0 + $0xb8] sm:$0xff]
    %v58 = vld [vmem:[%s0 + $0xc0] sm:$0xff]
    %v59 = vld [vmem:[%s0 + $0xc8] sm:$0xff]
    %v60 = vld [vmem:[%s0 + $0xd0] sm:$0xff]
    %v61 = vld [vmem:[%s0 + $0xd8] sm:$0xff]
    %v62 = vld [vmem:[%s0 + $0xe0] sm:$0xff]
    %v63 = vld [vmem:[%s0 + $0xe8] sm:$0xff]
    %v64 = vld [vmem:[%s0 + $0xf0] sm:$0xff]
    %v65 = vld [vmem:[%s0 + $0xf8] sm:$0xff]
    %vm66 = vcmp.ne.f32.partialorder %v34, 0.0
    %vm67 = vcmp.ne.f32.partialorder %v35, 0.0
    %vm68 = vcmp.ne.f32.partialorder %v36, 0.0
    %vm69 = vcmp.ne.f32.partialorder %v37, 0.0
    %vm70 = vcmp.ne.f32.partialorder %v38, 0.0
    %vm71 = vcmp.ne.f32.partialorder %v39, 0.0
    %vm72 = vcmp.ne.f32.partialorder %v40, 0.0
    %vm73 = vcmp.ne.f32.partialorder %v41, 0.0
    %vm74 = vcmp.ne.f32.partialorder %v42, 0.0
    %vm75 = vcmp.ne.f32.partialorder %v43, 0.0
    %vm76 = vcmp.ne.f32.partialorder %v44, 0.0
    %vm77 = vcmp.ne.f32.partialorder %v45, 0.0
    %vm78 = vcmp.ne.f32.partialorder %v46, 0.0
    %vm79 = vcmp.ne.f32.partialorder %v47, 0.0
    %vm80 = vcmp.ne.f32.partialorder %v48, 0.0
    %vm81 = vcmp.ne.f32.partialorder %v49, 0.0
    %vm82 = vcmp.ne.f32.partialorder %v50, 0.0
    %vm83 = vcmp.ne.f32.partialorder %v51, 0.0
    %vm84 = vcmp.ne.f32.partialorder %v52, 0.0
    %vm85 = vcmp.ne.f32.partialorder %v53, 0.0
    %vm86 = vcmp.ne.f32.partialorder %v54, 0.0
    %vm87 = vcmp.ne.f32.partialorder %v55, 0.0
    %vm88 = vcmp.ne.f32.partialorder %v56, 0.0
    %vm89 = vcmp.ne.f32.partialorder %v57, 0.0
    %vm90 = vcmp.ne.f32.partialorder %v58, 0.0
    %vm91 = vcmp.ne.f32.partialorder %v59, 0.0
    %vm92 = vcmp.ne.f32.partialorder %v60, 0.0
    %vm93 = vcmp.ne.f32.partialorder %v61, 0.0
    %vm94 = vcmp.ne.f32.partialorder %v62, 0.0
    %vm95 = vcmp.ne.f32.partialorder %v63, 0.0
    %vm96 = vcmp.ne.f32.partialorder %v64, 0.0
    %vm97 = vcmp.ne.f32.partialorder %v65, 0.0
    %v98 = vsel %vm66, 1.0, 0.0
    %v99 = vsel %vm67, 1.0, 0.0
    %v100 = vsel %vm68, 1.0, 0.0
    %v101 = vsel %vm69, 1.0, 0.0
    %v102 = vsel %vm70, 1.0, 0.0
    %v103 = vsel %vm71, 1.0, 0.0
    %v104 = vsel %vm72, 1.0, 0.0
    %v105 = vsel %vm73, 1.0, 0.0
    %v106 = vsel %vm74, 1.0, 0.0
    %v107 = vsel %vm75, 1.0, 0.0
    %v108 = vsel %vm76, 1.0, 0.0
    %v109 = vsel %vm77, 1.0, 0.0
    %v110 = vsel %vm78, 1.0, 0.0
    %v111 = vsel %vm79, 1.0, 0.0
    %v112 = vsel %vm80, 1.0, 0.0
    %v113 = vsel %vm81, 1.0, 0.0
    %v114 = vsel %vm82, 1.0, 0.0
    %v115 = vsel %vm83, 1.0, 0.0
    %v116 = vsel %vm84, 1.0, 0.0
    %v117 = vsel %vm85, 1.0, 0.0
    %v118 = vsel %vm86, 1.0, 0.0
    %v119 = vsel %vm87, 1.0, 0.0
    %v120 = vsel %vm88, 1.0, 0.0
    %v121 = vsel %vm89, 1.0, 0.0
    %v122 = vsel %vm90, 1.0, 0.0
    %v123 = vsel %vm91, 1.0, 0.0
    %v124 = vsel %vm92, 1.0, 0.0
    %v125 = vsel %vm93, 1.0, 0.0
    %v126 = vsel %vm94, 1.0, 0.0
    %v127 = vsel %vm95, 1.0, 0.0
    %v128 = vsel %vm96, 1.0, 0.0
    %v129 = vsel %vm97, 1.0, 0.0
    %vm130 = vcmask 130048
    %v131 = vsel %vm130, %v98, -inf
    %132 = vmax.xlane.f32.xlu0 %v131
    %v133 = vpop.xlane.xlu0 %132
    %v134 = vsel %vm130, %v99, -inf
    %135 = vmax.xlane.f32.xlu0 %v134
    %v136 = vpop.xlane.xlu0 %135
    %v137 = vsel %vm130, %v100, -inf
    %138 = vmax.xlane.f32.xlu0 %v137
    %v139 = vpop.xlane.xlu0 %138
    %v140 = vsel %vm130, %v101, -inf
    %141 = vmax.xlane.f32.xlu0 %v140
    %v142 = vpop.xlane.xlu0 %141
    %v143 = vsel %vm130, %v102, -inf
    %144 = vmax.xlane.f32.xlu0 %v143
    %v145 = vpop.xlane.xlu0 %144
    %v146 = vsel %vm130, %v103, -inf
    %147 = vmax.xlane.f32.xlu0 %v146
    %v148 = vpop.xlane.xlu0 %147
    %v149 = vsel %vm130, %v104, -inf
    %150 = vmax.xlane.f32.xlu0 %v149
    %v151 = vpop.xlane.xlu0 %150
    %v152 = vsel %vm130, %v105, -inf
    %153 = vmax.xlane.f32.xlu0 %v152
    %v154 = vpop.xlane.xlu0 %153
    %v155 = vsel %vm130, %v106, -inf
    %156 = vmax.xlane.f32.xlu0 %v155
    %v157 = vpop.xlane.xlu0 %156
    %v158 = vsel %vm130, %v107, -inf
    %159 = vmax.xlane.f32.xlu0 %v158
    %v160 = vpop.xlane.xlu0 %159
    %v161 = vsel %vm130, %v108, -inf
    %162 = vmax.xlane.f32.xlu0 %v161
    %v163 = vpop.xlane.xlu0 %162
    %v164 = vsel %vm130, %v109, -inf
    %165 = vmax.xlane.f32.xlu0 %v164
    %v166 = vpop.xlane.xlu0 %165
    %v167 = vsel %vm130, %v110, -inf
    %168 = vmax.xlane.f32.xlu0 %v167
    %v169 = vpop.xlane.xlu0 %168
    %v170 = vsel %vm130, %v111, -inf
    %171 = vmax.xlane.f32.xlu0 %v170
    %v172 = vpop.xlane.xlu0 %171
    %v173 = vsel %vm130, %v112, -inf
    %174 = vmax.xlane.f32.xlu0 %v173
    %v175 = vpop.xlane.xlu0 %174
    %v176 = vsel %vm130, %v113, -inf
    %177 = vmax.xlane.f32.xlu0 %v176
    %v178 = vpop.xlane.xlu0 %177
    %v179 = vsel %vm130, %v114, -inf
    %180 = vmax.xlane.f32.xlu0 %v179
    %v181 = vpop.xlane.xlu0 %180
    %v182 = vsel %vm130, %v115, -inf
    %183 = vmax.xlane.f32.xlu0 %v182
    %v184 = vpop.xlane.xlu0 %183
    %v185 = vsel %vm130, %v116, -inf
    %186 = vmax.xlane.f32.xlu0 %v185
    %v187 = vpop.xlane.xlu0 %186
    %v188 = vsel %vm130, %v117, -inf
    %189 = vmax.xlane.f32.xlu0 %v188
    %v190 = vpop.xlane.xlu0 %189
    %v191 = vsel %vm130, %v118, -inf
    %192 = vmax.xlane.f32.xlu0 %v191
    %v193 = vpop.xlane.xlu0 %192
    %v194 = vsel %vm130, %v119, -inf
    %195 = vmax.xlane.f32.xlu0 %v194
    %v196 = vpop.xlane.xlu0 %195
    %v197 = vsel %vm130, %v120, -inf
    %198 = vmax.xlane.f32.xlu0 %v197
    %v199 = vpop.xlane.xlu0 %198
    %v200 = vsel %vm130, %v121, -inf
    %201 = vmax.xlane.f32.xlu0 %v200
    %v202 = vpop.xlane.xlu0 %201
    %v203 = vsel %vm130, %v122, -inf
    %204 = vmax.xlane.f32.xlu0 %v203
    %v205 = vpop.xlane.xlu0 %204
    %v206 = vsel %vm130, %v123, -inf
    %207 = vmax.xlane.f32.xlu0 %v206
    %v208 = vpop.xlane.xlu0 %207
    %v209 = vsel %vm130, %v124, -inf
    %210 = vmax.xlane.f32.xlu0 %v209
    %v211 = vpop.xlane.xlu0 %210
    %v212 = vsel %vm130, %v125, -inf
    %213 = vmax.xlane.f32.xlu0 %v212
    %v214 = vpop.xlane.xlu0 %213
    %v215 = vsel %vm130, %v126, -inf
    %216 = vmax.xlane.f32.xlu0 %v215
    %v217 = vpop.xlane.xlu0 %216
    %v218 = vsel %vm130, %v127, -inf
    %219 = vmax.xlane.f32.xlu0 %v218
    %v220 = vpop.xlane.xlu0 %219
    %v221 = vsel %vm130, %v128, -inf
    %222 = vmax.xlane.f32.xlu0 %v221
    %v223 = vpop.xlane.xlu0 %222
    %v224 = vsel %vm130, %v129, -inf
    %225 = vmax.xlane.f32.xlu0 %v224
    %v226 = vpop.xlane.xlu0 %225
    %vm227 = vcmp.gt.f32.partialorder %v133, 0.0
    %vm228 = vcmp.gt.f32.partialorder %v136, 0.0
    %vm229 = vcmp.gt.f32.partialorder %v139, 0.0
    %vm230 = vcmp.gt.f32.partialorder %v142, 0.0
    %vm231 = vcmp.gt.f32.partialorder %v145, 0.0
    %vm232 = vcmp.gt.f32.partialorder %v148, 0.0
    %vm233 = vcmp.gt.f32.partialorder %v151, 0.0
    %vm234 = vcmp.gt.f32.partialorder %v154, 0.0
    %vm235 = vcmp.gt.f32.partialorder %v157, 0.0
    %vm236 = vcmp.gt.f32.partialorder %v160, 0.0
    %vm237 = vcmp.gt.f32.partialorder %v163, 0.0
    %vm238 = vcmp.gt.f32.partialorder %v166, 0.0
    %vm239 = vcmp.gt.f32.partialorder %v169, 0.0
    %vm240 = vcmp.gt.f32.partialorder %v172, 0.0
    %vm241 = vcmp.gt.f32.partialorder %v175, 0.0
    %vm242 = vcmp.gt.f32.partialorder %v178, 0.0
    %vm243 = vcmp.gt.f32.partialorder %v181, 0.0
    %vm244 = vcmp.gt.f32.partialorder %v184, 0.0
    %vm245 = vcmp.gt.f32.partialorder %v187, 0.0
    %vm246 = vcmp.gt.f32.partialorder %v190, 0.0
    %vm247 = vcmp.gt.f32.partialorder %v193, 0.0
    %vm248 = vcmp.gt.f32.partialorder %v196, 0.0
    %vm249 = vcmp.gt.f32.partialorder %v199, 0.0
    %vm250 = vcmp.gt.f32.partialorder %v202, 0.0
    %vm251 = vcmp.gt.f32.partialorder %v205, 0.0
    %vm252 = vcmp.gt.f32.partialorder %v208, 0.0
    %vm253 = vcmp.gt.f32.partialorder %v211, 0.0
    %vm254 = vcmp.gt.f32.partialorder %v214, 0.0
    %vm255 = vcmp.gt.f32.partialorder %v217, 0.0
    %vm256 = vcmp.gt.f32.partialorder %v220, 0.0
    %vm257 = vcmp.gt.f32.partialorder %v223, 0.0
    %vm258 = vcmp.gt.f32.partialorder %v226, 0.0
    %v259 = vsel %vm227, 1, 0
    %v260 = vsel %vm228, 1, 0
    %v261 = vsel %vm229, 1, 0
    %v262 = vsel %vm230, 1, 0
    %v263 = vsel %vm231, 1, 0
    %v264 = vsel %vm232, 1, 0
    %v265 = vsel %vm233, 1, 0
    %v266 = vsel %vm234, 1, 0
    %v267 = vsel %vm235, 1, 0
    %v268 = vsel %vm236, 1, 0
    %v269 = vsel %vm237, 1, 0
    %v270 = vsel %vm238, 1, 0
    %v271 = vsel %vm239, 1, 0
    %v272 = vsel %vm240, 1, 0
    %v273 = vsel %vm241, 1, 0
    %v274 = vsel %vm242, 1, 0
    %v275 = vsel %vm243, 1, 0
    %v276 = vsel %vm244, 1, 0
    %v277 = vsel %vm245, 1, 0
    %v278 = vsel %vm246, 1, 0
    %v279 = vsel %vm247, 1, 0
    %v280 = vsel %vm248, 1, 0
    %v281 = vsel %vm249, 1, 0
    %v282 = vsel %vm250, 1, 0
    %v283 = vsel %vm251, 1, 0
    %v284 = vsel %vm252, 1, 0
    %v285 = vsel %vm253, 1, 0
    %v286 = vsel %vm254, 1, 0
    %v287 = vsel %vm255, 1, 0
    %v288 = vsel %vm256, 1, 0
    %v289 = vsel %vm257, 1, 0
    %v290 = vsel %vm258, 1, 0
    %v291 = vcvt.s32.f32 %v259
    %v292 = vcvt.s32.f32 %v260
    %v293 = vcvt.s32.f32 %v261
    %v294 = vcvt.s32.f32 %v262
    %v295 = vcvt.s32.f32 %v263
    %v296 = vcvt.s32.f32 %v264
    %v297 = vcvt.s32.f32 %v265
    %v298 = vcvt.s32.f32 %v266
    %v299 = vcvt.s32.f32 %v267
    %v300 = vcvt.s32.f32 %v268
    %v301 = vcvt.s32.f32 %v269
    %v302 = vcvt.s32.f32 %v270
    %v303 = vcvt.s32.f32 %v271
    %v304 = vcvt.s32.f32 %v272
    %v305 = vcvt.s32.f32 %v273
    %v306 = vcvt.s32.f32 %v274
    %v307 = vcvt.s32.f32 %v275
    %v308 = vcvt.s32.f32 %v276
    %v309 = vcvt.s32.f32 %v277
    %v310 = vcvt.s32.f32 %v278
    %v311 = vcvt.s32.f32 %v279
    %v312 = vcvt.s32.f32 %v280
    %v313 = vcvt.s32.f32 %v281
    %v314 = vcvt.s32.f32 %v282
    %v315 = vcvt.s32.f32 %v283
    %v316 = vcvt.s32.f32 %v284
    %v317 = vcvt.s32.f32 %v285
    %v318 = vcvt.s32.f32 %v286
    %v319 = vcvt.s32.f32 %v287
    %v320 = vcvt.s32.f32 %v288
    %v321 = vcvt.s32.f32 %v289
    %v322 = vcvt.s32.f32 %v290
    %v355 = vlaneseq
    %v356 = vand.u32 %v355, 127
    %v357 = vlaneseq
    %v358 = vshrl.u32 %v357, 7
    %v359 = vsub.s32 %v356, %v358
    %v360 = vrot.slane %v291, %v359
    %v361 = vlaneseq
    %v362 = vshrl.u32 %v361, 7
    %v363 = vsub.s32 %v356, %v362
    %v364 = vrot.slane %v292, %v363
    %v365 = vlaneseq
    %v366 = vshrl.u32 %v365, 7
    %v367 = vsub.s32 %v356, %v366
    %v368 = vrot.slane %v293, %v367
    %v369 = vlaneseq
    %v370 = vshrl.u32 %v369, 7
    %v371 = vsub.s32 %v356, %v370
    %v372 = vrot.slane %v294, %v371
    %v373 = vlaneseq
    %v374 = vshrl.u32 %v373, 7
    %v375 = vsub.s32 %v356, %v374
    %v376 = vrot.slane %v295, %v375
    %v377 = vlaneseq
    %v378 = vshrl.u32 %v377, 7
    %v379 = vsub.s32 %v356, %v378
    %v380 = vrot.slane %v296, %v379
    %v381 = vlaneseq
    %v382 = vshrl.u32 %v381, 7
    %v383 = vsub.s32 %v356, %v382
    %v384 = vrot.slane %v297, %v383
    %v385 = vlaneseq
    %v386 = vshrl.u32 %v385, 7
    %v387 = vsub.s32 %v356, %v386
    %v388 = vrot.slane %v298, %v387
    %v389 = vlaneseq
    %v390 = vshrl.u32 %v389, 7
    %v391 = vsub.s32 %v356, %v390
    %v392 = vrot.slane %v299, %v391
    %v393 = vlaneseq
    %v394 = vshrl.u32 %v393, 7
    %v395 = vsub.s32 %v356, %v394
    %v396 = vrot.slane %v300, %v395
    %v397 = vlaneseq
    %v398 = vshrl.u32 %v397, 7
    %v399 = vsub.s32 %v356, %v398
    %v400 = vrot.slane %v301, %v399
    %v401 = vlaneseq
    %v402 = vshrl.u32 %v401, 7
    %v403 = vsub.s32 %v356, %v402
    %v404 = vrot.slane %v302, %v403
    %v405 = vlaneseq
    %v406 = vshrl.u32 %v405, 7
    %v407 = vsub.s32 %v356, %v406
    %v408 = vrot.slane %v303, %v407
    %v409 = vlaneseq
    %v410 = vshrl.u32 %v409, 7
    %v411 = vsub.s32 %v356, %v410
    %v412 = vrot.slane %v304, %v411
    %v413 = vlaneseq
    %v414 = vshrl.u32 %v413, 7
    %v415 = vsub.s32 %v356, %v414
    %v416 = vrot.slane %v305, %v415
    %v417 = vlaneseq
    %v418 = vshrl.u32 %v417, 7
    %v419 = vsub.s32 %v356, %v418
    %v420 = vrot.slane %v306, %v419
    %v421 = vlaneseq
    %v422 = vshrl.u32 %v421, 7
    %v423 = vsub.s32 %v356, %v422
    %v424 = vrot.slane %v307, %v423
    %v425 = vlaneseq
    %v426 = vshrl.u32 %v425, 7
    %v427 = vsub.s32 %v356, %v426
    %v428 = vrot.slane %v308, %v427
    %v429 = vlaneseq
    %v430 = vshrl.u32 %v429, 7
    %v431 = vsub.s32 %v356, %v430
    %v432 = vrot.slane %v309, %v431
    %v433 = vlaneseq
    %v434 = vshrl.u32 %v433, 7
    %v435 = vsub.s32 %v356, %v434
    %v436 = vrot.slane %v310, %v435
    %v437 = vlaneseq
    %v438 = vshrl.u32 %v437, 7
    %v439 = vsub.s32 %v356, %v438
    %v440 = vrot.slane %v311, %v439
    %v441 = vlaneseq
    %v442 = vshrl.u32 %v441, 7
    %v443 = vsub.s32 %v356, %v442
    %v444 = vrot.slane %v312, %v443
    %v445 = vlaneseq
    %v446 = vshrl.u32 %v445, 7
    %v447 = vsub.s32 %v356, %v446
    %v448 = vrot.slane %v313, %v447
    %v449 = vlaneseq
    %v450 = vshrl.u32 %v449, 7
    %v451 = vsub.s32 %v356, %v450
    %v452 = vrot.slane %v314, %v451
    %v453 = vlaneseq
    %v454 = vshrl.u32 %v453, 7
    %v455 = vsub.s32 %v356, %v454
    %v456 = vrot.slane %v315, %v455
    %v457 = vlaneseq
    %v458 = vshrl.u32 %v457, 7
    %v459 = vsub.s32 %v356, %v458
    %v460 = vrot.slane %v316, %v459
    %v461 = vlaneseq
    %v462 = vshrl.u32 %v461, 7
    %v463 = vsub.s32 %v356, %v462
    %v464 = vrot.slane %v317, %v463
    %v465 = vlaneseq
    %v466 = vshrl.u32 %v465, 7
    %v467 = vsub.s32 %v356, %v466
    %v468 = vrot.slane %v318, %v467
    %v469 = vlaneseq
    %v470 = vshrl.u32 %v469, 7
    %v471 = vsub.s32 %v356, %v470
    %v472 = vrot.slane %v319, %v471
    %v473 = vlaneseq
    %v474 = vshrl.u32 %v473, 7
    %v475 = vsub.s32 %v356, %v474
    %v476 = vrot.slane %v320, %v475
    %v477 = vlaneseq
    %v478 = vshrl.u32 %v477, 7
    %v479 = vsub.s32 %v356, %v478
    %v480 = vrot.slane %v321, %v479
    %v481 = vlaneseq
    %v482 = vshrl.u32 %v481, 7
    %v483 = vsub.s32 %v356, %v482
    %v484 = vrot.slane %v322, %v483
    %vm485 = vcmask 1041409
    %v486 = vsel %vm485, %v364, %v360
    %vm487 = vcmask 1042434
    %v488 = vsel %vm487, %v368, %v486
    %vm489 = vcmask 1043459
    %v490 = vsel %vm489, %v372, %v488
    %vm491 = vcmask 1044484
    %v492 = vsel %vm491, %v376, %v490
    %vm493 = vcmask 1045509
    %v494 = vsel %vm493, %v380, %v492
    %vm495 = vcmask 1046534
    %v496 = vsel %vm495, %v384, %v494
    %vm497 = vcmask 1047559
    %v498 = vsel %vm497, %v388, %v496
    %v499 = vsel %vm485, %v396, %v392
    %v500 = vsel %vm487, %v400, %v499
    %v501 = vsel %vm489, %v404, %v500
    %v502 = vsel %vm491, %v408, %v501
    %v503 = vsel %vm493, %v412, %v502
    %v504 = vsel %vm495, %v416, %v503
    %v505 = vsel %vm497, %v420, %v504
    %v506 = vsel %vm485, %v428, %v424
    %v507 = vsel %vm487, %v432, %v506
    %v508 = vsel %vm489, %v436, %v507
    %v509 = vsel %vm491, %v440, %v508
    %v510 = vsel %vm493, %v444, %v509
    %v511 = vsel %vm495, %v448, %v510
    %v512 = vsel %vm497, %v452, %v511
    %v513 = vsel %vm485, %v460, %v456
    %v514 = vsel %vm487, %v464, %v513
    %v515 = vsel %vm489, %v468, %v514
    %v516 = vsel %vm491, %v472, %v515
    %v517 = vsel %vm493, %v476, %v516
    %v518 = vsel %vm495, %v480, %v517
    %v519 = vsel %vm497, %v484, %v518
    %vm524 = vcmask 64512
    %v525 = vsel %vm524, %v498, 0.0
    %526 = vadd.xlane.f32.xlu0 %v525
    %v527 = vpop.xlane.xlu0 %526
    %v528 = vsel %vm524, %v505, 0.0
    %529 = vadd.xlane.f32.xlu0 %v528
    %v530 = vpop.xlane.xlu0 %529
    %v531 = vsel %vm524, %v512, 0.0
    %532 = vadd.xlane.f32.xlu0 %v531
    %v533 = vpop.xlane.xlu0 %532
    %v534 = vsel %vm524, %v519, 0.0
    %535 = vadd.xlane.f32.xlu0 %v534
    %v536 = vpop.xlane.xlu0 %535
    %v537 = vmax.f32 %v527, 1.0
    %v538 = vmax.f32 %v530, 1.0
    %v539 = vmax.f32 %v533, 1.0
    %v540 = vmax.f32 %v536, 1.0
    %v541 = vrcp.pop %v537
    %v542 = vrcp.pop %v538
    %v543 = vrcp.pop %v539
    %v544 = vrcp.pop %v540
    %v549 = vlaneseq
    %v550 = vshrl.u32 %v549, 7
    %v551 = vsub.s32 0, %v550
    %v552 = vrot.slane %v541, %v551
    %v553 = vlaneseq
    %v554 = vshrl.u32 %v553, 7
    %v555 = vsub.s32 1, %v554
    %v556 = vrot.slane %v541, %v555
    %v557 = vlaneseq
    %v558 = vshrl.u32 %v557, 7
    %v559 = vsub.s32 2, %v558
    %v560 = vrot.slane %v541, %v559
    %v561 = vlaneseq
    %v562 = vshrl.u32 %v561, 7
    %v563 = vsub.s32 3, %v562
    %v564 = vrot.slane %v541, %v563
    %v565 = vlaneseq
    %v566 = vshrl.u32 %v565, 7
    %v567 = vsub.s32 4, %v566
    %v568 = vrot.slane %v541, %v567
    %v569 = vlaneseq
    %v570 = vshrl.u32 %v569, 7
    %v571 = vsub.s32 5, %v570
    %v572 = vrot.slane %v541, %v571
    %v573 = vlaneseq
    %v574 = vshrl.u32 %v573, 7
    %v575 = vsub.s32 6, %v574
    %v576 = vrot.slane %v541, %v575
    %v577 = vlaneseq
    %v578 = vshrl.u32 %v577, 7
    %v579 = vsub.s32 7, %v578
    %v580 = vrot.slane %v541, %v579
    %v581 = vlaneseq
    %v582 = vshrl.u32 %v581, 7
    %v583 = vsub.s32 0, %v582
    %v584 = vrot.slane %v542, %v583
    %v585 = vlaneseq
    %v586 = vshrl.u32 %v585, 7
    %v587 = vsub.s32 1, %v586
    %v588 = vrot.slane %v542, %v587
    %v589 = vlaneseq
    %v590 = vshrl.u32 %v589, 7
    %v591 = vsub.s32 2, %v590
    %v592 = vrot.slane %v542, %v591
    %v593 = vlaneseq
    %v594 = vshrl.u32 %v593, 7
    %v595 = vsub.s32 3, %v594
    %v596 = vrot.slane %v542, %v595
    %v597 = vlaneseq
    %v598 = vshrl.u32 %v597, 7
    %v599 = vsub.s32 4, %v598
    %v600 = vrot.slane %v542, %v599
    %v601 = vlaneseq
    %v602 = vshrl.u32 %v601, 7
    %v603 = vsub.s32 5, %v602
    %v604 = vrot.slane %v542, %v603
    %v605 = vlaneseq
    %v606 = vshrl.u32 %v605, 7
    %v607 = vsub.s32 6, %v606
    %v608 = vrot.slane %v542, %v607
    %v609 = vlaneseq
    %v610 = vshrl.u32 %v609, 7
    %v611 = vsub.s32 7, %v610
    %v612 = vrot.slane %v542, %v611
    %v613 = vlaneseq
    %v614 = vshrl.u32 %v613, 7
    %v615 = vsub.s32 0, %v614
    %v616 = vrot.slane %v543, %v615
    %v617 = vlaneseq
    %v618 = vshrl.u32 %v617, 7
    %v619 = vsub.s32 1, %v618
    %v620 = vrot.slane %v543, %v619
    %v621 = vlaneseq
    %v622 = vshrl.u32 %v621, 7
    %v623 = vsub.s32 2, %v622
    %v624 = vrot.slane %v543, %v623
    %v625 = vlaneseq
    %v626 = vshrl.u32 %v625, 7
    %v627 = vsub.s32 3, %v626
    %v628 = vrot.slane %v543, %v627
    %v629 = vlaneseq
    %v630 = vshrl.u32 %v629, 7
    %v631 = vsub.s32 4, %v630
    %v632 = vrot.slane %v543, %v631
    %v633 = vlaneseq
    %v634 = vshrl.u32 %v633, 7
    %v635 = vsub.s32 5, %v634
    %v636 = vrot.slane %v543, %v635
    %v637 = vlaneseq
    %v638 = vshrl.u32 %v637, 7
    %v639 = vsub.s32 6, %v638
    %v640 = vrot.slane %v543, %v639
    %v641 = vlaneseq
    %v642 = vshrl.u32 %v641, 7
    %v643 = vsub.s32 7, %v642
    %v644 = vrot.slane %v543, %v643
    %v645 = vlaneseq
    %v646 = vshrl.u32 %v645, 7
    %v647 = vsub.s32 0, %v646
    %v648 = vrot.slane %v544, %v647
    %v649 = vlaneseq
    %v650 = vshrl.u32 %v649, 7
    %v651 = vsub.s32 1, %v650
    %v652 = vrot.slane %v544, %v651
    %v653 = vlaneseq
    %v654 = vshrl.u32 %v653, 7
    %v655 = vsub.s32 2, %v654
    %v656 = vrot.slane %v544, %v655
    %v657 = vlaneseq
    %v658 = vshrl.u32 %v657, 7
    %v659 = vsub.s32 3, %v658
    %v660 = vrot.slane %v544, %v659
    %v661 = vlaneseq
    %v662 = vshrl.u32 %v661, 7
    %v663 = vsub.s32 4, %v662
    %v664 = vrot.slane %v544, %v663
    %v665 = vlaneseq
    %v666 = vshrl.u32 %v665, 7
    %v667 = vsub.s32 5, %v666
    %v668 = vrot.slane %v544, %v667
    %v669 = vlaneseq
    %v670 = vshrl.u32 %v669, 7
    %v671 = vsub.s32 6, %v670
    %v672 = vrot.slane %v544, %v671
    %v673 = vlaneseq
    %v674 = vshrl.u32 %v673, 7
    %v675 = vsub.s32 7, %v674
    %v676 = vrot.slane %v544, %v675
    %v709 = vmul.f32 %v291, %v552
    %v710 = vmul.f32 %v292, %v556
    %v711 = vmul.f32 %v293, %v560
    %v712 = vmul.f32 %v294, %v564
    %v713 = vmul.f32 %v295, %v568
    %v714 = vmul.f32 %v296, %v572
    %v715 = vmul.f32 %v297, %v576
    %v716 = vmul.f32 %v298, %v580
    %v717 = vmul.f32 %v299, %v584
    %v718 = vmul.f32 %v300, %v588
    %v719 = vmul.f32 %v301, %v592
    %v720 = vmul.f32 %v302, %v596
    %v721 = vmul.f32 %v303, %v600
    %v722 = vmul.f32 %v304, %v604
    %v723 = vmul.f32 %v305, %v608
    %v724 = vmul.f32 %v306, %v612
    %v725 = vmul.f32 %v307, %v616
    %v726 = vmul.f32 %v308, %v620
    %v727 = vmul.f32 %v309, %v624
    %v728 = vmul.f32 %v310, %v628
    %v729 = vmul.f32 %v311, %v632
    %v730 = vmul.f32 %v312, %v636
    %v731 = vmul.f32 %v313, %v640
    %v732 = vmul.f32 %v314, %v644
    %v733 = vmul.f32 %v315, %v648
    %v734 = vmul.f32 %v316, %v652
    %v735 = vmul.f32 %v317, %v656
    %v736 = vmul.f32 %v318, %v660
    %v737 = vmul.f32 %v319, %v664
    %v738 = vmul.f32 %v320, %v668
    %v739 = vmul.f32 %v321, %v672
    %v740 = vmul.f32 %v322, %v676
    %773 = vset.pattern.permute.xlu0 0
    %774 = vperm.xlu0 %773, %v709
    %v775 = vpop.permute.xlu0 %774
    %776 = vset.pattern.permute.xlu0 0
    %777 = vperm.xlu0 %776, %v710
    %v778 = vpop.permute.xlu0 %777
    %779 = vset.pattern.permute.xlu0 0
    %780 = vperm.xlu0 %779, %v711
    %v781 = vpop.permute.xlu0 %780
    %782 = vset.pattern.permute.xlu0 0
    %783 = vperm.xlu0 %782, %v712
    %v784 = vpop.permute.xlu0 %783
    %785 = vset.pattern.permute.xlu0 0
    %786 = vperm.xlu0 %785, %v713
    %v787 = vpop.permute.xlu0 %786
    %788 = vset.pattern.permute.xlu0 0
    %789 = vperm.xlu0 %788, %v714
    %v790 = vpop.permute.xlu0 %789
    %791 = vset.pattern.permute.xlu0 0
    %792 = vperm.xlu0 %791, %v715
    %v793 = vpop.permute.xlu0 %792
    %794 = vset.pattern.permute.xlu0 0
    %795 = vperm.xlu0 %794, %v716
    %v796 = vpop.permute.xlu0 %795
    %797 = vset.pattern.permute.xlu0 0
    %798 = vperm.xlu0 %797, %v717
    %v799 = vpop.permute.xlu0 %798
    %800 = vset.pattern.permute.xlu0 0
    %801 = vperm.xlu0 %800, %v718
    %v802 = vpop.permute.xlu0 %801
    %803 = vset.pattern.permute.xlu0 0
    %804 = vperm.xlu0 %803, %v719
    %v805 = vpop.permute.xlu0 %804
    %806 = vset.pattern.permute.xlu0 0
    %807 = vperm.xlu0 %806, %v720
    %v808 = vpop.permute.xlu0 %807
    %809 = vset.pattern.permute.xlu0 0
    %810 = vperm.xlu0 %809, %v721
    %v811 = vpop.permute.xlu0 %810
    %812 = vset.pattern.permute.xlu0 0
    %813 = vperm.xlu0 %812, %v722
    %v814 = vpop.permute.xlu0 %813
    %815 = vset.pattern.permute.xlu0 0
    %816 = vperm.xlu0 %815, %v723
    %v817 = vpop.permute.xlu0 %816
    %818 = vset.pattern.permute.xlu0 0
    %819 = vperm.xlu0 %818, %v724
    %v820 = vpop.permute.xlu0 %819
    %821 = vset.pattern.permute.xlu0 0
    %822 = vperm.xlu0 %821, %v725
    %v823 = vpop.permute.xlu0 %822
    %824 = vset.pattern.permute.xlu0 0
    %825 = vperm.xlu0 %824, %v726
    %v826 = vpop.permute.xlu0 %825
    %827 = vset.pattern.permute.xlu0 0
    %828 = vperm.xlu0 %827, %v727
    %v829 = vpop.permute.xlu0 %828
    %830 = vset.pattern.permute.xlu0 0
    %831 = vperm.xlu0 %830, %v728
    %v832 = vpop.permute.xlu0 %831
    %833 = vset.pattern.permute.xlu0 0
    %834 = vperm.xlu0 %833, %v729
    %v835 = vpop.permute.xlu0 %834
    %836 = vset.pattern.permute.xlu0 0
    %837 = vperm.xlu0 %836, %v730
    %v838 = vpop.permute.xlu0 %837
    %839 = vset.pattern.permute.xlu0 0
    %840 = vperm.xlu0 %839, %v731
    %v841 = vpop.permute.xlu0 %840
    %842 = vset.pattern.permute.xlu0 0
    %843 = vperm.xlu0 %842, %v732
    %v844 = vpop.permute.xlu0 %843
    %845 = vset.pattern.permute.xlu0 0
    %846 = vperm.xlu0 %845, %v733
    %v847 = vpop.permute.xlu0 %846
    %848 = vset.pattern.permute.xlu0 0
    %849 = vperm.xlu0 %848, %v734
    %v850 = vpop.permute.xlu0 %849
    %851 = vset.pattern.permute.xlu0 0
    %852 = vperm.xlu0 %851, %v735
    %v853 = vpop.permute.xlu0 %852
    %854 = vset.pattern.permute.xlu0 0
    %855 = vperm.xlu0 %854, %v736
    %v856 = vpop.permute.xlu0 %855
    %857 = vset.pattern.permute.xlu0 0
    %858 = vperm.xlu0 %857, %v737
    %v859 = vpop.permute.xlu0 %858
    %860 = vset.pattern.permute.xlu0 0
    %861 = vperm.xlu0 %860, %v738
    %v862 = vpop.permute.xlu0 %861
    %863 = vset.pattern.permute.xlu0 0
    %864 = vperm.xlu0 %863, %v739
    %v865 = vpop.permute.xlu0 %864
    %866 = vset.pattern.permute.xlu0 0
    %867 = vperm.xlu0 %866, %v740
    %v868 = vpop.permute.xlu0 %867
    %v869 = vlaneseq
    %v870 = vshrl.u32 %v869, 7
    %v871 = vsub.s32 %v356, %v870
    %v872 = vrot.slane %v775, %v871
    %v873 = vlaneseq
    %v874 = vshrl.u32 %v873, 7
    %v875 = vsub.s32 %v356, %v874
    %v876 = vrot.slane %v778, %v875
    %v877 = vlaneseq
    %v878 = vshrl.u32 %v877, 7
    %v879 = vsub.s32 %v356, %v878
    %v880 = vrot.slane %v781, %v879
    %v881 = vlaneseq
    %v882 = vshrl.u32 %v881, 7
    %v883 = vsub.s32 %v356, %v882
    %v884 = vrot.slane %v784, %v883
    %v885 = vlaneseq
    %v886 = vshrl.u32 %v885, 7
    %v887 = vsub.s32 %v356, %v886
    %v888 = vrot.slane %v787, %v887
    %v889 = vlaneseq
    %v890 = vshrl.u32 %v889, 7
    %v891 = vsub.s32 %v356, %v890
    %v892 = vrot.slane %v790, %v891
    %v893 = vlaneseq
    %v894 = vshrl.u32 %v893, 7
    %v895 = vsub.s32 %v356, %v894
    %v896 = vrot.slane %v793, %v895
    %v897 = vlaneseq
    %v898 = vshrl.u32 %v897, 7
    %v899 = vsub.s32 %v356, %v898
    %v900 = vrot.slane %v796, %v899
    %v901 = vlaneseq
    %v902 = vshrl.u32 %v901, 7
    %v903 = vsub.s32 %v356, %v902
    %v904 = vrot.slane %v799, %v903
    %v905 = vlaneseq
    %v906 = vshrl.u32 %v905, 7
    %v907 = vsub.s32 %v356, %v906
    %v908 = vrot.slane %v802, %v907
    %v909 = vlaneseq
    %v910 = vshrl.u32 %v909, 7
    %v911 = vsub.s32 %v356, %v910
    %v912 = vrot.slane %v805, %v911
    %v913 = vlaneseq
    %v914 = vshrl.u32 %v913, 7
    %v915 = vsub.s32 %v356, %v914
    %v916 = vrot.slane %v808, %v915
    %v917 = vlaneseq
    %v918 = vshrl.u32 %v917, 7
    %v919 = vsub.s32 %v356, %v918
    %v920 = vrot.slane %v811, %v919
    %v921 = vlaneseq
    %v922 = vshrl.u32 %v921, 7
    %v923 = vsub.s32 %v356, %v922
    %v924 = vrot.slane %v814, %v923
    %v925 = vlaneseq
    %v926 = vshrl.u32 %v925, 7
    %v927 = vsub.s32 %v356, %v926
    %v928 = vrot.slane %v817, %v927
    %v929 = vlaneseq
    %v930 = vshrl.u32 %v929, 7
    %v931 = vsub.s32 %v356, %v930
    %v932 = vrot.slane %v820, %v931
    %v933 = vlaneseq
    %v934 = vshrl.u32 %v933, 7
    %v935 = vsub.s32 %v356, %v934
    %v936 = vrot.slane %v823, %v935
    %v937 = vlaneseq
    %v938 = vshrl.u32 %v937, 7
    %v939 = vsub.s32 %v356, %v938
    %v940 = vrot.slane %v826, %v939
    %v941 = vlaneseq
    %v942 = vshrl.u32 %v941, 7
    %v943 = vsub.s32 %v356, %v942
    %v944 = vrot.slane %v829, %v943
    %v945 = vlaneseq
    %v946 = vshrl.u32 %v945, 7
    %v947 = vsub.s32 %v356, %v946
    %v948 = vrot.slane %v832, %v947
    %v949 = vlaneseq
    %v950 = vshrl.u32 %v949, 7
    %v951 = vsub.s32 %v356, %v950
    %v952 = vrot.slane %v835, %v951
    %v953 = vlaneseq
    %v954 = vshrl.u32 %v953, 7
    %v955 = vsub.s32 %v356, %v954
    %v956 = vrot.slane %v838, %v955
    %v957 = vlaneseq
    %v958 = vshrl.u32 %v957, 7
    %v959 = vsub.s32 %v356, %v958
    %v960 = vrot.slane %v841, %v959
    %v961 = vlaneseq
    %v962 = vshrl.u32 %v961, 7
    %v963 = vsub.s32 %v356, %v962
    %v964 = vrot.slane %v844, %v963
    %v965 = vlaneseq
    %v966 = vshrl.u32 %v965, 7
    %v967 = vsub.s32 %v356, %v966
    %v968 = vrot.slane %v847, %v967
    %v969 = vlaneseq
    %v970 = vshrl.u32 %v969, 7
    %v971 = vsub.s32 %v356, %v970
    %v972 = vrot.slane %v850, %v971
    %v973 = vlaneseq
    %v974 = vshrl.u32 %v973, 7
    %v975 = vsub.s32 %v356, %v974
    %v976 = vrot.slane %v853, %v975
    %v977 = vlaneseq
    %v978 = vshrl.u32 %v977, 7
    %v979 = vsub.s32 %v356, %v978
    %v980 = vrot.slane %v856, %v979
    %v981 = vlaneseq
    %v982 = vshrl.u32 %v981, 7
    %v983 = vsub.s32 %v356, %v982
    %v984 = vrot.slane %v859, %v983
    %v985 = vlaneseq
    %v986 = vshrl.u32 %v985, 7
    %v987 = vsub.s32 %v356, %v986
    %v988 = vrot.slane %v862, %v987
    %v989 = vlaneseq
    %v990 = vshrl.u32 %v989, 7
    %v991 = vsub.s32 %v356, %v990
    %v992 = vrot.slane %v865, %v991
    %v993 = vlaneseq
    %v994 = vshrl.u32 %v993, 7
    %v995 = vsub.s32 %v356, %v994
    %v996 = vrot.slane %v868, %v995
    %v997 = vsel %vm485, %v876, %v872
    %v998 = vsel %vm487, %v880, %v997
    %v999 = vsel %vm489, %v884, %v998
    %v1000 = vsel %vm491, %v888, %v999
    %v1001 = vsel %vm493, %v892, %v1000
    %v1002 = vsel %vm495, %v896, %v1001
    %v1003 = vsel %vm497, %v900, %v1002
    %v1004 = vsel %vm485, %v908, %v904
    %v1005 = vsel %vm487, %v912, %v1004
    %v1006 = vsel %vm489, %v916, %v1005
    %v1007 = vsel %vm491, %v920, %v1006
    %v1008 = vsel %vm493, %v924, %v1007
    %v1009 = vsel %vm495, %v928, %v1008
    %v1010 = vsel %vm497, %v932, %v1009
    %v1011 = vsel %vm485, %v940, %v936
    %v1012 = vsel %vm487, %v944, %v1011
    %v1013 = vsel %vm489, %v948, %v1012
    %v1014 = vsel %vm491, %v952, %v1013
    %v1015 = vsel %vm493, %v956, %v1014
    %v1016 = vsel %vm495, %v960, %v1015
    %v1017 = vsel %vm497, %v964, %v1016
    %v1018 = vsel %vm485, %v972, %v968
    %v1019 = vsel %vm487, %v976, %v1018
    %v1020 = vsel %vm489, %v980, %v1019
    %v1021 = vsel %vm491, %v984, %v1020
    %v1022 = vsel %vm493, %v988, %v1021
    %v1023 = vsel %vm495, %v992, %v1022
    %v1024 = vsel %vm497, %v996, %v1023
    %v1029 = vsel %vm524, %v1003, 0.0
    %1030 = vadd.xlane.f32.xlu0 %v1029
    %v1031 = vpop.xlane.xlu0 %1030
    %v1032 = vsel %vm524, %v1010, 0.0
    %1033 = vadd.xlane.f32.xlu0 %v1032
    %v1034 = vpop.xlane.xlu0 %1033
    %v1035 = vsel %vm524, %v1017, 0.0
    %1036 = vadd.xlane.f32.xlu0 %v1035
    %v1037 = vpop.xlane.xlu0 %1036
    %v1038 = vsel %vm524, %v1024, 0.0
    %1039 = vadd.xlane.f32.xlu0 %v1038
    %v1040 = vpop.xlane.xlu0 %1039
    %v1041 = vpack.c.bf16 %v34, %v34
    %v1042 = vpack.c.bf16 %v35, %v35
    %v1043 = vpack.c.bf16 %v36, %v36
    %v1044 = vpack.c.bf16 %v37, %v37
    %v1045 = vpack.c.bf16 %v38, %v38
    %v1046 = vpack.c.bf16 %v39, %v39
    %v1047 = vpack.c.bf16 %v40, %v40
    %v1048 = vpack.c.bf16 %v41, %v41
    %v1049 = vpack.c.bf16 %v42, %v42
    %v1050 = vpack.c.bf16 %v43, %v43
    %v1051 = vpack.c.bf16 %v44, %v44
    %v1052 = vpack.c.bf16 %v45, %v45
    %v1053 = vpack.c.bf16 %v46, %v46
    %v1054 = vpack.c.bf16 %v47, %v47
    %v1055 = vpack.c.bf16 %v48, %v48
    %v1056 = vpack.c.bf16 %v49, %v49
    %v1057 = vpack.c.bf16 %v50, %v50
    %v1058 = vpack.c.bf16 %v51, %v51
    %v1059 = vpack.c.bf16 %v52, %v52
    %v1060 = vpack.c.bf16 %v53, %v53
    %v1061 = vpack.c.bf16 %v54, %v54
    %v1062 = vpack.c.bf16 %v55, %v55
    %v1063 = vpack.c.bf16 %v56, %v56
    %v1064 = vpack.c.bf16 %v57, %v57
    %v1065 = vpack.c.bf16 %v58, %v58
    %v1066 = vpack.c.bf16 %v59, %v59
    %v1067 = vpack.c.bf16 %v60, %v60
    %v1068 = vpack.c.bf16 %v61, %v61
    %v1069 = vpack.c.bf16 %v62, %v62
    %v1070 = vpack.c.bf16 %v63, %v63
    %v1071 = vpack.c.bf16 %v64, %v64
    %v1072 = vpack.c.bf16 %v65, %v65
    %v1073 = vld [vmem:[%s1] sm:$0xf]
    %v1074 = vld [vmem:[%s1 + $0x4] sm:$0xf]
    %v1075 = vld [vmem:[%s2] sm:$0x1]
    %v1077 = vlaneseq
    %v1078 = vshrl.u32 %v1077, 7
    %v1079 = vsub.s32 0, %v1078
    %v1080 = vrot.slane %v1075, %v1079
    %v1114 = vunpack.c.l.b16 %v1041
    %v1115 = vunpack.c.l.b16 %v1042
    %v1116 = vunpack.c.l.b16 %v1043
    %v1117 = vunpack.c.l.b16 %v1044
    %v1118 = vunpack.c.l.b16 %v1045
    %v1119 = vunpack.c.l.b16 %v1046
    %v1120 = vunpack.c.l.b16 %v1047
    %v1121 = vunpack.c.l.b16 %v1048
    %v1122 = vunpack.c.l.b16 %v1049
    %v1123 = vunpack.c.l.b16 %v1050
    %v1124 = vunpack.c.l.b16 %v1051
    %v1125 = vunpack.c.l.b16 %v1052
    %v1126 = vunpack.c.l.b16 %v1053
    %v1127 = vunpack.c.l.b16 %v1054
    %v1128 = vunpack.c.l.b16 %v1055
    %v1129 = vunpack.c.l.b16 %v1056
    %v1130 = vunpack.c.l.b16 %v1057
    %v1131 = vunpack.c.l.b16 %v1058
    %v1132 = vunpack.c.l.b16 %v1059
    %v1133 = vunpack.c.l.b16 %v1060
    %v1134 = vunpack.c.l.b16 %v1061
    %v1135 = vunpack.c.l.b16 %v1062
    %v1136 = vunpack.c.l.b16 %v1063
    %v1137 = vunpack.c.l.b16 %v1064
    %v1138 = vunpack.c.l.b16 %v1065
    %v1139 = vunpack.c.l.b16 %v1066
    %v1140 = vunpack.c.l.b16 %v1067
    %v1141 = vunpack.c.l.b16 %v1068
    %v1142 = vunpack.c.l.b16 %v1069
    %v1143 = vunpack.c.l.b16 %v1070
    %v1144 = vunpack.c.l.b16 %v1071
    %v1145 = vunpack.c.l.b16 %v1072
    %v1146 = vpack.c.b16 %v1115, %v1114
    %v1147 = vpack.c.b16 %v1117, %v1116
    %v1148 = vpack.c.b16 %v1119, %v1118
    %v1149 = vpack.c.b16 %v1121, %v1120
    %v1150 = vpack.c.b16 %v1123, %v1122
    %v1151 = vpack.c.b16 %v1125, %v1124
    %v1152 = vpack.c.b16 %v1127, %v1126
    %v1153 = vpack.c.b16 %v1129, %v1128
    %v1154 = vpack.c.b16 %v1131, %v1130
    %v1155 = vpack.c.b16 %v1133, %v1132
    %v1156 = vpack.c.b16 %v1135, %v1134
    %v1157 = vpack.c.b16 %v1137, %v1136
    %v1158 = vpack.c.b16 %v1139, %v1138
    %v1159 = vpack.c.b16 %v1141, %v1140
    %v1160 = vpack.c.b16 %v1143, %v1142
    %v1161 = vpack.c.b16 %v1145, %v1144
    %v1164 = vunpack.c.l.b16 %v1073
    %v1165 = vunpack.c.l.b16 %v1074
    %v1166 = vpack.c.b16 %v1165, %v1164
    %v1169 = vsel %vm130, %v1146, 0
    %v1172 = vsel %vm130, %v1147, 0
    %v1175 = vsel %vm130, %v1148, 0
    %v1178 = vsel %vm130, %v1149, 0
    %v1181 = vsel %vm130, %v1150, 0
    %v1184 = vsel %vm130, %v1151, 0
    %v1187 = vsel %vm130, %v1152, 0
    %v1190 = vsel %vm130, %v1153, 0
    %v1193 = vsel %vm130, %v1154, 0
    %v1196 = vsel %vm130, %v1155, 0
    %v1199 = vsel %vm130, %v1156, 0
    %v1202 = vsel %vm130, %v1157, 0
    %v1205 = vsel %vm130, %v1158, 0
    %v1208 = vsel %vm130, %v1159, 0
    %v1211 = vsel %vm130, %v1160, 0
    %v1214 = vsel %vm130, %v1161, 0
    %1216 = vmatprep.subr.bf16.mxu0 0
    %1217 = vmatpush1.bf16.msra.mxu0 0
    %1218 = vmatprep.subr.bf16.mxu0 0
    %1219 = vmatpush1.bf16.msra.mxu0 0
    %1220 = vmatprep.subr.bf16.mxu0 0
    %1221 = vmatpush1.bf16.msra.mxu0 0
    %1222 = vmatprep.subr.bf16.mxu0 0
    %1223 = vmatpush1.bf16.msra.mxu0 0
    %1224 = vmatprep.subr.bf16.mxu0 0
    %1225 = vmatpush1.bf16.msra.mxu0 0
    %1226 = vmatprep.subr.bf16.mxu0 0
    %1227 = vmatpush1.bf16.msra.mxu0 0
    %1228 = vmatprep.subr.bf16.mxu0 0
    %1229 = vmatpush1.bf16.msra.mxu0 0
    %1230 = vmatprep.subr.bf16.mxu0 0
    %1231 = vmatpush1.bf16.msra.mxu0 %v1166
    %1232 = vmatprep.subr.bf16.mxu0 0
    %1233 = vmatpush2.bf16.msra.mxu0 0
    %1234 = vmatprep.subr.bf16.mxu0 0
    %1235 = vmatpush2.bf16.msra.mxu0 0
    %1236 = vmatprep.subr.bf16.mxu0 0
    %1237 = vmatpush2.bf16.msra.mxu0 0
    %1238 = vmatprep.subr.bf16.mxu0 0
    %1239 = vmatpush2.bf16.msra.mxu0 0
    %1240 = vmatprep.subr.bf16.mxu0 0
    %1241 = vmatpush2.bf16.msra.mxu0 0
    %1242 = vmatprep.subr.bf16.mxu0 0
    %1243 = vmatpush2.bf16.msra.mxu0 0
    %1244 = vmatprep.subr.bf16.mxu0 0
    %1245 = vmatpush2.bf16.msra.mxu0 0
    %1246 = vmatprep.subr.bf16.mxu0 0
    %1247 = vmatpush2.bf16.msra.mxu0 0
    %1248 = vmatprep.mubr.bf16.mxu0 0
    %1249 = vmatmul.mubr.bf16.gmra.mxu0 %v1169
    %v1250 = vpop.f32.mrf.mxu0
    %v1251 = vadd.f32 %v1080, %v1250
    %v1252 = vpop.f32.mrf.mxu0
    %v1253 = vpop.f32.mrf.mxu0
    %v1254 = vadd.f32 %v1080, %v1253
    %v1255 = vpop.f32.mrf.mxu0
    %1256 = vmatprep.mubr.bf16.mxu0 0
    %1257 = vmatmul.mubr.bf16.gmra.mxu0 %v1172
    %v1258 = vpop.f32.mrf.mxu0
    %v1259 = vadd.f32 %v1080, %v1258
    %v1260 = vpop.f32.mrf.mxu0
    %v1261 = vpop.f32.mrf.mxu0
    %v1262 = vadd.f32 %v1080, %v1261
    %v1263 = vpop.f32.mrf.mxu0
    %1264 = vmatprep.mubr.bf16.mxu0 0
    %1265 = vmatmul.mubr.bf16.gmra.mxu0 %v1175
    %v1266 = vpop.f32.mrf.mxu0
    %v1267 = vadd.f32 %v1080, %v1266
    %v1268 = vpop.f32.mrf.mxu0
    %v1269 = vpop.f32.mrf.mxu0
    %v1270 = vadd.f32 %v1080, %v1269
    %v1271 = vpop.f32.mrf.mxu0
    %1272 = vmatprep.mubr.bf16.mxu0 0
    %1273 = vmatmul.mubr.bf16.gmra.mxu0 %v1178
    %v1274 = vpop.f32.mrf.mxu0
    %v1275 = vadd.f32 %v1080, %v1274
    %v1276 = vpop.f32.mrf.mxu0
    %v1277 = vpop.f32.mrf.mxu0
    %v1278 = vadd.f32 %v1080, %v1277
    %v1279 = vpop.f32.mrf.mxu0
    %1280 = vmatprep.mubr.bf16.mxu0 0
    %1281 = vmatmul.mubr.bf16.gmra.mxu0 %v1181
    %v1282 = vpop.f32.mrf.mxu0
    %v1283 = vadd.f32 %v1080, %v1282
    %v1284 = vpop.f32.mrf.mxu0
    %v1285 = vpop.f32.mrf.mxu0
    %v1286 = vadd.f32 %v1080, %v1285
    %v1287 = vpop.f32.mrf.mxu0
    %1288 = vmatprep.mubr.bf16.mxu0 0
    %1289 = vmatmul.mubr.bf16.gmra.mxu0 %v1184
    %v1290 = vpop.f32.mrf.mxu0
    %v1291 = vadd.f32 %v1080, %v1290
    %v1292 = vpop.f32.mrf.mxu0
    %v1293 = vpop.f32.mrf.mxu0
    %v1294 = vadd.f32 %v1080, %v1293
    %v1295 = vpop.f32.mrf.mxu0
    %1296 = vmatprep.mubr.bf16.mxu0 0
    %1297 = vmatmul.mubr.bf16.gmra.mxu0 %v1187
    %v1298 = vpop.f32.mrf.mxu0
    %v1299 = vadd.f32 %v1080, %v1298
    %v1300 = vpop.f32.mrf.mxu0
    %v1301 = vpop.f32.mrf.mxu0
    %v1302 = vadd.f32 %v1080, %v1301
    %v1303 = vpop.f32.mrf.mxu0
    %1304 = vmatprep.mubr.bf16.mxu0 0
    %1305 = vmatmul.mubr.bf16.gmra.mxu0 %v1190
    %v1306 = vpop.f32.mrf.mxu0
    %v1307 = vadd.f32 %v1080, %v1306
    %v1308 = vpop.f32.mrf.mxu0
    %v1309 = vpop.f32.mrf.mxu0
    %v1310 = vadd.f32 %v1080, %v1309
    %v1311 = vpop.f32.mrf.mxu0
    %1312 = vmatprep.mubr.bf16.mxu0 0
    %1313 = vmatmul.mubr.bf16.gmra.mxu0 %v1193
    %v1314 = vpop.f32.mrf.mxu0
    %v1315 = vadd.f32 %v1080, %v1314
    %v1316 = vpop.f32.mrf.mxu0
    %v1317 = vpop.f32.mrf.mxu0
    %v1318 = vadd.f32 %v1080, %v1317
    %v1319 = vpop.f32.mrf.mxu0
    %1320 = vmatprep.mubr.bf16.mxu0 0
    %1321 = vmatmul.mubr.bf16.gmra.mxu0 %v1196
    %v1322 = vpop.f32.mrf.mxu0
    %v1323 = vadd.f32 %v1080, %v1322
    %v1324 = vpop.f32.mrf.mxu0
    %v1325 = vpop.f32.mrf.mxu0
    %v1326 = vadd.f32 %v1080, %v1325
    %v1327 = vpop.f32.mrf.mxu0
    %1328 = vmatprep.mubr.bf16.mxu0 0
    %1329 = vmatmul.mubr.bf16.gmra.mxu0 %v1199
    %v1330 = vpop.f32.mrf.mxu0
    %v1331 = vadd.f32 %v1080, %v1330
    %v1332 = vpop.f32.mrf.mxu0
    %v1333 = vpop.f32.mrf.mxu0
    %v1334 = vadd.f32 %v1080, %v1333
    %v1335 = vpop.f32.mrf.mxu0
    %1336 = vmatprep.mubr.bf16.mxu0 0
    %1337 = vmatmul.mubr.bf16.gmra.mxu0 %v1202
    %v1338 = vpop.f32.mrf.mxu0
    %v1339 = vadd.f32 %v1080, %v1338
    %v1340 = vpop.f32.mrf.mxu0
    %v1341 = vpop.f32.mrf.mxu0
    %v1342 = vadd.f32 %v1080, %v1341
    %v1343 = vpop.f32.mrf.mxu0
    %1344 = vmatprep.mubr.bf16.mxu0 0
    %1345 = vmatmul.mubr.bf16.gmra.mxu0 %v1205
    %v1346 = vpop.f32.mrf.mxu0
    %v1347 = vadd.f32 %v1080, %v1346
    %v1348 = vpop.f32.mrf.mxu0
    %v1349 = vpop.f32.mrf.mxu0
    %v1350 = vadd.f32 %v1080, %v1349
    %v1351 = vpop.f32.mrf.mxu0
    %1352 = vmatprep.mubr.bf16.mxu0 0
    %1353 = vmatmul.mubr.bf16.gmra.mxu0 %v1208
    %v1354 = vpop.f32.mrf.mxu0
    %v1355 = vadd.f32 %v1080, %v1354
    %v1356 = vpop.f32.mrf.mxu0
    %v1357 = vpop.f32.mrf.mxu0
    %v1358 = vadd.f32 %v1080, %v1357
    %v1359 = vpop.f32.mrf.mxu0
    %1360 = vmatprep.mubr.bf16.mxu0 0
    %1361 = vmatmul.mubr.bf16.gmra.mxu0 %v1211
    %v1362 = vpop.f32.mrf.mxu0
    %v1363 = vadd.f32 %v1080, %v1362
    %v1364 = vpop.f32.mrf.mxu0
    %v1365 = vpop.f32.mrf.mxu0
    %v1366 = vadd.f32 %v1080, %v1365
    %v1367 = vpop.f32.mrf.mxu0
    %1368 = vmatprep.mubr.bf16.mxu0 0
    %1369 = vmatmul.mubr.bf16.gmra.mxu0 %v1214
    %v1370 = vpop.f32.mrf.mxu0
    %v1371 = vadd.f32 %v1080, %v1370
    %v1372 = vpop.f32.mrf.mxu0
    %v1373 = vpop.f32.mrf.mxu0
    %v1374 = vadd.f32 %v1080, %v1373
    %v1375 = vpop.f32.mrf.mxu0
    %1376 = vdwg.mxu0
    %v1377 = vmax.f32 %v1251, 0.0
    %v1378 = vmax.f32 %v1254, 0.0
    %v1379 = vmax.f32 %v1259, 0.0
    %v1380 = vmax.f32 %v1262, 0.0
    %v1381 = vmax.f32 %v1267, 0.0
    %v1382 = vmax.f32 %v1270, 0.0
    %v1383 = vmax.f32 %v1275, 0.0
    %v1384 = vmax.f32 %v1278, 0.0
    %v1385 = vmax.f32 %v1283, 0.0
    %v1386 = vmax.f32 %v1286, 0.0
    %v1387 = vmax.f32 %v1291, 0.0
    %v1388 = vmax.f32 %v1294, 0.0
    %v1389 = vmax.f32 %v1299, 0.0
    %v1390 = vmax.f32 %v1302, 0.0
    %v1391 = vmax.f32 %v1307, 0.0
    %v1392 = vmax.f32 %v1310, 0.0
    %v1393 = vmax.f32 %v1315, 0.0
    %v1394 = vmax.f32 %v1318, 0.0
    %v1395 = vmax.f32 %v1323, 0.0
    %v1396 = vmax.f32 %v1326, 0.0
    %v1397 = vmax.f32 %v1331, 0.0
    %v1398 = vmax.f32 %v1334, 0.0
    %v1399 = vmax.f32 %v1339, 0.0
    %v1400 = vmax.f32 %v1342, 0.0
    %v1401 = vmax.f32 %v1347, 0.0
    %v1402 = vmax.f32 %v1350, 0.0
    %v1403 = vmax.f32 %v1355, 0.0
    %v1404 = vmax.f32 %v1358, 0.0
    %v1405 = vmax.f32 %v1363, 0.0
    %v1406 = vmax.f32 %v1366, 0.0
    %v1407 = vmax.f32 %v1371, 0.0
    %v1408 = vmax.f32 %v1374, 0.0
    %v1441 = vmul.f32 %v1377, %v775
    %v1442 = vmul.f32 %v1378, %v778
    %v1443 = vmul.f32 %v1379, %v781
    %v1444 = vmul.f32 %v1380, %v784
    %v1445 = vmul.f32 %v1381, %v787
    %v1446 = vmul.f32 %v1382, %v790
    %v1447 = vmul.f32 %v1383, %v793
    %v1448 = vmul.f32 %v1384, %v796
    %v1449 = vmul.f32 %v1385, %v799
    %v1450 = vmul.f32 %v1386, %v802
    %v1451 = vmul.f32 %v1387, %v805
    %v1452 = vmul.f32 %v1388, %v808
    %v1453 = vmul.f32 %v1389, %v811
    %v1454 = vmul.f32 %v1390, %v814
    %v1455 = vmul.f32 %v1391, %v817
    %v1456 = vmul.f32 %v1392, %v820
    %v1457 = vmul.f32 %v1393, %v823
    %v1458 = vmul.f32 %v1394, %v826
    %v1459 = vmul.f32 %v1395, %v829
    %v1460 = vmul.f32 %v1396, %v832
    %v1461 = vmul.f32 %v1397, %v835
    %v1462 = vmul.f32 %v1398, %v838
    %v1463 = vmul.f32 %v1399, %v841
    %v1464 = vmul.f32 %v1400, %v844
    %v1465 = vmul.f32 %v1401, %v847
    %v1466 = vmul.f32 %v1402, %v850
    %v1467 = vmul.f32 %v1403, %v853
    %v1468 = vmul.f32 %v1404, %v856
    %v1469 = vmul.f32 %v1405, %v859
    %v1470 = vmul.f32 %v1406, %v862
    %v1471 = vmul.f32 %v1407, %v865
    %v1472 = vmul.f32 %v1408, %v868
    %vm1473 = vcmask 261120
    %v1474 = vsel %vm1473, %v1441, 0.0
    %v1475 = vrot.slane %v1474, 4
    %v1476 = vadd.f32 %v1474, %v1475
    %v1477 = vrot.slane %v1476, 2
    %v1478 = vadd.f32 %v1476, %v1477
    %v1479 = vrot.slane %v1478, 1
    %v1480 = vadd.f32 %v1478, %v1479
    %v1481 = vsel %vm1473, %v1442, 0.0
    %v1482 = vrot.slane %v1481, 4
    %v1483 = vadd.f32 %v1481, %v1482
    %v1484 = vrot.slane %v1483, 2
    %v1485 = vadd.f32 %v1483, %v1484
    %v1486 = vrot.slane %v1485, 1
    %v1487 = vadd.f32 %v1485, %v1486
    %v1488 = vsel %vm1473, %v1443, 0.0
    %v1489 = vrot.slane %v1488, 4
    %v1490 = vadd.f32 %v1488, %v1489
    %v1491 = vrot.slane %v1490, 2
    %v1492 = vadd.f32 %v1490, %v1491
    %v1493 = vrot.slane %v1492, 1
    %v1494 = vadd.f32 %v1492, %v1493
    %v1495 = vsel %vm1473, %v1444, 0.0
    %v1496 = vrot.slane %v1495, 4
    %v1497 = vadd.f32 %v1495, %v1496
    %v1498 = vrot.slane %v1497, 2
    %v1499 = vadd.f32 %v1497, %v1498
    %v1500 = vrot.slane %v1499, 1
    %v1501 = vadd.f32 %v1499, %v1500
    %v1502 = vsel %vm1473, %v1445, 0.0
    %v1503 = vrot.slane %v1502, 4
    %v1504 = vadd.f32 %v1502, %v1503
    %v1505 = vrot.slane %v1504, 2
    %v1506 = vadd.f32 %v1504, %v1505
    %v1507 = vrot.slane %v1506, 1
    %v1508 = vadd.f32 %v1506, %v1507
    %v1509 = vsel %vm1473, %v1446, 0.0
    %v1510 = vrot.slane %v1509, 4
    %v1511 = vadd.f32 %v1509, %v1510
    %v1512 = vrot.slane %v1511, 2
    %v1513 = vadd.f32 %v1511, %v1512
    %v1514 = vrot.slane %v1513, 1
    %v1515 = vadd.f32 %v1513, %v1514
    %v1516 = vsel %vm1473, %v1447, 0.0
    %v1517 = vrot.slane %v1516, 4
    %v1518 = vadd.f32 %v1516, %v1517
    %v1519 = vrot.slane %v1518, 2
    %v1520 = vadd.f32 %v1518, %v1519
    %v1521 = vrot.slane %v1520, 1
    %v1522 = vadd.f32 %v1520, %v1521
    %v1523 = vsel %vm1473, %v1448, 0.0
    %v1524 = vrot.slane %v1523, 4
    %v1525 = vadd.f32 %v1523, %v1524
    %v1526 = vrot.slane %v1525, 2
    %v1527 = vadd.f32 %v1525, %v1526
    %v1528 = vrot.slane %v1527, 1
    %v1529 = vadd.f32 %v1527, %v1528
    %v1530 = vsel %vm1473, %v1449, 0.0
    %v1531 = vrot.slane %v1530, 4
    %v1532 = vadd.f32 %v1530, %v1531
    %v1533 = vrot.slane %v1532, 2
    %v1534 = vadd.f32 %v1532, %v1533
    %v1535 = vrot.slane %v1534, 1
    %v1536 = vadd.f32 %v1534, %v1535
    %v1537 = vsel %vm1473, %v1450, 0.0
    %v1538 = vrot.slane %v1537, 4
    %v1539 = vadd.f32 %v1537, %v1538
    %v1540 = vrot.slane %v1539, 2
    %v1541 = vadd.f32 %v1539, %v1540
    %v1542 = vrot.slane %v1541, 1
    %v1543 = vadd.f32 %v1541, %v1542
    %v1544 = vsel %vm1473, %v1451, 0.0
    %v1545 = vrot.slane %v1544, 4
    %v1546 = vadd.f32 %v1544, %v1545
    %v1547 = vrot.slane %v1546, 2
    %v1548 = vadd.f32 %v1546, %v1547
    %v1549 = vrot.slane %v1548, 1
    %v1550 = vadd.f32 %v1548, %v1549
    %v1551 = vsel %vm1473, %v1452, 0.0
    %v1552 = vrot.slane %v1551, 4
    %v1553 = vadd.f32 %v1551, %v1552
    %v1554 = vrot.slane %v1553, 2
    %v1555 = vadd.f32 %v1553, %v1554
    %v1556 = vrot.slane %v1555, 1
    %v1557 = vadd.f32 %v1555, %v1556
    %v1558 = vsel %vm1473, %v1453, 0.0
    %v1559 = vrot.slane %v1558, 4
    %v1560 = vadd.f32 %v1558, %v1559
    %v1561 = vrot.slane %v1560, 2
    %v1562 = vadd.f32 %v1560, %v1561
    %v1563 = vrot.slane %v1562, 1
    %v1564 = vadd.f32 %v1562, %v1563
    %v1565 = vsel %vm1473, %v1454, 0.0
    %v1566 = vrot.slane %v1565, 4
    %v1567 = vadd.f32 %v1565, %v1566
    %v1568 = vrot.slane %v1567, 2
    %v1569 = vadd.f32 %v1567, %v1568
    %v1570 = vrot.slane %v1569, 1
    %v1571 = vadd.f32 %v1569, %v1570
    %v1572 = vsel %vm1473, %v1455, 0.0
    %v1573 = vrot.slane %v1572, 4
    %v1574 = vadd.f32 %v1572, %v1573
    %v1575 = vrot.slane %v1574, 2
    %v1576 = vadd.f32 %v1574, %v1575
    %v1577 = vrot.slane %v1576, 1
    %v1578 = vadd.f32 %v1576, %v1577
    %v1579 = vsel %vm1473, %v1456, 0.0
    %v1580 = vrot.slane %v1579, 4
    %v1581 = vadd.f32 %v1579, %v1580
    %v1582 = vrot.slane %v1581, 2
    %v1583 = vadd.f32 %v1581, %v1582
    %v1584 = vrot.slane %v1583, 1
    %v1585 = vadd.f32 %v1583, %v1584
    %v1586 = vsel %vm1473, %v1457, 0.0
    %v1587 = vrot.slane %v1586, 4
    %v1588 = vadd.f32 %v1586, %v1587
    %v1589 = vrot.slane %v1588, 2
    %v1590 = vadd.f32 %v1588, %v1589
    %v1591 = vrot.slane %v1590, 1
    %v1592 = vadd.f32 %v1590, %v1591
    %v1593 = vsel %vm1473, %v1458, 0.0
    %v1594 = vrot.slane %v1593, 4
    %v1595 = vadd.f32 %v1593, %v1594
    %v1596 = vrot.slane %v1595, 2
    %v1597 = vadd.f32 %v1595, %v1596
    %v1598 = vrot.slane %v1597, 1
    %v1599 = vadd.f32 %v1597, %v1598
    %v1600 = vsel %vm1473, %v1459, 0.0
    %v1601 = vrot.slane %v1600, 4
    %v1602 = vadd.f32 %v1600, %v1601
    %v1603 = vrot.slane %v1602, 2
    %v1604 = vadd.f32 %v1602, %v1603
    %v1605 = vrot.slane %v1604, 1
    %v1606 = vadd.f32 %v1604, %v1605
    %v1607 = vsel %vm1473, %v1460, 0.0
    %v1608 = vrot.slane %v1607, 4
    %v1609 = vadd.f32 %v1607, %v1608
    %v1610 = vrot.slane %v1609, 2
    %v1611 = vadd.f32 %v1609, %v1610
    %v1612 = vrot.slane %v1611, 1
    %v1613 = vadd.f32 %v1611, %v1612
    %v1614 = vsel %vm1473, %v1461, 0.0
    %v1615 = vrot.slane %v1614, 4
    %v1616 = vadd.f32 %v1614, %v1615
    %v1617 = vrot.slane %v1616, 2
    %v1618 = vadd.f32 %v1616, %v1617
    %v1619 = vrot.slane %v1618, 1
    %v1620 = vadd.f32 %v1618, %v1619
    %v1621 = vsel %vm1473, %v1462, 0.0
    %v1622 = vrot.slane %v1621, 4
    %v1623 = vadd.f32 %v1621, %v1622
    %v1624 = vrot.slane %v1623, 2
    %v1625 = vadd.f32 %v1623, %v1624
    %v1626 = vrot.slane %v1625, 1
    %v1627 = vadd.f32 %v1625, %v1626
    %v1628 = vsel %vm1473, %v1463, 0.0
    %v1629 = vrot.slane %v1628, 4
    %v1630 = vadd.f32 %v1628, %v1629
    %v1631 = vrot.slane %v1630, 2
    %v1632 = vadd.f32 %v1630, %v1631
    %v1633 = vrot.slane %v1632, 1
    %v1634 = vadd.f32 %v1632, %v1633
    %v1635 = vsel %vm1473, %v1464, 0.0
    %v1636 = vrot.slane %v1635, 4
    %v1637 = vadd.f32 %v1635, %v1636
    %v1638 = vrot.slane %v1637, 2
    %v1639 = vadd.f32 %v1637, %v1638
    %v1640 = vrot.slane %v1639, 1
    %v1641 = vadd.f32 %v1639, %v1640
    %v1642 = vsel %vm1473, %v1465, 0.0
    %v1643 = vrot.slane %v1642, 4
    %v1644 = vadd.f32 %v1642, %v1643
    %v1645 = vrot.slane %v1644, 2
    %v1646 = vadd.f32 %v1644, %v1645
    %v1647 = vrot.slane %v1646, 1
    %v1648 = vadd.f32 %v1646, %v1647
    %v1649 = vsel %vm1473, %v1466, 0.0
    %v1650 = vrot.slane %v1649, 4
    %v1651 = vadd.f32 %v1649, %v1650
    %v1652 = vrot.slane %v1651, 2
    %v1653 = vadd.f32 %v1651, %v1652
    %v1654 = vrot.slane %v1653, 1
    %v1655 = vadd.f32 %v1653, %v1654
    %v1656 = vsel %vm1473, %v1467, 0.0
    %v1657 = vrot.slane %v1656, 4
    %v1658 = vadd.f32 %v1656, %v1657
    %v1659 = vrot.slane %v1658, 2
    %v1660 = vadd.f32 %v1658, %v1659
    %v1661 = vrot.slane %v1660, 1
    %v1662 = vadd.f32 %v1660, %v1661
    %v1663 = vsel %vm1473, %v1468, 0.0
    %v1664 = vrot.slane %v1663, 4
    %v1665 = vadd.f32 %v1663, %v1664
    %v1666 = vrot.slane %v1665, 2
    %v1667 = vadd.f32 %v1665, %v1666
    %v1668 = vrot.slane %v1667, 1
    %v1669 = vadd.f32 %v1667, %v1668
    %v1670 = vsel %vm1473, %v1469, 0.0
    %v1671 = vrot.slane %v1670, 4
    %v1672 = vadd.f32 %v1670, %v1671
    %v1673 = vrot.slane %v1672, 2
    %v1674 = vadd.f32 %v1672, %v1673
    %v1675 = vrot.slane %v1674, 1
    %v1676 = vadd.f32 %v1674, %v1675
    %v1677 = vsel %vm1473, %v1470, 0.0
    %v1678 = vrot.slane %v1677, 4
    %v1679 = vadd.f32 %v1677, %v1678
    %v1680 = vrot.slane %v1679, 2
    %v1681 = vadd.f32 %v1679, %v1680
    %v1682 = vrot.slane %v1681, 1
    %v1683 = vadd.f32 %v1681, %v1682
    %v1684 = vsel %vm1473, %v1471, 0.0
    %v1685 = vrot.slane %v1684, 4
    %v1686 = vadd.f32 %v1684, %v1685
    %v1687 = vrot.slane %v1686, 2
    %v1688 = vadd.f32 %v1686, %v1687
    %v1689 = vrot.slane %v1688, 1
    %v1690 = vadd.f32 %v1688, %v1689
    %v1691 = vsel %vm1473, %v1472, 0.0
    %v1692 = vrot.slane %v1691, 4
    %v1693 = vadd.f32 %v1691, %v1692
    %v1694 = vrot.slane %v1693, 2
    %v1695 = vadd.f32 %v1693, %v1694
    %v1696 = vrot.slane %v1695, 1
    %v1697 = vadd.f32 %v1695, %v1696
    %v1698 = vpack.c.bf16 %v1480, %v1480
    %v1699 = vpack.c.bf16 %v1487, %v1487
    %v1700 = vpack.c.bf16 %v1494, %v1494
    %v1701 = vpack.c.bf16 %v1501, %v1501
    %v1702 = vpack.c.bf16 %v1508, %v1508
    %v1703 = vpack.c.bf16 %v1515, %v1515
    %v1704 = vpack.c.bf16 %v1522, %v1522
    %v1705 = vpack.c.bf16 %v1529, %v1529
    %v1706 = vpack.c.bf16 %v1536, %v1536
    %v1707 = vpack.c.bf16 %v1543, %v1543
    %v1708 = vpack.c.bf16 %v1550, %v1550
    %v1709 = vpack.c.bf16 %v1557, %v1557
    %v1710 = vpack.c.bf16 %v1564, %v1564
    %v1711 = vpack.c.bf16 %v1571, %v1571
    %v1712 = vpack.c.bf16 %v1578, %v1578
    %v1713 = vpack.c.bf16 %v1585, %v1585
    %v1714 = vpack.c.bf16 %v1592, %v1592
    %v1715 = vpack.c.bf16 %v1599, %v1599
    %v1716 = vpack.c.bf16 %v1606, %v1606
    %v1717 = vpack.c.bf16 %v1613, %v1613
    %v1718 = vpack.c.bf16 %v1620, %v1620
    %v1719 = vpack.c.bf16 %v1627, %v1627
    %v1720 = vpack.c.bf16 %v1634, %v1634
    %v1721 = vpack.c.bf16 %v1641, %v1641
    %v1722 = vpack.c.bf16 %v1648, %v1648
    %v1723 = vpack.c.bf16 %v1655, %v1655
    %v1724 = vpack.c.bf16 %v1662, %v1662
    %v1725 = vpack.c.bf16 %v1669, %v1669
    %v1726 = vpack.c.bf16 %v1676, %v1676
    %v1727 = vpack.c.bf16 %v1683, %v1683
    %v1728 = vpack.c.bf16 %v1690, %v1690
    %v1729 = vpack.c.bf16 %v1697, %v1697
    %v1730 = vld [vmem:[%s3] sm:$0xf]
    %v1731 = vld [vmem:[%s3 + $0x4] sm:$0xf]
    %v1732 = vld [vmem:[%s3 + $0x8] sm:$0xf]
    %v1733 = vld [vmem:[%s3 + $0xc] sm:$0xf]
    %v1734 = vld [vmem:[%s4] sm:$0x1]
    %v1736 = vlaneseq
    %v1737 = vshrl.u32 %v1736, 7
    %v1738 = vsub.s32 0, %v1737
    %v1739 = vrot.slane %v1734, %v1738
    %v1741 = vmul.f32 %v1031, %v1739
    %v1742 = vmul.f32 %v1034, %v1739
    %v1743 = vmul.f32 %v1037, %v1739
    %v1744 = vmul.f32 %v1040, %v1739
    %v1777 = vunpack.c.l.b16 %v1698
    %v1778 = vunpack.c.l.b16 %v1699
    %v1779 = vunpack.c.l.b16 %v1700
    %v1780 = vunpack.c.l.b16 %v1701
    %v1781 = vunpack.c.l.b16 %v1702
    %v1782 = vunpack.c.l.b16 %v1703
    %v1783 = vunpack.c.l.b16 %v1704
    %v1784 = vunpack.c.l.b16 %v1705
    %v1785 = vunpack.c.l.b16 %v1706
    %v1786 = vunpack.c.l.b16 %v1707
    %v1787 = vunpack.c.l.b16 %v1708
    %v1788 = vunpack.c.l.b16 %v1709
    %v1789 = vunpack.c.l.b16 %v1710
    %v1790 = vunpack.c.l.b16 %v1711
    %v1791 = vunpack.c.l.b16 %v1712
    %v1792 = vunpack.c.l.b16 %v1713
    %v1793 = vunpack.c.l.b16 %v1714
    %v1794 = vunpack.c.l.b16 %v1715
    %v1795 = vunpack.c.l.b16 %v1716
    %v1796 = vunpack.c.l.b16 %v1717
    %v1797 = vunpack.c.l.b16 %v1718
    %v1798 = vunpack.c.l.b16 %v1719
    %v1799 = vunpack.c.l.b16 %v1720
    %v1800 = vunpack.c.l.b16 %v1721
    %v1801 = vunpack.c.l.b16 %v1722
    %v1802 = vunpack.c.l.b16 %v1723
    %v1803 = vunpack.c.l.b16 %v1724
    %v1804 = vunpack.c.l.b16 %v1725
    %v1805 = vunpack.c.l.b16 %v1726
    %v1806 = vunpack.c.l.b16 %v1727
    %v1807 = vunpack.c.l.b16 %v1728
    %v1808 = vunpack.c.l.b16 %v1729
    %v1809 = vsel %vm485, %v1778, %v1777
    %v1810 = vsel %vm487, %v1779, %v1809
    %v1811 = vsel %vm489, %v1780, %v1810
    %v1812 = vsel %vm491, %v1781, %v1811
    %v1813 = vsel %vm493, %v1782, %v1812
    %v1814 = vsel %vm495, %v1783, %v1813
    %v1815 = vsel %vm497, %v1784, %v1814
    %v1816 = vsel %vm485, %v1786, %v1785
    %v1817 = vsel %vm487, %v1787, %v1816
    %v1818 = vsel %vm489, %v1788, %v1817
    %v1819 = vsel %vm491, %v1789, %v1818
    %v1820 = vsel %vm493, %v1790, %v1819
    %v1821 = vsel %vm495, %v1791, %v1820
    %v1822 = vsel %vm497, %v1792, %v1821
    %v1823 = vsel %vm485, %v1794, %v1793
    %v1824 = vsel %vm487, %v1795, %v1823
    %v1825 = vsel %vm489, %v1796, %v1824
    %v1826 = vsel %vm491, %v1797, %v1825
    %v1827 = vsel %vm493, %v1798, %v1826
    %v1828 = vsel %vm495, %v1799, %v1827
    %v1829 = vsel %vm497, %v1800, %v1828
    %v1830 = vsel %vm485, %v1802, %v1801
    %v1831 = vsel %vm487, %v1803, %v1830
    %v1832 = vsel %vm489, %v1804, %v1831
    %v1833 = vsel %vm491, %v1805, %v1832
    %v1834 = vsel %vm493, %v1806, %v1833
    %v1835 = vsel %vm495, %v1807, %v1834
    %v1836 = vsel %vm497, %v1808, %v1835
    %v1837 = vpack.c.b16 %v1822, %v1815
    %v1838 = vpack.c.b16 %v1836, %v1829
    %v1843 = vunpack.c.l.b16 %v1730
    %v1844 = vunpack.c.l.b16 %v1731
    %v1845 = vunpack.c.l.b16 %v1732
    %v1846 = vunpack.c.l.b16 %v1733
    %v1847 = vpack.c.b16 %v1844, %v1843
    %v1848 = vpack.c.b16 %v1846, %v1845
    %v1852 = vsel %vm1473, %v1837, 0
    %v1855 = vsel %vm1473, %v1838, 0
    %1857 = vmatprep.subr.bf16.mxu0 0
    %1858 = vmatpush1.bf16.msra.mxu0 0
    %1859 = vmatprep.subr.bf16.mxu0 0
    %1860 = vmatpush1.bf16.msra.mxu0 0
    %1861 = vmatprep.subr.bf16.mxu0 0
    %1862 = vmatpush1.bf16.msra.mxu0 0
    %1863 = vmatprep.subr.bf16.mxu0 0
    %1864 = vmatpush1.bf16.msra.mxu0 0
    %1865 = vmatprep.subr.bf16.mxu0 0
    %1866 = vmatpush1.bf16.msra.mxu0 0
    %1867 = vmatprep.subr.bf16.mxu0 0
    %1868 = vmatpush1.bf16.msra.mxu0 0
    %1869 = vmatprep.subr.bf16.mxu0 0
    %1870 = vmatpush1.bf16.msra.mxu0 %v1848
    %1871 = vmatprep.subr.bf16.mxu0 0
    %1872 = vmatpush1.bf16.msra.mxu0 %v1847
    %1873 = vmatprep.subr.bf16.mxu0 0
    %1874 = vmatpush2.bf16.msra.mxu0 0
    %1875 = vmatprep.subr.bf16.mxu0 0
    %1876 = vmatpush2.bf16.msra.mxu0 0
    %1877 = vmatprep.subr.bf16.mxu0 0
    %1878 = vmatpush2.bf16.msra.mxu0 0
    %1879 = vmatprep.subr.bf16.mxu0 0
    %1880 = vmatpush2.bf16.msra.mxu0 0
    %1881 = vmatprep.subr.bf16.mxu0 0
    %1882 = vmatpush2.bf16.msra.mxu0 0
    %1883 = vmatprep.subr.bf16.mxu0 0
    %1884 = vmatpush2.bf16.msra.mxu0 0
    %1885 = vmatprep.subr.bf16.mxu0 0
    %1886 = vmatpush2.bf16.msra.mxu0 0
    %1887 = vmatprep.subr.bf16.mxu0 0
    %1888 = vmatpush2.bf16.msra.mxu0 0
    %1889 = vmatprep.mubr.bf16.mxu0 0
    %1890 = vmatmul.mubr.bf16.gmra.mxu0 %v1852
    %v1891 = vpop.f32.mrf.mxu0
    %v1892 = vadd.f32 %v1741, %v1891
    %v1893 = vpop.f32.mrf.mxu0
    %v1894 = vpop.f32.mrf.mxu0
    %v1895 = vadd.f32 %v1742, %v1894
    %v1896 = vpop.f32.mrf.mxu0
    %1897 = vmatprep.mubr.bf16.mxu0 0
    %1898 = vmatmul.mubr.bf16.gmra.mxu0 %v1855
    %v1899 = vpop.f32.mrf.mxu0
    %v1900 = vadd.f32 %v1743, %v1899
    %v1901 = vpop.f32.mrf.mxu0
    %v1902 = vpop.f32.mrf.mxu0
    %v1903 = vadd.f32 %v1744, %v1902
    %v1904 = vpop.f32.mrf.mxu0
    %1905 = vdwg.mxu0
    %v1906 = vpack.c.bf16 %v1895, %v1892
    %v1907 = vpack.c.bf16 %v1903, %v1900
    %v1908 = vld [vmem:[%s5] sm:$0xf]
    %v1909 = vld [vmem:[%s5 + $0x4] sm:$0xf]
    %v1910 = vld [vmem:[%s5 + $0x8] sm:$0xf]
    %v1911 = vld [vmem:[%s5 + $0xc] sm:$0xf]
    %v1912 = vld [vmem:[%s6] sm:$0x1]
    %v1914 = vlaneseq
    %v1915 = vshrl.u32 %v1914, 7
    %v1916 = vsub.s32 0, %v1915
    %v1917 = vrot.slane %v1912, %v1916
    %v1923 = vunpack.c.l.b16 %v1908
    %v1924 = vunpack.c.l.b16 %v1909
    %v1925 = vunpack.c.l.b16 %v1910
    %v1926 = vunpack.c.l.b16 %v1911
    %v1927 = vpack.c.b16 %v1924, %v1923
    %v1928 = vpack.c.b16 %v1926, %v1925
    %v1932 = vsel %vm1473, %v1906, 0
    %v1935 = vsel %vm1473, %v1907, 0
    %1937 = vmatprep.subr.bf16.mxu0 0
    %1938 = vmatpush1.bf16.msra.mxu0 0
    %1939 = vmatprep.subr.bf16.mxu0 0
    %1940 = vmatpush1.bf16.msra.mxu0 0
    %1941 = vmatprep.subr.bf16.mxu0 0
    %1942 = vmatpush1.bf16.msra.mxu0 0
    %1943 = vmatprep.subr.bf16.mxu0 0
    %1944 = vmatpush1.bf16.msra.mxu0 0
    %1945 = vmatprep.subr.bf16.mxu0 0
    %1946 = vmatpush1.bf16.msra.mxu0 0
    %1947 = vmatprep.subr.bf16.mxu0 0
    %1948 = vmatpush1.bf16.msra.mxu0 0
    %1949 = vmatprep.subr.bf16.mxu0 0
    %1950 = vmatpush1.bf16.msra.mxu0 %v1928
    %1951 = vmatprep.subr.bf16.mxu0 0
    %1952 = vmatpush1.bf16.msra.mxu0 %v1927
    %1953 = vmatprep.subr.bf16.mxu0 0
    %1954 = vmatpush2.bf16.msra.mxu0 0
    %1955 = vmatprep.subr.bf16.mxu0 0
    %1956 = vmatpush2.bf16.msra.mxu0 0
    %1957 = vmatprep.subr.bf16.mxu0 0
    %1958 = vmatpush2.bf16.msra.mxu0 0
    %1959 = vmatprep.subr.bf16.mxu0 0
    %1960 = vmatpush2.bf16.msra.mxu0 0
    %1961 = vmatprep.subr.bf16.mxu0 0
    %1962 = vmatpush2.bf16.msra.mxu0 0
    %1963 = vmatprep.subr.bf16.mxu0 0
    %1964 = vmatpush2.bf16.msra.mxu0 0
    %1965 = vmatprep.subr.bf16.mxu0 0
    %1966 = vmatpush2.bf16.msra.mxu0 0
    %1967 = vmatprep.subr.bf16.mxu0 0
    %1968 = vmatpush2.bf16.msra.mxu0 0
    %1969 = vmatprep.mubr.bf16.mxu0 0
    %1970 = vmatmul.mubr.bf16.gmra.mxu0 %v1932
    %v1971 = vpop.f32.mrf.mxu0
    %v1972 = vadd.f32 %v1917, %v1971
    %v1973 = vpop.f32.mrf.mxu0
    %v1974 = vpop.f32.mrf.mxu0
    %v1975 = vadd.f32 %v1917, %v1974
    %v1976 = vpop.f32.mrf.mxu0
    %1977 = vmatprep.mubr.bf16.mxu0 0
    %1978 = vmatmul.mubr.bf16.gmra.mxu0 %v1935
    %v1979 = vpop.f32.mrf.mxu0
    %v1980 = vadd.f32 %v1917, %v1979
    %v1981 = vpop.f32.mrf.mxu0
    %v1982 = vpop.f32.mrf.mxu0
    %v1983 = vadd.f32 %v1917, %v1982
    %v1984 = vpop.f32.mrf.mxu0
    %1985 = vdwg.mxu0
    %v1986 = vmax.f32 %v1972, 0.0
    %v1987 = vmax.f32 %v1975, 0.0
    %v1988 = vmax.f32 %v1980, 0.0
    %v1989 = vmax.f32 %v1983, 0.0
    %v1990 = vpack.c.bf16 %v1987, %v1986
    %v1991 = vpack.c.bf16 %v1989, %v1988
    %v1992 = vld [vmem:[%s7] sm:$0xf]
    %v1993 = vld [vmem:[%s7 + $0x4] sm:$0xf]
    %v1994 = vld [vmem:[%s7 + $0x8] sm:$0xf]
    %v1995 = vld [vmem:[%s7 + $0xc] sm:$0xf]
    %v1996 = vld [vmem:[%s8] sm:$0x1]
    %v1998 = vlaneseq
    %v1999 = vshrl.u32 %v1998, 7
    %v2000 = vsub.s32 0, %v1999
    %v2001 = vrot.slane %v1996, %v2000
    %v2007 = vunpack.c.l.b16 %v1992
    %v2008 = vunpack.c.l.b16 %v1993
    %v2009 = vunpack.c.l.b16 %v1994
    %v2010 = vunpack.c.l.b16 %v1995
    %v2011 = vpack.c.b16 %v2008, %v2007
    %v2012 = vpack.c.b16 %v2010, %v2009
    %v2016 = vsel %vm1473, %v1990, 0
    %v2019 = vsel %vm1473, %v1991, 0
    %2021 = vmatprep.subr.bf16.mxu0 0
    %2022 = vmatpush1.bf16.msra.mxu0 0
    %2023 = vmatprep.subr.bf16.mxu0 0
    %2024 = vmatpush1.bf16.msra.mxu0 0
    %2025 = vmatprep.subr.bf16.mxu0 0
    %2026 = vmatpush1.bf16.msra.mxu0 0
    %2027 = vmatprep.subr.bf16.mxu0 0
    %2028 = vmatpush1.bf16.msra.mxu0 0
    %2029 = vmatprep.subr.bf16.mxu0 0
    %2030 = vmatpush1.bf16.msra.mxu0 0
    %2031 = vmatprep.subr.bf16.mxu0 0
    %2032 = vmatpush1.bf16.msra.mxu0 0
    %2033 = vmatprep.subr.bf16.mxu0 0
    %2034 = vmatpush1.bf16.msra.mxu0 %v2012
    %2035 = vmatprep.subr.bf16.mxu0 0
    %2036 = vmatpush1.bf16.msra.mxu0 %v2011
    %2037 = vmatprep.subr.bf16.mxu0 0
    %2038 = vmatpush2.bf16.msra.mxu0 0
    %2039 = vmatprep.subr.bf16.mxu0 0
    %2040 = vmatpush2.bf16.msra.mxu0 0
    %2041 = vmatprep.subr.bf16.mxu0 0
    %2042 = vmatpush2.bf16.msra.mxu0 0
    %2043 = vmatprep.subr.bf16.mxu0 0
    %2044 = vmatpush2.bf16.msra.mxu0 0
    %2045 = vmatprep.subr.bf16.mxu0 0
    %2046 = vmatpush2.bf16.msra.mxu0 0
    %2047 = vmatprep.subr.bf16.mxu0 0
    %2048 = vmatpush2.bf16.msra.mxu0 0
    %2049 = vmatprep.subr.bf16.mxu0 0
    %2050 = vmatpush2.bf16.msra.mxu0 0
    %2051 = vmatprep.subr.bf16.mxu0 0
    %2052 = vmatpush2.bf16.msra.mxu0 0
    %2053 = vmatprep.mubr.bf16.mxu0 0
    %2054 = vmatmul.mubr.bf16.gmra.mxu0 %v2016
    %v2055 = vpop.f32.mrf.mxu0
    %v2056 = vadd.f32 %v2001, %v2055
    %v2057 = vpop.f32.mrf.mxu0
    %v2058 = vpop.f32.mrf.mxu0
    %v2059 = vadd.f32 %v2001, %v2058
    %v2060 = vpop.f32.mrf.mxu0
    %2061 = vmatprep.mubr.bf16.mxu0 0
    %2062 = vmatmul.mubr.bf16.gmra.mxu0 %v2019
    %v2063 = vpop.f32.mrf.mxu0
    %v2064 = vadd.f32 %v2001, %v2063
    %v2065 = vpop.f32.mrf.mxu0
    %v2066 = vpop.f32.mrf.mxu0
    %v2067 = vadd.f32 %v2001, %v2066
    %v2068 = vpop.f32.mrf.mxu0
    %2069 = vdwg.mxu0
    %2070 = vst [vmem:[#allocation2] sm:$0xff] %v2056
    %2071 = vst [vmem:[#allocation2 + $0x8] sm:$0xff] %v2059
    %2072 = vst [vmem:[#allocation2 + $0x10] sm:$0xff] %v2064
    %2073 = vst [vmem:[#allocation2 + $0x18] sm:$0xff] %v2067
    // Predicated region
    $region38: #{tpu_custom_call.1} parent=1 // pred_check
      _
    $region39: #{tpu_custom_call.1} parent=1 // pred_check_branch
      %2075 = sbr.rel (0) target = $region41
    $region40: #{tpu_custom_call.1} parent=1 // pred_region
      %s2077 = ssub.s32 512, 512
      %2078 = vsyncadd [#allocation3], %s2077
      %s2079 = sshll.u32 [#allocation2], 4
      %s2080 = int_to_ptr.vmem [resolvable:$true] %s2079
      %2085 = dma.vmem_to_hbm [thread:$0]  %s2080, 512, %s9, [#allocation3], 128, 128, 8
    $region41: #{tpu_custom_call.1} parent=1 // pred_fallthru
      _
    // Predicated region
    $region42: #{tpu_custom_call.1} parent=1 // pred_check
      _
    $region43: #{tpu_custom_call.1} parent=1 // pred_check_branch
      %2087 = sbr.rel (0) target = $region45
    $region44: #{tpu_custom_call.1} parent=1 // pred_region
      %2088 = dma.done [#allocation3], 512
    $region45: #{tpu_custom_call.1} parent=1 // pred_fallthru
      _
    %2089 = vsyncpa [#allocation3], 1

</llo_original>
